<compile_context>
chip_gen: v5e
topology: v5e:2x2
jax: 0.10.0
libtpu: 0.0.40
codegen_flags: <defaults>
</compile_context>

<pallas_src>
import numpy as np
import jax
import jax.numpy as jnp
from jax.experimental import pallas as pl
from jax.experimental.pallas import tpu as pltpu


# ----------------------------- config (small, consistent with forward) -----------------------------
NUM_CHARS = 32
EMB_DIM = 256                 # nn.Embedding(num_chars, 256)
R = 2                         # c.r (frames per decoder step)
MEL_DIM = 16                  # c.audio['num_mels']
NUM_FREQ = 32                 # c.audio['num_freq'] (linear_dim, unused in forward)
SPK_DIM = 16                  # c.speaker_embedding_dim
MAX_SPEAKER_ID = 3
STYLE_DIM = 16                # c.style_token_dim
NUM_STYLE_TOKENS = 4          # c.num_style_tokens
PROSODY_DIM = 32              # c.prosody_encoding_dim
POSTNET_FMAPS = 32            # c.postnet_num_feature_maps
POSTNET_CONVS = 5
POSTNET_K = 5
PRENET_H1, PRENET_H2 = 256, 128

PROJ_PAD = 64                 # decoder projection width: [0, r*mel) mel, col r*mel = stop, rest 0
SLAB_PAD = 128                # lane-dense packed output slab width
MEL_OFF = 0
POST_OFF = R * MEL_DIM        # 32
STOP_OFF = 2 * R * MEL_DIM    # 64
ALIGN_OFF = STOP_OFF + 8      # 72

# super-frame ('same' conv re-expressed on the (T_dec, r*C) decoder-step layout) geometry
_PAD_F = POSTNET_K // 2
_SUP_PL = (_PAD_F + R - 1) // R          # zero super-rows padded on the left
_SUP_PR = (R - 1 + _PAD_F) // R          # zero super-rows padded on the right
_SUP_KP = _SUP_PL + _SUP_PR + 1          # super-frame kernel taps

_F32 = jnp.float32
_BF16 = jnp.bfloat16

_WEIGHT_NAMES = (
    "enc_w1", "enc_b1", "enc_w2", "enc_b2",
    "gst_ref_w", "gst_ref_b", "gst_keys_t", "gst_tokens",
    "comb_w_enc", "comb_w_spk", "comb_w_style", "comb_b",
    "pre_w1", "pre_b1", "pre_w2", "pre_b2", "q_w", "q_b",
    "dec_out_w_q", "dec_out_w_c", "dec_out_b",
    "post_w0", "post_b0", "post_w1", "post_b1", "post_w2", "post_b2",
    "post_w3", "post_b3", "post_w4", "post_b4",
)


def _full_spec(a):
    """BlockSpec covering the whole array (single grid step)."""
    nd = a.ndim
    return pl.BlockSpec(a.shape, lambda i, _nd=nd: (0,) * _nd)


def _superframe_conv_weight(w, r):
    """Repack a per-frame 'same' conv weight (K, C_in, C_out) into a super-frame im2col weight
    of shape (KP*r*C_in, r*C_out) acting on the (T_dec, r*C) decoder-step layout, where each
    decoder step holds r consecutive frames. Done once at init (host-side numpy)."""
    K, c_in, c_out = w.shape
    pad = K // 2
    lpad = (pad + r - 1) // r
    rpad = (r - 1 + pad) // r
    kp = lpad + rpad + 1
    W = np.zeros((kp, r * c_in, r * c_out), np.float32)
    for rr_out in range(r):
        for k in range(K):
            f = rr_out + k - pad               # input-frame offset relative to frame d*r
            drow = f // r                      # super-row offset (floor handles negatives)
            rr_in = f - drow * r               # which frame slot inside that super-row
            W[drow + lpad, rr_in * c_in:(rr_in + 1) * c_in,
              rr_out * c_out:(rr_out + 1) * c_out] = w[k]
    return W.reshape(kp * r * c_in, r * c_out)


# ----------------------------- fused kernel -----------------------------
def _tacotron_fused_kernel(x_ref, spk_ref, ref_ref, prev_ref, maskb_ref, *refs):
    nw = len(_WEIGHT_NAMES)
    w = dict(zip(_WEIGHT_NAMES, refs[:nw]))
    slab_ref, tok_ref = refs[nw], refs[nw + 1]

    B, T_in, _ = x_ref.shape
    _, T_dec, _ = prev_ref.shape

    # ---- encoder (simplified FF stack; TODO(synk): CBHG not reproduced), batch flattened into M ----
    x = x_ref[...].reshape(B * T_in, EMB_DIM).astype(_BF16)
    h1 = jnp.maximum(jnp.dot(x, w["enc_w1"][...], preferred_element_type=_F32) + w["enc_b1"][...], 0.0)
    h2 = jnp.maximum(jnp.dot(h1.astype(_BF16), w["enc_w2"][...], preferred_element_type=_F32)
                     + w["enc_b2"][...], 0.0)

    # ---- global style tokens: ref encoding -> token softmax -> style encoding (all B at once) ----
    refm = ref_ref[...].astype(_BF16)                                                 # (B, MEL)
    pros = jnp.tanh(jnp.dot(refm, w["gst_ref_w"][...], preferred_element_type=_F32)
                    + w["gst_ref_b"][...])                                            # (B, PROS)
    s = jnp.dot(pros.astype(_BF16), w["gst_keys_t"][...], preferred_element_type=_F32)  # (B, NT)
    s = s - jnp.max(s, axis=-1, keepdims=True)
    e = jnp.exp(s)
    tok = e / jnp.sum(e, axis=-1, keepdims=True)                                      # exact softmax
    style = jnp.dot(tok.astype(_BF16), w["gst_tokens"][...], preferred_element_type=_F32)  # (B, STYLE)
    tok_ref[...] = jnp.concatenate(
        [tok, jnp.zeros((B, SLAB_PAD - NUM_STYLE_TOKENS), _F32)], axis=-1)            # lane-dense slab

    # ---- embedding combiner: split-weight form of concat([enc, spk, style]) @ W + b ----
    spk = spk_ref[...].astype(_BF16)                                                  # (B, SPK)
    per_b = (jnp.dot(spk, w["comb_w_spk"][...], preferred_element_type=_F32)
             + jnp.dot(style.astype(_BF16), w["comb_w_style"][...], preferred_element_type=_F32)
             + w["comb_b"][...])                                                      # (B, EMB)
    enc_c = jnp.dot(h2.astype(_BF16), w["comb_w_enc"][...], preferred_element_type=_F32)  # (B*T_in, EMB)
    keys = jnp.maximum(enc_c.reshape(B, T_in, EMB_DIM) + per_b[:, None, :], 0.0).astype(_BF16)

    # ---- decoder prenet + query projection (batch flattened into M) ----
    # TODO(synk): recurrent attention-RNN state not reproduced; teacher-forced per-step queries.
    prev = prev_ref[...].reshape(B * T_dec, R * MEL_DIM).astype(_BF16)
    p1 = jnp.maximum(jnp.dot(prev, w["pre_w1"][...], preferred_element_type=_F32) + w["pre_b1"][...], 0.0)
    p2 = jnp.maximum(jnp.dot(p1.astype(_BF16), w["pre_w2"][...], preferred_element_type=_F32)
                     + w["pre_b2"][...], 0.0)
    q = jnp.dot(p2.astype(_BF16), w["q_w"][...], preferred_element_type=_F32) + w["q_b"][...]  # (B*T_dec, E)
    qb = q.reshape(B, T_dec, EMB_DIM).astype(_BF16)

    # ---- masked content attention over VMEM-resident keys (keys double as values) ----
    scores = jnp.einsum("bqd,bkd->bqk", qb, keys, preferred_element_type=_F32) + maskb_ref[...]
    scores = scores - jnp.max(scores, axis=-1, keepdims=True)
    e = jnp.exp(scores)
    attn = e / jnp.sum(e, axis=-1, keepdims=True)                                     # exact softmax
    ctx = jnp.einsum("bqk,bkd->bqd", attn.astype(_BF16), keys, preferred_element_type=_F32)

    # ---- merged (mel | stop) projection ----
    proj = (jnp.dot(q.astype(_BF16), w["dec_out_w_q"][...], preferred_element_type=_F32)
            + jnp.dot(ctx.reshape(B * T_dec, EMB_DIM).astype(_BF16), w["dec_out_w_c"][...],
                      preferred_element_type=_F32)
            + w["dec_out_b"][...])                                                    # (B*T_dec, PROJ_PAD)
    proj = proj.reshape(B, T_dec, PROJ_PAD)
    mel = proj[..., : R * MEL_DIM]                                                    # super-frame layout
    stop_chunk = proj[..., R * MEL_DIM: R * MEL_DIM + 8]                              # col 0 = stop logit

    # ---- postnet: 5 'same' convs, one im2col matmul each, super-frame layout (no reshape) ----
    # TODO(synk): BatchNorm + dropout omitted (inference-style feed-forward conv stack).
    x_p = mel
    for l in range(POSTNET_CONVS):
        c_in2 = x_p.shape[-1]
        zl = jnp.zeros((B, _SUP_PL, c_in2), _F32)
        zr = jnp.zeros((B, _SUP_PR, c_in2), _F32)
        xp = jnp.concatenate([zl, x_p, zr], axis=1)                                   # (B, T_dec+KP-1, c)
        im = jnp.concatenate([xp[:, k:k + T_dec, :] for k in range(_SUP_KP)], axis=-1)
        im = im.reshape(B * T_dec, _SUP_KP * c_in2).astype(_BF16)
        y = jnp.dot(im, w[f"post_w{l}"][...], preferred_element_type=_F32) + w[f"post_b{l}"][...]
        if l < POSTNET_CONVS - 1:
            y = jnp.tanh(y)
        x_p = y.reshape(B, T_dec, y.shape[-1])
    mel_post = mel + x_p                                                              # residual

    # ---- packed lane-dense 128-wide output slab: [mel | mel_post | stop.. | attn | 0] ----
    tail = jnp.zeros((B, T_dec, SLAB_PAD - (ALIGN_OFF + T_in)), _F32)
    slab_ref[...] = jnp.concatenate([mel, mel_post, stop_chunk, attn, tail], axis=-1)


# ----------------------------- cost estimate (advisory) -----------------------------
def _cost_estimate(B, T_in, T_dec, ins):
    fl = 0
    fl += 2 * 2 * B * T_in * EMB_DIM * EMB_DIM                                        # encoder FF x2
    fl += 2 * B * (MEL_DIM * PROSODY_DIM + PROSODY_DIM * NUM_STYLE_TOKENS
                   + NUM_STYLE_TOKENS * STYLE_DIM)                                    # GST
    fl += 2 * B * T_in * EMB_DIM * EMB_DIM                                            # combiner (enc)
    fl += 2 * B * (SPK_DIM + STYLE_DIM) * EMB_DIM                                     # combiner (spk/style)
    fl += 2 * B * T_dec * (R * MEL_DIM * PRENET_H1 + PRENET_H1 * PRENET_H2 + PRENET_H2 * EMB_DIM)
    fl += 2 * 2 * B * T_dec * T_in * EMB_DIM                                          # scores + context
    fl += 2 * 2 * B * T_dec * EMB_DIM * PROJ_PAD                                      # merged projection
    ch2 = [R * MEL_DIM] + [R * POSTNET_FMAPS] * (POSTNET_CONVS - 1) + [R * MEL_DIM]
    for l in range(POSTNET_CONVS):
        fl += 2 * B * T_dec * (_SUP_KP * ch2[l]) * ch2[l + 1]                         # postnet im2col
    trans = B * (PROSODY_DIM + NUM_STYLE_TOKENS + T_dec * T_in)
    trans += B * T_dec * sum(ch2[1:POSTNET_CONVS])
    byt = sum(int(np.prod(a.shape)) * a.dtype.itemsize for a in ins)
    byt += (B * T_dec * SLAB_PAD + B * SLAB_PAD) * 4
    return pl.CostEstimate(flops=int(fl), transcendentals=int(trans), bytes_accessed=int(byt))


# ----------------------------- parameters -----------------------------
def init_params(key):
    ks = iter(jax.random.split(key, 64))

    def nrm(shape, s, dt=_F32):
        return (jax.random.normal(next(ks), shape, _F32) * s).astype(dt)

    p = {}
    # embeddings (normal_(0, 0.3) as in __init__)
    p["embedding"] = nrm((NUM_CHARS, EMB_DIM), 0.3)
    p["speaker_embedding"] = nrm((MAX_SPEAKER_ID + 1, SPK_DIM), 0.3)
    # encoder (simplified)
    p["enc_w1"], p["enc_b1"] = nrm((EMB_DIM, EMB_DIM), 0.05, _BF16), jnp.zeros((1, EMB_DIM), _F32)
    p["enc_w2"], p["enc_b2"] = nrm((EMB_DIM, EMB_DIM), 0.05, _BF16), jnp.zeros((1, EMB_DIM), _F32)
    # global style tokens (keys stored pre-transposed: (PROS, NT) -> plain dot, no in-kernel transpose)
    p["gst_ref_w"], p["gst_ref_b"] = nrm((MEL_DIM, PROSODY_DIM), 0.05, _BF16), jnp.zeros((1, PROSODY_DIM), _F32)
    p["gst_keys_t"] = nrm((PROSODY_DIM, NUM_STYLE_TOKENS), 0.3, _BF16)
    p["gst_tokens"] = nrm((NUM_STYLE_TOKENS, STYLE_DIM), 0.3, _BF16)
    # embedding combiner: (256 + spk + style) -> 256, split by input segment (concat order: enc, spk, style)
    comb_in = EMB_DIM + SPK_DIM + STYLE_DIM
    comb_w = nrm((comb_in, EMB_DIM), 0.05)
    p["comb_w_enc"] = comb_w[:EMB_DIM].astype(_BF16)
    p["comb_w_spk"] = comb_w[EMB_DIM:EMB_DIM + SPK_DIM].astype(_BF16)
    p["comb_w_style"] = comb_w[EMB_DIM + SPK_DIM:].astype(_BF16)
    p["comb_b"] = jnp.zeros((1, EMB_DIM), _F32)
    # decoder prenet / query
    p["pre_w1"], p["pre_b1"] = nrm((R * MEL_DIM, PRENET_H1), 0.05, _BF16), jnp.zeros((1, PRENET_H1), _F32)
    p["pre_w2"], p["pre_b2"] = nrm((PRENET_H1, PRENET_H2), 0.05, _BF16), jnp.zeros((1, PRENET_H2), _F32)
    p["q_w"], p["q_b"] = nrm((PRENET_H2, EMB_DIM), 0.05, _BF16), jnp.zeros((1, EMB_DIM), _F32)
    # merged mel/stop projection, padded to PROJ_PAD and split by [q | context] rows
    out_w = nrm((2 * EMB_DIM, R * MEL_DIM), 0.05)
    stop_w = nrm((2 * EMB_DIM, 1), 0.05)
    merged = jnp.zeros((2 * EMB_DIM, PROJ_PAD), _F32)
    merged = merged.at[:, :R * MEL_DIM].set(out_w)
    merged = merged.at[:, R * MEL_DIM].set(stop_w[:, 0])
    p["dec_out_w_q"] = merged[:EMB_DIM].astype(_BF16)
    p["dec_out_w_c"] = merged[EMB_DIM:].astype(_BF16)
    p["dec_out_b"] = jnp.zeros((1, PROJ_PAD), _F32)
    # postnet: 5 'same' convs (K=5), repacked once into super-frame im2col weights
    chans = [MEL_DIM] + [POSTNET_FMAPS] * (POSTNET_CONVS - 1) + [MEL_DIM]
    for i in range(POSTNET_CONVS):
        wk = np.asarray(nrm((POSTNET_K, chans[i], chans[i + 1]), 0.05))
        p[f"post_w{i}"] = jnp.asarray(_superframe_conv_weight(wk, R)).astype(_BF16)
        p[f"post_b{i}"] = jnp.zeros((1, R * chans[i + 1]), _F32)
    return p


# ----------------------------- forward -----------------------------
def tacotron_forward(params, characters, text_lengths, mel_specs, speaker_ids):
    B, T_in = characters.shape
    _, T_mel, mel_dim = mel_specs.shape
    T_dec = T_mel // R
    assert ALIGN_OFF + T_in <= SLAB_PAD, "pad T_in into multiple slabs for longer texts"

    # additive attention mask bias over text positions (0 where valid, -1e9 where padded)
    mask = jnp.arange(T_in)[None, :] < text_lengths[:, None]
    mask_bias = jnp.where(mask, 0.0, -1e9).astype(_F32)[:, None, :]                   # (B, 1, T_in)

    # character / speaker embeddings + reference mel statistic (small XLA gathers / mean)
    inputs = params["embedding"][characters]                                          # (B, T_in, 256)
    spk = params["speaker_embedding"][speaker_ids]                                    # (B, SPK)
    ref = jnp.mean(mel_specs, axis=1)                                                 # (B, MEL)

    # teacher-forced decoder inputs (r frames per step, shifted by one step)
    frames = mel_specs.reshape(B, T_dec, R * mel_dim)
    prev = jnp.concatenate([jnp.zeros((B, 1, R * mel_dim), _F32), frames[:, :-1]], axis=1)

    weights = tuple(params[n] for n in _WEIGHT_NAMES)
    data_ins = (inputs, spk, ref, prev, mask_bias)

    slab, tok = pl.pallas_call(
        _tacotron_fused_kernel,
        out_shape=(
            jax.ShapeDtypeStruct((B, T_dec, SLAB_PAD), _F32),
            jax.ShapeDtypeStruct((B, SLAB_PAD), _F32),
        ),
        grid=(1,),
        in_specs=[_full_spec(a) for a in data_ins + weights],
        out_specs=(
            pl.BlockSpec((B, T_dec, SLAB_PAD), lambda i: (0, 0, 0)),
            pl.BlockSpec((B, SLAB_PAD), lambda i: (0, 0)),
        ),
        compiler_params=pltpu.CompilerParams(dimension_semantics=("arbitrary",)),
        cost_estimate=_cost_estimate(B, T_in, T_dec, data_ins + weights),
    )(*data_ins, *weights)

    # cheap XLA views of the lane-dense slab
    mel_outputs = slab[..., MEL_OFF:MEL_OFF + R * mel_dim].reshape(B, T_mel, mel_dim)
    mel_outputs_postnet = slab[..., POST_OFF:POST_OFF + R * mel_dim].reshape(B, T_mel, mel_dim)
    stop_tokens = jax.nn.sigmoid(slab[..., STOP_OFF])                                 # (B, T_dec)
    alignments = slab[..., ALIGN_OFF:ALIGN_OFF + T_in]                                # (B, T_dec, T_in)
    token_scores = tok[:, :NUM_STYLE_TOKENS]                                          # (B, NT)

    return mel_outputs, mel_outputs_postnet, alignments, stop_tokens, token_scores


# ----------------------------- main -----------------------------
if __name__ == "__main__":
    key = jax.random.PRNGKey(0)
    kp, kc, km, ks = jax.random.split(key, 4)

    params = init_params(kp)

    B, T_in, T_mel = 2, 8, 8  # T_mel divisible by r
    characters = jax.random.randint(kc, (B, T_in), 0, NUM_CHARS, dtype=jnp.int32)
    text_lengths = jnp.array([T_in, T_in - 2], dtype=jnp.int32)
    mel_specs = jax.random.normal(km, (B, T_mel, MEL_DIM), _F32)
    speaker_ids = jax.random.randint(ks, (B,), 0, MAX_SPEAKER_ID + 1, dtype=jnp.int32)

    fwd = jax.jit(tacotron_forward)
    outs = jax.block_until_ready(fwd(params, characters, text_lengths, mel_specs, speaker_ids))

    mel, mel_post, align, stop, tok = outs
    assert mel.shape == (B, T_mel, MEL_DIM)
    assert mel_post.shape == (B, T_mel, MEL_DIM)
    assert align.shape == (B, T_mel // R, T_in)
    assert stop.shape == (B, T_mel // R)
    assert tok.shape == (B, NUM_STYLE_TOKENS)
    assert all(bool(jnp.all(jnp.isfinite(o.astype(jnp.float32)))) for o in outs)
    # exact in-kernel softmax: masked attention rows sum to 1
    assert bool(jnp.allclose(jnp.sum(align, axis=-1), 1.0, atol=1e-3))
    assert bool(jnp.allclose(jnp.sum(tok, axis=-1), 1.0, atol=1e-3))
    print("KERNEL_OK")
</pallas_src>

<mosaic_0001>
module attributes {stable_mosaic.version = 11 : i64} {
  func.func @_tacotron_fused_kernel(%arg0: i32, %arg1: memref<2x8x256xf32, #tpu.memory_space<vmem>>, %arg2: memref<2x16xf32, #tpu.memory_space<vmem>>, %arg3: memref<2x16xf32, #tpu.memory_space<vmem>>, %arg4: memref<2x4x32xf32, #tpu.memory_space<vmem>>, %arg5: memref<2x1x8xf32, #tpu.memory_space<vmem>>, %arg6: memref<256x256xbf16, #tpu.memory_space<vmem>>, %arg7: memref<1x256xf32, #tpu.memory_space<vmem>>, %arg8: memref<256x256xbf16, #tpu.memory_space<vmem>>, %arg9: memref<1x256xf32, #tpu.memory_space<vmem>>, %arg10: memref<16x32xbf16, #tpu.memory_space<vmem>>, %arg11: memref<1x32xf32, #tpu.memory_space<vmem>>, %arg12: memref<32x4xbf16, #tpu.memory_space<vmem>>, %arg13: memref<4x16xbf16, #tpu.memory_space<vmem>>, %arg14: memref<256x256xbf16, #tpu.memory_space<vmem>>, %arg15: memref<16x256xbf16, #tpu.memory_space<vmem>>, %arg16: memref<16x256xbf16, #tpu.memory_space<vmem>>, %arg17: memref<1x256xf32, #tpu.memory_space<vmem>>, %arg18: memref<32x256xbf16, #tpu.memory_space<vmem>>, %arg19: memref<1x256xf32, #tpu.memory_space<vmem>>, %arg20: memref<256x128xbf16, #tpu.memory_space<vmem>>, %arg21: memref<1x128xf32, #tpu.memory_space<vmem>>, %arg22: memref<128x256xbf16, #tpu.memory_space<vmem>>, %arg23: memref<1x256xf32, #tpu.memory_space<vmem>>, %arg24: memref<256x64xbf16, #tpu.memory_space<vmem>>, %arg25: memref<256x64xbf16, #tpu.memory_space<vmem>>, %arg26: memref<1x64xf32, #tpu.memory_space<vmem>>, %arg27: memref<96x64xbf16, #tpu.memory_space<vmem>>, %arg28: memref<1x64xf32, #tpu.memory_space<vmem>>, %arg29: memref<192x64xbf16, #tpu.memory_space<vmem>>, %arg30: memref<1x64xf32, #tpu.memory_space<vmem>>, %arg31: memref<192x64xbf16, #tpu.memory_space<vmem>>, %arg32: memref<1x64xf32, #tpu.memory_space<vmem>>, %arg33: memref<192x64xbf16, #tpu.memory_space<vmem>>, %arg34: memref<1x64xf32, #tpu.memory_space<vmem>>, %arg35: memref<192x32xbf16, #tpu.memory_space<vmem>>, %arg36: memref<1x32xf32, #tpu.memory_space<vmem>>, %arg37: memref<2x4x128xf32, #tpu.memory_space<vmem>>, %arg38: memref<2x128xf32, #tpu.memory_space<vmem>>) attributes {dimension_semantics = [#tpu.dimension_semantics<arbitrary>], iteration_bounds = array<i64: 1>, scalar_prefetch = 0 : i64, scratch_operands = 0 : i64, tpu.core_type = #tpu.core_type<tc>, window_params = [{pipeline_mode = #tpu.pipeline_mode<synchronous>, transform_indices = @transform_0, window_bounds = array<i64: 2, 8, 256>}, {pipeline_mode = #tpu.pipeline_mode<synchronous>, transform_indices = @transform_1, window_bounds = array<i64: 2, 16>}, {pipeline_mode = #tpu.pipeline_mode<synchronous>, transform_indices = @transform_2, window_bounds = array<i64: 2, 16>}, {pipeline_mode = #tpu.pipeline_mode<synchronous>, transform_indices = @transform_3, window_bounds = array<i64: 2, 4, 32>}, {pipeline_mode = #tpu.pipeline_mode<synchronous>, transform_indices = @transform_4, window_bounds = array<i64: 2, 1, 8>}, {pipeline_mode = #tpu.pipeline_mode<synchronous>, transform_indices = @transform_5, window_bounds = array<i64: 256, 256>}, {pipeline_mode = #tpu.pipeline_mode<synchronous>, transform_indices = @transform_6, window_bounds = array<i64: 1, 256>}, {pipeline_mode = #tpu.pipeline_mode<synchronous>, transform_indices = @transform_7, window_bounds = array<i64: 256, 256>}, {pipeline_mode = #tpu.pipeline_mode<synchronous>, transform_indices = @transform_8, window_bounds = array<i64: 1, 256>}, {pipeline_mode = #tpu.pipeline_mode<synchronous>, transform_indices = @transform_9, window_bounds = array<i64: 16, 32>}, {pipeline_mode = #tpu.pipeline_mode<synchronous>, transform_indices = @transform_10, window_bounds = array<i64: 1, 32>}, {pipeline_mode = #tpu.pipeline_mode<synchronous>, transform_indices = @transform_11, window_bounds = array<i64: 32, 4>}, {pipeline_mode = #tpu.pipeline_mode<synchronous>, transform_indices = @transform_12, window_bounds = array<i64: 4, 16>}, {pipeline_mode = #tpu.pipeline_mode<synchronous>, transform_indices = @transform_13, window_bounds = array<i64: 256, 256>}, {pipeline_mode = #tpu.pipeline_mode<synchronous>, transform_indices = @transform_14, window_bounds = array<i64: 16, 256>}, {pipeline_mode = #tpu.pipeline_mode<synchronous>, transform_indices = @transform_15, window_bounds = array<i64: 16, 256>}, {pipeline_mode = #tpu.pipeline_mode<synchronous>, transform_indices = @transform_16, window_bounds = array<i64: 1, 256>}, {pipeline_mode = #tpu.pipeline_mode<synchronous>, transform_indices = @transform_17, window_bounds = array<i64: 32, 256>}, {pipeline_mode = #tpu.pipeline_mode<synchronous>, transform_indices = @transform_18, window_bounds = array<i64: 1, 256>}, {pipeline_mode = #tpu.pipeline_mode<synchronous>, transform_indices = @transform_19, window_bounds = array<i64: 256, 128>}, {pipeline_mode = #tpu.pipeline_mode<synchronous>, transform_indices = @transform_20, window_bounds = array<i64: 1, 128>}, {pipeline_mode = #tpu.pipeline_mode<synchronous>, transform_indices = @transform_21, window_bounds = array<i64: 128, 256>}, {pipeline_mode = #tpu.pipeline_mode<synchronous>, transform_indices = @transform_22, window_bounds = array<i64: 1, 256>}, {pipeline_mode = #tpu.pipeline_mode<synchronous>, transform_indices = @transform_23, window_bounds = array<i64: 256, 64>}, {pipeline_mode = #tpu.pipeline_mode<synchronous>, transform_indices = @transform_24, window_bounds = array<i64: 256, 64>}, {pipeline_mode = #tpu.pipeline_mode<synchronous>, transform_indices = @transform_25, window_bounds = array<i64: 1, 64>}, {pipeline_mode = #tpu.pipeline_mode<synchronous>, transform_indices = @transform_26, window_bounds = array<i64: 96, 64>}, {pipeline_mode = #tpu.pipeline_mode<synchronous>, transform_indices = @transform_27, window_bounds = array<i64: 1, 64>}, {pipeline_mode = #tpu.pipeline_mode<synchronous>, transform_indices = @transform_28, window_bounds = array<i64: 192, 64>}, {pipeline_mode = #tpu.pipeline_mode<synchronous>, transform_indices = @transform_29, window_bounds = array<i64: 1, 64>}, {pipeline_mode = #tpu.pipeline_mode<synchronous>, transform_indices = @transform_30, window_bounds = array<i64: 192, 64>}, {pipeline_mode = #tpu.pipeline_mode<synchronous>, transform_indices = @transform_31, window_bounds = array<i64: 1, 64>}, {pipeline_mode = #tpu.pipeline_mode<synchronous>, transform_indices = @transform_32, window_bounds = array<i64: 192, 64>}, {pipeline_mode = #tpu.pipeline_mode<synchronous>, transform_indices = @transform_33, window_bounds = array<i64: 1, 64>}, {pipeline_mode = #tpu.pipeline_mode<synchronous>, transform_indices = @transform_34, window_bounds = array<i64: 192, 32>}, {pipeline_mode = #tpu.pipeline_mode<synchronous>, transform_indices = @transform_35, window_bounds = array<i64: 1, 32>}, {pipeline_mode = #tpu.pipeline_mode<synchronous>, transform_indices = @transform_36, window_bounds = array<i64: 2, 4, 128>}, {pipeline_mode = #tpu.pipeline_mode<synchronous>, transform_indices = @transform_37, window_bounds = array<i64: 2, 128>}]} {
    %c0 = arith.constant 0 : index
    %c0_0 = arith.constant 0 : index
    %c0_1 = arith.constant 0 : index
    %0 = vector.load %arg1[%c0, %c0_0, %c0_1] : memref<2x8x256xf32, #tpu.memory_space<vmem>>, vector<2x8x256xf32>
    %1 = vector.shape_cast %0 : vector<2x8x256xf32> to vector<16x256xf32>
    %2 = arith.truncf %1 : vector<16x256xf32> to vector<16x256xbf16>
    %c0_2 = arith.constant 0 : index
    %c0_3 = arith.constant 0 : index
    %3 = vector.load %arg6[%c0_2, %c0_3] : memref<256x256xbf16, #tpu.memory_space<vmem>>, vector<256x256xbf16>
    %cst = arith.constant dense<0.000000e+00> : vector<16x256xf32>
    %4 = tpu.matmul %2, %3, %cst {dimension_numbers = #tpu.dot_dimension_numbers<[1], [0], [0], [1], [0, 0, 1, 1], [], []>} : vector<16x256xbf16>, vector<256x256xbf16>, vector<16x256xf32> -> vector<16x256xf32>
    %c0_4 = arith.constant 0 : index
    %c0_5 = arith.constant 0 : index
    %5 = vector.load %arg7[%c0_4, %c0_5] : memref<1x256xf32, #tpu.memory_space<vmem>>, vector<1x256xf32>
    %6 = vector.broadcast %5 : vector<1x256xf32> to vector<16x256xf32>
    %7 = arith.addf %4, %6 : vector<16x256xf32>
    %cst_6 = arith.constant 0.000000e+00 : f32
    %8 = vector.broadcast %cst_6 : f32 to vector<16x256xf32>
    %9 = arith.maximumf %7, %8 : vector<16x256xf32>
    %10 = arith.truncf %9 : vector<16x256xf32> to vector<16x256xbf16>
    %c0_7 = arith.constant 0 : index
    %c0_8 = arith.constant 0 : index
    %11 = vector.load %arg8[%c0_7, %c0_8] : memref<256x256xbf16, #tpu.memory_space<vmem>>, vector<256x256xbf16>
    %cst_9 = arith.constant dense<0.000000e+00> : vector<16x256xf32>
    %12 = tpu.matmul %10, %11, %cst_9 {dimension_numbers = #tpu.dot_dimension_numbers<[1], [0], [0], [1], [0, 0, 1, 1], [], []>} : vector<16x256xbf16>, vector<256x256xbf16>, vector<16x256xf32> -> vector<16x256xf32>
    %c0_10 = arith.constant 0 : index
    %c0_11 = arith.constant 0 : index
    %13 = vector.load %arg9[%c0_10, %c0_11] : memref<1x256xf32, #tpu.memory_space<vmem>>, vector<1x256xf32>
    %14 = vector.broadcast %13 : vector<1x256xf32> to vector<16x256xf32>
    %15 = arith.addf %12, %14 : vector<16x256xf32>
    %cst_12 = arith.constant 0.000000e+00 : f32
    %16 = vector.broadcast %cst_12 : f32 to vector<16x256xf32>
    %17 = arith.maximumf %15, %16 : vector<16x256xf32>
    %c0_13 = arith.constant 0 : index
    %c0_14 = arith.constant 0 : index
    %18 = vector.load %arg3[%c0_13, %c0_14] : memref<2x16xf32, #tpu.memory_space<vmem>>, vector<2x16xf32>
    %19 = arith.truncf %18 : vector<2x16xf32> to vector<2x16xbf16>
    %c0_15 = arith.constant 0 : index
    %c0_16 = arith.constant 0 : index
    %20 = vector.load %arg10[%c0_15, %c0_16] : memref<16x32xbf16, #tpu.memory_space<vmem>>, vector<16x32xbf16>
    %cst_17 = arith.constant dense<0.000000e+00> : vector<2x32xf32>
    %21 = tpu.matmul %19, %20, %cst_17 {dimension_numbers = #tpu.dot_dimension_numbers<[1], [0], [0], [1], [0, 0, 1, 1], [], []>} : vector<2x16xbf16>, vector<16x32xbf16>, vector<2x32xf32> -> vector<2x32xf32>
    %c0_18 = arith.constant 0 : index
    %c0_19 = arith.constant 0 : index
    %22 = vector.load %arg11[%c0_18, %c0_19] : memref<1x32xf32, #tpu.memory_space<vmem>>, vector<1x32xf32>
    %23 = vector.broadcast %22 : vector<1x32xf32> to vector<2x32xf32>
    %24 = arith.addf %21, %23 : vector<2x32xf32>
    %25 = math.tanh %24 : vector<2x32xf32>
    %26 = arith.truncf %25 : vector<2x32xf32> to vector<2x32xbf16>
    %c0_20 = arith.constant 0 : index
    %c0_21 = arith.constant 0 : index
    %27 = vector.load %arg12[%c0_20, %c0_21] : memref<32x4xbf16, #tpu.memory_space<vmem>>, vector<32x4xbf16>
    %cst_22 = arith.constant dense<0.000000e+00> : vector<2x4xf32>
    %28 = tpu.matmul %26, %27, %cst_22 {dimension_numbers = #tpu.dot_dimension_numbers<[1], [0], [0], [1], [0, 0, 1, 1], [], []>} : vector<2x32xbf16>, vector<32x4xbf16>, vector<2x4xf32> -> vector<2x4xf32>
    %cst_23 = arith.constant dense<0xFF800000> : vector<2xf32>
    %29 = vector.multi_reduction <maximumf>, %28, %cst_23 [1] : vector<2x4xf32> to vector<2xf32>
    %30 = vector.shape_cast %29 : vector<2xf32> to vector<2x1xf32>
    %31 = vector.broadcast %30 : vector<2x1xf32> to vector<2x4xf32>
    %32 = arith.subf %28, %31 : vector<2x4xf32>
    %33 = math.exp %32 : vector<2x4xf32>
    %cst_24 = arith.constant dense<0.000000e+00> : vector<2xf32>
    %34 = vector.multi_reduction <add>, %33, %cst_24 [1] : vector<2x4xf32> to vector<2xf32>
    %35 = vector.shape_cast %34 : vector<2xf32> to vector<2x1xf32>
    %36 = vector.broadcast %35 : vector<2x1xf32> to vector<2x4xf32>
    %37 = arith.divf %33, %36 : vector<2x4xf32>
    %38 = arith.truncf %37 : vector<2x4xf32> to vector<2x4xbf16>
    %c0_25 = arith.constant 0 : index
    %c0_26 = arith.constant 0 : index
    %39 = vector.load %arg13[%c0_25, %c0_26] : memref<4x16xbf16, #tpu.memory_space<vmem>>, vector<4x16xbf16>
    %cst_27 = arith.constant dense<0.000000e+00> : vector<2x16xf32>
    %40 = tpu.matmul %38, %39, %cst_27 {dimension_numbers = #tpu.dot_dimension_numbers<[1], [0], [0], [1], [0, 0, 1, 1], [], []>} : vector<2x4xbf16>, vector<4x16xbf16>, vector<2x16xf32> -> vector<2x16xf32>
    %cst_28 = arith.constant 0.000000e+00 : f32
    %41 = vector.broadcast %cst_28 : f32 to vector<2x124xf32>
    %42 = tpu.concatenate %37, %41 in 1 : vector<2x4xf32>, vector<2x124xf32> -> vector<2x128xf32>
    %c0_29 = arith.constant 0 : index
    %c0_30 = arith.constant 0 : index
    %43 = vector.load %arg38[%c0_29, %c0_30] : memref<2x128xf32, #tpu.memory_space<vmem>>, vector<2x128xf32>
    tpu.vector_store %arg38[%c0_29, %c0_30], %42 {strides = array<i32>} : memref<2x128xf32, #tpu.memory_space<vmem>>, vector<2x128xf32>,
    %c0_31 = arith.constant 0 : index
    %c0_32 = arith.constant 0 : index
    %44 = vector.load %arg2[%c0_31, %c0_32] : memref<2x16xf32, #tpu.memory_space<vmem>>, vector<2x16xf32>
    %45 = arith.truncf %44 : vector<2x16xf32> to vector<2x16xbf16>
    %c0_33 = arith.constant 0 : index
    %c0_34 = arith.constant 0 : index
    %46 = vector.load %arg15[%c0_33, %c0_34] : memref<16x256xbf16, #tpu.memory_space<vmem>>, vector<16x256xbf16>
    %cst_35 = arith.constant dense<0.000000e+00> : vector<2x256xf32>
    %47 = tpu.matmul %45, %46, %cst_35 {dimension_numbers = #tpu.dot_dimension_numbers<[1], [0], [0], [1], [0, 0, 1, 1], [], []>} : vector<2x16xbf16>, vector<16x256xbf16>, vector<2x256xf32> -> vector<2x256xf32>
    %48 = arith.truncf %40 : vector<2x16xf32> to vector<2x16xbf16>
    %c0_36 = arith.constant 0 : index
    %c0_37 = arith.constant 0 : index
    %49 = vector.load %arg16[%c0_36, %c0_37] : memref<16x256xbf16, #tpu.memory_space<vmem>>, vector<16x256xbf16>
    %cst_38 = arith.constant dense<0.000000e+00> : vector<2x256xf32>
    %50 = tpu.matmul %48, %49, %cst_38 {dimension_numbers = #tpu.dot_dimension_numbers<[1], [0], [0], [1], [0, 0, 1, 1], [], []>} : vector<2x16xbf16>, vector<16x256xbf16>, vector<2x256xf32> -> vector<2x256xf32>
    %51 = arith.addf %47, %50 : vector<2x256xf32>
    %c0_39 = arith.constant 0 : index
    %c0_40 = arith.constant 0 : index
    %52 = vector.load %arg17[%c0_39, %c0_40] : memref<1x256xf32, #tpu.memory_space<vmem>>, vector<1x256xf32>
    %53 = vector.broadcast %52 : vector<1x256xf32> to vector<2x256xf32>
    %54 = arith.addf %51, %53 : vector<2x256xf32>
    %55 = arith.truncf %17 : vector<16x256xf32> to vector<16x256xbf16>
    %c0_41 = arith.constant 0 : index
    %c0_42 = arith.constant 0 : index
    %56 = vector.load %arg14[%c0_41, %c0_42] : memref<256x256xbf16, #tpu.memory_space<vmem>>, vector<256x256xbf16>
    %cst_43 = arith.constant dense<0.000000e+00> : vector<16x256xf32>
    %57 = tpu.matmul %55, %56, %cst_43 {dimension_numbers = #tpu.dot_dimension_numbers<[1], [0], [0], [1], [0, 0, 1, 1], [], []>} : vector<16x256xbf16>, vector<256x256xbf16>, vector<16x256xf32> -> vector<16x256xf32>
    %58 = vector.shape_cast %57 : vector<16x256xf32> to vector<2x8x256xf32>
    %59 = vector.shape_cast %54 : vector<2x256xf32> to vector<2x1x256xf32>
    %60 = vector.broadcast %59 : vector<2x1x256xf32> to vector<2x8x256xf32>
    %61 = arith.addf %58, %60 : vector<2x8x256xf32>
    %cst_44 = arith.constant 0.000000e+00 : f32
    %62 = vector.broadcast %cst_44 : f32 to vector<2x8x256xf32>
    %63 = arith.maximumf %61, %62 : vector<2x8x256xf32>
    %64 = arith.truncf %63 : vector<2x8x256xf32> to vector<2x8x256xbf16>
    %c0_45 = arith.constant 0 : index
    %c0_46 = arith.constant 0 : index
    %c0_47 = arith.constant 0 : index
    %65 = vector.load %arg4[%c0_45, %c0_46, %c0_47] : memref<2x4x32xf32, #tpu.memory_space<vmem>>, vector<2x4x32xf32>
    %66 = vector.shape_cast %65 : vector<2x4x32xf32> to vector<8x32xf32>
    %67 = arith.truncf %66 : vector<8x32xf32> to vector<8x32xbf16>
    %c0_48 = arith.constant 0 : index
    %c0_49 = arith.constant 0 : index
    %68 = vector.load %arg18[%c0_48, %c0_49] : memref<32x256xbf16, #tpu.memory_space<vmem>>, vector<32x256xbf16>
    %cst_50 = arith.constant dense<0.000000e+00> : vector<8x256xf32>
    %69 = tpu.matmul %67, %68, %cst_50 {dimension_numbers = #tpu.dot_dimension_numbers<[1], [0], [0], [1], [0, 0, 1, 1], [], []>} : vector<8x32xbf16>, vector<32x256xbf16>, vector<8x256xf32> -> vector<8x256xf32>
    %c0_51 = arith.constant 0 : index
    %c0_52 = arith.constant 0 : index
    %70 = vector.load %arg19[%c0_51, %c0_52] : memref<1x256xf32, #tpu.memory_space<vmem>>, vector<1x256xf32>
    %71 = vector.broadcast %70 : vector<1x256xf32> to vector<8x256xf32>
    %72 = arith.addf %69, %71 : vector<8x256xf32>
    %cst_53 = arith.constant 0.000000e+00 : f32
    %73 = vector.broadcast %cst_53 : f32 to vector<8x256xf32>
    %74 = arith.maximumf %72, %73 : vector<8x256xf32>
    %75 = arith.truncf %74 : vector<8x256xf32> to vector<8x256xbf16>
    %c0_54 = arith.constant 0 : index
    %c0_55 = arith.constant 0 : index
    %76 = vector.load %arg20[%c0_54, %c0_55] : memref<256x128xbf16, #tpu.memory_space<vmem>>, vector<256x128xbf16>
    %cst_56 = arith.constant dense<0.000000e+00> : vector<8x128xf32>
    %77 = tpu.matmul %75, %76, %cst_56 {dimension_numbers = #tpu.dot_dimension_numbers<[1], [0], [0], [1], [0, 0, 1, 1], [], []>} : vector<8x256xbf16>, vector<256x128xbf16>, vector<8x128xf32> -> vector<8x128xf32>
    %c0_57 = arith.constant 0 : index
    %c0_58 = arith.constant 0 : index
    %78 = vector.load %arg21[%c0_57, %c0_58] : memref<1x128xf32, #tpu.memory_space<vmem>>, vector<1x128xf32>
    %79 = vector.broadcast %78 : vector<1x128xf32> to vector<8x128xf32>
    %80 = arith.addf %77, %79 : vector<8x128xf32>
    %cst_59 = arith.constant 0.000000e+00 : f32
    %81 = vector.broadcast %cst_59 : f32 to vector<8x128xf32>
    %82 = arith.maximumf %80, %81 : vector<8x128xf32>
    %83 = arith.truncf %82 : vector<8x128xf32> to vector<8x128xbf16>
    %c0_60 = arith.constant 0 : index
    %c0_61 = arith.constant 0 : index
    %84 = vector.load %arg22[%c0_60, %c0_61] : memref<128x256xbf16, #tpu.memory_space<vmem>>, vector<128x256xbf16>
    %cst_62 = arith.constant dense<0.000000e+00> : vector<8x256xf32>
    %85 = tpu.matmul %83, %84, %cst_62 {dimension_numbers = #tpu.dot_dimension_numbers<[1], [0], [0], [1], [0, 0, 1, 1], [], []>} : vector<8x128xbf16>, vector<128x256xbf16>, vector<8x256xf32> -> vector<8x256xf32>
    %c0_63 = arith.constant 0 : index
    %c0_64 = arith.constant 0 : index
    %86 = vector.load %arg23[%c0_63, %c0_64] : memref<1x256xf32, #tpu.memory_space<vmem>>, vector<1x256xf32>
    %87 = vector.broadcast %86 : vector<1x256xf32> to vector<8x256xf32>
    %88 = arith.addf %85, %87 : vector<8x256xf32>
    %89 = vector.shape_cast %88 : vector<8x256xf32> to vector<2x4x256xf32>
    %90 = arith.truncf %89 : vector<2x4x256xf32> to vector<2x4x256xbf16>
    "tpu.trace_start"() <{level = 10 : i32, message = "bqd,bkd->bqk"}> : () -> ()
    %cst_65 = arith.constant dense<0.000000e+00> : vector<2x4x8xf32>
    %91 = tpu.matmul %90, %64, %cst_65 {dimension_numbers = #tpu.dot_dimension_numbers<[2], [2], [1], [1], [0, 0, 0, 1, 1, 1], [0], [0]>} : vector<2x4x256xbf16>, vector<2x8x256xbf16>, vector<2x4x8xf32> -> vector<2x4x8xf32>
    "tpu.trace_stop"() : () -> ()
    %c0_66 = arith.constant 0 : index
    %c0_67 = arith.constant 0 : index
    %c0_68 = arith.constant 0 : index
    %92 = vector.load %arg5[%c0_66, %c0_67, %c0_68] : memref<2x1x8xf32, #tpu.memory_space<vmem>>, vector<2x1x8xf32>
    %93 = vector.broadcast %92 : vector<2x1x8xf32> to vector<2x4x8xf32>
    %94 = arith.addf %91, %93 : vector<2x4x8xf32>
    %cst_69 = arith.constant dense<0xFF800000> : vector<2x4xf32>
    %95 = vector.multi_reduction <maximumf>, %94, %cst_69 [2] : vector<2x4x8xf32> to vector<2x4xf32>
    %96 = vector.shape_cast %95 : vector<2x4xf32> to vector<2x4x1xf32>
    %97 = vector.broadcast %96 : vector<2x4x1xf32> to vector<2x4x8xf32>
    %98 = arith.subf %94, %97 : vector<2x4x8xf32>
    %99 = math.exp %98 : vector<2x4x8xf32>
    %cst_70 = arith.constant dense<0.000000e+00> : vector<2x4xf32>
    %100 = vector.multi_reduction <add>, %99, %cst_70 [2] : vector<2x4x8xf32> to vector<2x4xf32>
    %101 = vector.shape_cast %100 : vector<2x4xf32> to vector<2x4x1xf32>
    %102 = vector.broadcast %101 : vector<2x4x1xf32> to vector<2x4x8xf32>
    %103 = arith.divf %99, %102 : vector<2x4x8xf32>
    %104 = arith.truncf %103 : vector<2x4x8xf32> to vector<2x4x8xbf16>
    "tpu.trace_start"() <{level = 10 : i32, message = "bqk,bkd->bqd"}> : () -> ()
    %cst_71 = arith.constant dense<0.000000e+00> : vector<2x4x256xf32>
    %105 = tpu.matmul %104, %64, %cst_71 {dimension_numbers = #tpu.dot_dimension_numbers<[2], [1], [1], [2], [0, 0, 0, 1, 1, 2], [0], [0]>} : vector<2x4x8xbf16>, vector<2x8x256xbf16>, vector<2x4x256xf32> -> vector<2x4x256xf32>
    "tpu.trace_stop"() : () -> ()
    %106 = arith.truncf %88 : vector<8x256xf32> to vector<8x256xbf16>
    %c0_72 = arith.constant 0 : index
    %c0_73 = arith.constant 0 : index
    %107 = vector.load %arg24[%c0_72, %c0_73] : memref<256x64xbf16, #tpu.memory_space<vmem>>, vector<256x64xbf16>
    %cst_74 = arith.constant dense<0.000000e+00> : vector<8x64xf32>
    %108 = tpu.matmul %106, %107, %cst_74 {dimension_numbers = #tpu.dot_dimension_numbers<[1], [0], [0], [1], [0, 0, 1, 1], [], []>} : vector<8x256xbf16>, vector<256x64xbf16>, vector<8x64xf32> -> vector<8x64xf32>
    %109 = vector.shape_cast %105 : vector<2x4x256xf32> to vector<8x256xf32>
    %110 = arith.truncf %109 : vector<8x256xf32> to vector<8x256xbf16>
    %c0_75 = arith.constant 0 : index
    %c0_76 = arith.constant 0 : index
    %111 = vector.load %arg25[%c0_75, %c0_76] : memref<256x64xbf16, #tpu.memory_space<vmem>>, vector<256x64xbf16>
    %cst_77 = arith.constant dense<0.000000e+00> : vector<8x64xf32>
    %112 = tpu.matmul %110, %111, %cst_77 {dimension_numbers = #tpu.dot_dimension_numbers<[1], [0], [0], [1], [0, 0, 1, 1], [], []>} : vector<8x256xbf16>, vector<256x64xbf16>, vector<8x64xf32> -> vector<8x64xf32>
    %113 = arith.addf %108, %112 : vector<8x64xf32>
    %c0_78 = arith.constant 0 : index
    %c0_79 = arith.constant 0 : index
    %114 = vector.load %arg26[%c0_78, %c0_79] : memref<1x64xf32, #tpu.memory_space<vmem>>, vector<1x64xf32>
    %115 = vector.broadcast %114 : vector<1x64xf32> to vector<8x64xf32>
    %116 = arith.addf %113, %115 : vector<8x64xf32>
    %117 = vector.shape_cast %116 : vector<8x64xf32> to vector<2x4x64xf32>
    %118 = vector.extract_strided_slice %117 {offsets = [0, 0, 0], sizes = [2, 4, 32], strides = [1, 1, 1]} : vector<2x4x64xf32> to vector<2x4x32xf32>
    %119 = vector.extract_strided_slice %117 {offsets = [0, 0, 32], sizes = [2, 4, 8], strides = [1, 1, 1]} : vector<2x4x64xf32> to vector<2x4x8xf32>
    %cst_80 = arith.constant 0.000000e+00 : f32
    %120 = vector.broadcast %cst_80 : f32 to vector<2x1x32xf32>
    %cst_81 = arith.constant 0.000000e+00 : f32
    %121 = vector.broadcast %cst_81 : f32 to vector<2x1x32xf32>
    %122 = tpu.concatenate %120, %118, %121 in 1 : vector<2x1x32xf32>, vector<2x4x32xf32>, vector<2x1x32xf32> -> vector<2x6x32xf32>
    %123 = vector.extract_strided_slice %122 {offsets = [0, 0, 0], sizes = [2, 4, 32], strides = [1, 1, 1]} : vector<2x6x32xf32> to vector<2x4x32xf32>
    %124 = vector.extract_strided_slice %122 {offsets = [0, 1, 0], sizes = [2, 4, 32], strides = [1, 1, 1]} : vector<2x6x32xf32> to vector<2x4x32xf32>
    %125 = vector.extract_strided_slice %122 {offsets = [0, 2, 0], sizes = [2, 4, 32], strides = [1, 1, 1]} : vector<2x6x32xf32> to vector<2x4x32xf32>
    %126 = tpu.concatenate %123, %124, %125 in 2 : vector<2x4x32xf32>, vector<2x4x32xf32>, vector<2x4x32xf32> -> vector<2x4x96xf32>
    %127 = vector.shape_cast %126 : vector<2x4x96xf32> to vector<8x96xf32>
    %128 = arith.truncf %127 : vector<8x96xf32> to vector<8x96xbf16>
    %c0_82 = arith.constant 0 : index
    %c0_83 = arith.constant 0 : index
    %129 = vector.load %arg27[%c0_82, %c0_83] : memref<96x64xbf16, #tpu.memory_space<vmem>>, vector<96x64xbf16>
    %cst_84 = arith.constant dense<0.000000e+00> : vector<8x64xf32>
    %130 = tpu.matmul %128, %129, %cst_84 {dimension_numbers = #tpu.dot_dimension_numbers<[1], [0], [0], [1], [0, 0, 1, 1], [], []>} : vector<8x96xbf16>, vector<96x64xbf16>, vector<8x64xf32> -> vector<8x64xf32>
    %c0_85 = arith.constant 0 : index
    %c0_86 = arith.constant 0 : index
    %131 = vector.load %arg28[%c0_85, %c0_86] : memref<1x64xf32, #tpu.memory_space<vmem>>, vector<1x64xf32>
    %132 = vector.broadcast %131 : vector<1x64xf32> to vector<8x64xf32>
    %133 = arith.addf %130, %132 : vector<8x64xf32>
    %134 = math.tanh %133 : vector<8x64xf32>
    %135 = vector.shape_cast %134 : vector<8x64xf32> to vector<2x4x64xf32>
    %cst_87 = arith.constant 0.000000e+00 : f32
    %136 = vector.broadcast %cst_87 : f32 to vector<2x1x64xf32>
    %cst_88 = arith.constant 0.000000e+00 : f32
    %137 = vector.broadcast %cst_88 : f32 to vector<2x1x64xf32>
    %138 = tpu.concatenate %136, %135, %137 in 1 : vector<2x1x64xf32>, vector<2x4x64xf32>, vector<2x1x64xf32> -> vector<2x6x64xf32>
    %139 = vector.extract_strided_slice %138 {offsets = [0, 0, 0], sizes = [2, 4, 64], strides = [1, 1, 1]} : vector<2x6x64xf32> to vector<2x4x64xf32>
    %140 = vector.extract_strided_slice %138 {offsets = [0, 1, 0], sizes = [2, 4, 64], strides = [1, 1, 1]} : vector<2x6x64xf32> to vector<2x4x64xf32>
    %141 = vector.extract_strided_slice %138 {offsets = [0, 2, 0], sizes = [2, 4, 64], strides = [1, 1, 1]} : vector<2x6x64xf32> to vector<2x4x64xf32>
    %142 = tpu.concatenate %139, %140, %141 in 2 : vector<2x4x64xf32>, vector<2x4x64xf32>, vector<2x4x64xf32> -> vector<2x4x192xf32>
    %143 = vector.shape_cast %142 : vector<2x4x192xf32> to vector<8x192xf32>
    %144 = arith.truncf %143 : vector<8x192xf32> to vector<8x192xbf16>
    %c0_89 = arith.constant 0 : index
    %c0_90 = arith.constant 0 : index
    %145 = vector.load %arg29[%c0_89, %c0_90] : memref<192x64xbf16, #tpu.memory_space<vmem>>, vector<192x64xbf16>
    %cst_91 = arith.constant dense<0.000000e+00> : vector<8x64xf32>
    %146 = tpu.matmul %144, %145, %cst_91 {dimension_numbers = #tpu.dot_dimension_numbers<[1], [0], [0], [1], [0, 0, 1, 1], [], []>} : vector<8x192xbf16>, vector<192x64xbf16>, vector<8x64xf32> -> vector<8x64xf32>
    %c0_92 = arith.constant 0 : index
    %c0_93 = arith.constant 0 : index
    %147 = vector.load %arg30[%c0_92, %c0_93] : memref<1x64xf32, #tpu.memory_space<vmem>>, vector<1x64xf32>
    %148 = vector.broadcast %147 : vector<1x64xf32> to vector<8x64xf32>
    %149 = arith.addf %146, %148 : vector<8x64xf32>
    %150 = math.tanh %149 : vector<8x64xf32>
    %151 = vector.shape_cast %150 : vector<8x64xf32> to vector<2x4x64xf32>
    %cst_94 = arith.constant 0.000000e+00 : f32
    %152 = vector.broadcast %cst_94 : f32 to vector<2x1x64xf32>
    %cst_95 = arith.constant 0.000000e+00 : f32
    %153 = vector.broadcast %cst_95 : f32 to vector<2x1x64xf32>
    %154 = tpu.concatenate %152, %151, %153 in 1 : vector<2x1x64xf32>, vector<2x4x64xf32>, vector<2x1x64xf32> -> vector<2x6x64xf32>
    %155 = vector.extract_strided_slice %154 {offsets = [0, 0, 0], sizes = [2, 4, 64], strides = [1, 1, 1]} : vector<2x6x64xf32> to vector<2x4x64xf32>
    %156 = vector.extract_strided_slice %154 {offsets = [0, 1, 0], sizes = [2, 4, 64], strides = [1, 1, 1]} : vector<2x6x64xf32> to vector<2x4x64xf32>
    %157 = vector.extract_strided_slice %154 {offsets = [0, 2, 0], sizes = [2, 4, 64], strides = [1, 1, 1]} : vector<2x6x64xf32> to vector<2x4x64xf32>
    %158 = tpu.concatenate %155, %156, %157 in 2 : vector<2x4x64xf32>, vector<2x4x64xf32>, vector<2x4x64xf32> -> vector<2x4x192xf32>
    %159 = vector.shape_cast %158 : vector<2x4x192xf32> to vector<8x192xf32>
    %160 = arith.truncf %159 : vector<8x192xf32> to vector<8x192xbf16>
    %c0_96 = arith.constant 0 : index
    %c0_97 = arith.constant 0 : index
    %161 = vector.load %arg31[%c0_96, %c0_97] : memref<192x64xbf16, #tpu.memory_space<vmem>>, vector<192x64xbf16>
    %cst_98 = arith.constant dense<0.000000e+00> : vector<8x64xf32>
    %162 = tpu.matmul %160, %161, %cst_98 {dimension_numbers = #tpu.dot_dimension_numbers<[1], [0], [0], [1], [0, 0, 1, 1], [], []>} : vector<8x192xbf16>, vector<192x64xbf16>, vector<8x64xf32> -> vector<8x64xf32>
    %c0_99 = arith.constant 0 : index
    %c0_100 = arith.constant 0 : index
    %163 = vector.load %arg32[%c0_99, %c0_100] : memref<1x64xf32, #tpu.memory_space<vmem>>, vector<1x64xf32>
    %164 = vector.broadcast %163 : vector<1x64xf32> to vector<8x64xf32>
    %165 = arith.addf %162, %164 : vector<8x64xf32>
    %166 = math.tanh %165 : vector<8x64xf32>
    %167 = vector.shape_cast %166 : vector<8x64xf32> to vector<2x4x64xf32>
    %cst_101 = arith.constant 0.000000e+00 : f32
    %168 = vector.broadcast %cst_101 : f32 to vector<2x1x64xf32>
    %cst_102 = arith.constant 0.000000e+00 : f32
    %169 = vector.broadcast %cst_102 : f32 to vector<2x1x64xf32>
    %170 = tpu.concatenate %168, %167, %169 in 1 : vector<2x1x64xf32>, vector<2x4x64xf32>, vector<2x1x64xf32> -> vector<2x6x64xf32>
    %171 = vector.extract_strided_slice %170 {offsets = [0, 0, 0], sizes = [2, 4, 64], strides = [1, 1, 1]} : vector<2x6x64xf32> to vector<2x4x64xf32>
    %172 = vector.extract_strided_slice %170 {offsets = [0, 1, 0], sizes = [2, 4, 64], strides = [1, 1, 1]} : vector<2x6x64xf32> to vector<2x4x64xf32>
    %173 = vector.extract_strided_slice %170 {offsets = [0, 2, 0], sizes = [2, 4, 64], strides = [1, 1, 1]} : vector<2x6x64xf32> to vector<2x4x64xf32>
    %174 = tpu.concatenate %171, %172, %173 in 2 : vector<2x4x64xf32>, vector<2x4x64xf32>, vector<2x4x64xf32> -> vector<2x4x192xf32>
    %175 = vector.shape_cast %174 : vector<2x4x192xf32> to vector<8x192xf32>
    %176 = arith.truncf %175 : vector<8x192xf32> to vector<8x192xbf16>
    %c0_103 = arith.constant 0 : index
    %c0_104 = arith.constant 0 : index
    %177 = vector.load %arg33[%c0_103, %c0_104] : memref<192x64xbf16, #tpu.memory_space<vmem>>, vector<192x64xbf16>
    %cst_105 = arith.constant dense<0.000000e+00> : vector<8x64xf32>
    %178 = tpu.matmul %176, %177, %cst_105 {dimension_numbers = #tpu.dot_dimension_numbers<[1], [0], [0], [1], [0, 0, 1, 1], [], []>} : vector<8x192xbf16>, vector<192x64xbf16>, vector<8x64xf32> -> vector<8x64xf32>
    %c0_106 = arith.constant 0 : index
    %c0_107 = arith.constant 0 : index
    %179 = vector.load %arg34[%c0_106, %c0_107] : memref<1x64xf32, #tpu.memory_space<vmem>>, vector<1x64xf32>
    %180 = vector.broadcast %179 : vector<1x64xf32> to vector<8x64xf32>
    %181 = arith.addf %178, %180 : vector<8x64xf32>
    %182 = math.tanh %181 : vector<8x64xf32>
    %183 = vector.shape_cast %182 : vector<8x64xf32> to vector<2x4x64xf32>
    %cst_108 = arith.constant 0.000000e+00 : f32
    %184 = vector.broadcast %cst_108 : f32 to vector<2x1x64xf32>
    %cst_109 = arith.constant 0.000000e+00 : f32
    %185 = vector.broadcast %cst_109 : f32 to vector<2x1x64xf32>
    %186 = tpu.concatenate %184, %183, %185 in 1 : vector<2x1x64xf32>, vector<2x4x64xf32>, vector<2x1x64xf32> -> vector<2x6x64xf32>
    %187 = vector.extract_strided_slice %186 {offsets = [0, 0, 0], sizes = [2, 4, 64], strides = [1, 1, 1]} : vector<2x6x64xf32> to vector<2x4x64xf32>
    %188 = vector.extract_strided_slice %186 {offsets = [0, 1, 0], sizes = [2, 4, 64], strides = [1, 1, 1]} : vector<2x6x64xf32> to vector<2x4x64xf32>
    %189 = vector.extract_strided_slice %186 {offsets = [0, 2, 0], sizes = [2, 4, 64], strides = [1, 1, 1]} : vector<2x6x64xf32> to vector<2x4x64xf32>
    %190 = tpu.concatenate %187, %188, %189 in 2 : vector<2x4x64xf32>, vector<2x4x64xf32>, vector<2x4x64xf32> -> vector<2x4x192xf32>
    %191 = vector.shape_cast %190 : vector<2x4x192xf32> to vector<8x192xf32>
    %192 = arith.truncf %191 : vector<8x192xf32> to vector<8x192xbf16>
    %c0_110 = arith.constant 0 : index
    %c0_111 = arith.constant 0 : index
    %193 = vector.load %arg35[%c0_110, %c0_111] : memref<192x32xbf16, #tpu.memory_space<vmem>>, vector<192x32xbf16>
    %cst_112 = arith.constant dense<0.000000e+00> : vector<8x32xf32>
    %194 = tpu.matmul %192, %193, %cst_112 {dimension_numbers = #tpu.dot_dimension_numbers<[1], [0], [0], [1], [0, 0, 1, 1], [], []>} : vector<8x192xbf16>, vector<192x32xbf16>, vector<8x32xf32> -> vector<8x32xf32>
    %c0_113 = arith.constant 0 : index
    %c0_114 = arith.constant 0 : index
    %195 = vector.load %arg36[%c0_113, %c0_114] : memref<1x32xf32, #tpu.memory_space<vmem>>, vector<1x32xf32>
    %196 = vector.broadcast %195 : vector<1x32xf32> to vector<8x32xf32>
    %197 = arith.addf %194, %196 : vector<8x32xf32>
    %198 = vector.shape_cast %197 : vector<8x32xf32> to vector<2x4x32xf32>
    %199 = arith.addf %118, %198 : vector<2x4x32xf32>
    %cst_115 = arith.constant 0.000000e+00 : f32
    %200 = vector.broadcast %cst_115 : f32 to vector<2x4x48xf32>
    %201 = tpu.concatenate %118, %199, %119, %103, %200 in 2 : vector<2x4x32xf32>, vector<2x4x32xf32>, vector<2x4x8xf32>, vector<2x4x8xf32>, vector<2x4x48xf32> -> vector<2x4x128xf32>
    %c0_116 = arith.constant 0 : index
    %c0_117 = arith.constant 0 : index
    %c0_118 = arith.constant 0 : index
    %202 = vector.load %arg37[%c0_116, %c0_117, %c0_118] : memref<2x4x128xf32, #tpu.memory_space<vmem>>, vector<2x4x128xf32>
    tpu.vector_store %arg37[%c0_116, %c0_117, %c0_118], %201 {strides = array<i32>} : memref<2x4x128xf32, #tpu.memory_space<vmem>>, vector<2x4x128xf32>,
    return
  }
  func.func @transform_0(%arg0: i32) -> (i32, i32, i32) {
    %c0_i32 = arith.constant 0 : i32
    %c0_i32_0 = arith.constant 0 : i32
    %c0_i32_1 = arith.constant 0 : i32
    %c0_i32_2 = arith.constant 0 : i32
    return %c0_i32, %c0_i32_0, %c0_i32_1 : i32, i32, i32
  }
  func.func @transform_1(%arg0: i32) -> (i32, i32) {
    %c0_i32 = arith.constant 0 : i32
    %c0_i32_0 = arith.constant 0 : i32
    %c0_i32_1 = arith.constant 0 : i32
    return %c0_i32, %c0_i32_0 : i32, i32
  }
  func.func @transform_2(%arg0: i32) -> (i32, i32) {
    %c0_i32 = arith.constant 0 : i32
    %c0_i32_0 = arith.constant 0 : i32
    %c0_i32_1 = arith.constant 0 : i32
    return %c0_i32, %c0_i32_0 : i32, i32
  }
  func.func @transform_3(%arg0: i32) -> (i32, i32, i32) {
    %c0_i32 = arith.constant 0 : i32
    %c0_i32_0 = arith.constant 0 : i32
    %c0_i32_1 = arith.constant 0 : i32
    %c0_i32_2 = arith.constant 0 : i32
    return %c0_i32, %c0_i32_0, %c0_i32_1 : i32, i32, i32
  }
  func.func @transform_4(%arg0: i32) -> (i32, i32, i32) {
    %c0_i32 = arith.constant 0 : i32
    %c0_i32_0 = arith.constant 0 : i32
    %c0_i32_1 = arith.constant 0 : i32
    %c0_i32_2 = arith.constant 0 : i32
    return %c0_i32, %c0_i32_0, %c0_i32_1 : i32, i32, i32
  }
  func.func @transform_5(%arg0: i32) -> (i32, i32) {
    %c0_i32 = arith.constant 0 : i32
    %c0_i32_0 = arith.constant 0 : i32
    %c0_i32_1 = arith.constant 0 : i32
    return %c0_i32, %c0_i32_0 : i32, i32
  }
  func.func @transform_6(%arg0: i32) -> (i32, i32) {
    %c0_i32 = arith.constant 0 : i32
    %c0_i32_0 = arith.constant 0 : i32
    %c0_i32_1 = arith.constant 0 : i32
    return %c0_i32, %c0_i32_0 : i32, i32
  }
  func.func @transform_7(%arg0: i32) -> (i32, i32) {
    %c0_i32 = arith.constant 0 : i32
    %c0_i32_0 = arith.constant 0 : i32
    %c0_i32_1 = arith.constant 0 : i32
    return %c0_i32, %c0_i32_0 : i32, i32
  }
  func.func @transform_8(%arg0: i32) -> (i32, i32) {
    %c0_i32 = arith.constant 0 : i32
    %c0_i32_0 = arith.constant 0 : i32
    %c0_i32_1 = arith.constant 0 : i32
    return %c0_i32, %c0_i32_0 : i32, i32
  }
  func.func @transform_9(%arg0: i32) -> (i32, i32) {
    %c0_i32 = arith.constant 0 : i32
    %c0_i32_0 = arith.constant 0 : i32
    %c0_i32_1 = arith.constant 0 : i32
    return %c0_i32, %c0_i32_0 : i32, i32
  }
  func.func @transform_10(%arg0: i32) -> (i32, i32) {
    %c0_i32 = arith.constant 0 : i32
    %c0_i32_0 = arith.constant 0 : i32
    %c0_i32_1 = arith.constant 0 : i32
    return %c0_i32, %c0_i32_0 : i32, i32
  }
  func.func @transform_11(%arg0: i32) -> (i32, i32) {
    %c0_i32 = arith.constant 0 : i32
    %c0_i32_0 = arith.constant 0 : i32
    %c0_i32_1 = arith.constant 0 : i32
    return %c0_i32, %c0_i32_0 : i32, i32
  }
  func.func @transform_12(%arg0: i32) -> (i32, i32) {
    %c0_i32 = arith.constant 0 : i32
    %c0_i32_0 = arith.constant 0 : i32
    %c0_i32_1 = arith.constant 0 : i32
    return %c0_i32, %c0_i32_0 : i32, i32
  }
  func.func @transform_13(%arg0: i32) -> (i32, i32) {
    %c0_i32 = arith.constant 0 : i32
    %c0_i32_0 = arith.constant 0 : i32
    %c0_i32_1 = arith.constant 0 : i32
    return %c0_i32, %c0_i32_0 : i32, i32
  }
  func.func @transform_14(%arg0: i32) -> (i32, i32) {
    %c0_i32 = arith.constant 0 : i32
    %c0_i32_0 = arith.constant 0 : i32
    %c0_i32_1 = arith.constant 0 : i32
    return %c0_i32, %c0_i32_0 : i32, i32
  }
  func.func @transform_15(%arg0: i32) -> (i32, i32) {
    %c0_i32 = arith.constant 0 : i32
    %c0_i32_0 = arith.constant 0 : i32
    %c0_i32_1 = arith.constant 0 : i32
    return %c0_i32, %c0_i32_0 : i32, i32
  }
  func.func @transform_16(%arg0: i32) -> (i32, i32) {
    %c0_i32 = arith.constant 0 : i32
    %c0_i32_0 = arith.constant 0 : i32
    %c0_i32_1 = arith.constant 0 : i32
    return %c0_i32, %c0_i32_0 : i32, i32
  }
  func.func @transform_17(%arg0: i32) -> (i32, i32) {
    %c0_i32 = arith.constant 0 : i32
    %c0_i32_0 = arith.constant 0 : i32
    %c0_i32_1 = arith.constant 0 : i32
    return %c0_i32, %c0_i32_0 : i32, i32
  }
  func.func @transform_18(%arg0: i32) -> (i32, i32) {
    %c0_i32 = arith.constant 0 : i32
    %c0_i32_0 = arith.constant 0 : i32
    %c0_i32_1 = arith.constant 0 : i32
    return %c0_i32, %c0_i32_0 : i32, i32
  }
  func.func @transform_19(%arg0: i32) -> (i32, i32) {
    %c0_i32 = arith.constant 0 : i32
    %c0_i32_0 = arith.constant 0 : i32
    %c0_i32_1 = arith.constant 0 : i32
    return %c0_i32, %c0_i32_0 : i32, i32
  }
  func.func @transform_20(%arg0: i32) -> (i32, i32) {
    %c0_i32 = arith.constant 0 : i32
    %c0_i32_0 = arith.constant 0 : i32
    %c0_i32_1 = arith.constant 0 : i32
    return %c0_i32, %c0_i32_0 : i32, i32
  }
  func.func @transform_21(%arg0: i32) -> (i32, i32) {
    %c0_i32 = arith.constant 0 : i32
    %c0_i32_0 = arith.constant 0 : i32
    %c0_i32_1 = arith.constant 0 : i32
    return %c0_i32, %c0_i32_0 : i32, i32
  }
  func.func @transform_22(%arg0: i32) -> (i32, i32) {
    %c0_i32 = arith.constant 0 : i32
    %c0_i32_0 = arith.constant 0 : i32
    %c0_i32_1 = arith.constant 0 : i32
    return %c0_i32, %c0_i32_0 : i32, i32
  }
  func.func @transform_23(%arg0: i32) -> (i32, i32) {
    %c0_i32 = arith.constant 0 : i32
    %c0_i32_0 = arith.constant 0 : i32
    %c0_i32_1 = arith.constant 0 : i32
    return %c0_i32, %c0_i32_0 : i32, i32
  }
  func.func @transform_24(%arg0: i32) -> (i32, i32) {
    %c0_i32 = arith.constant 0 : i32
    %c0_i32_0 = arith.constant 0 : i32
    %c0_i32_1 = arith.constant 0 : i32
    return %c0_i32, %c0_i32_0 : i32, i32
  }
  func.func @transform_25(%arg0: i32) -> (i32, i32) {
    %c0_i32 = arith.constant 0 : i32
    %c0_i32_0 = arith.constant 0 : i32
    %c0_i32_1 = arith.constant 0 : i32
    return %c0_i32, %c0_i32_0 : i32, i32
  }
  func.func @transform_26(%arg0: i32) -> (i32, i32) {
    %c0_i32 = arith.constant 0 : i32
    %c0_i32_0 = arith.constant 0 : i32
    %c0_i32_1 = arith.constant 0 : i32
    return %c0_i32, %c0_i32_0 : i32, i32
  }
  func.func @transform_27(%arg0: i32) -> (i32, i32) {
    %c0_i32 = arith.constant 0 : i32
    %c0_i32_0 = arith.constant 0 : i32
    %c0_i32_1 = arith.constant 0 : i32
    return %c0_i32, %c0_i32_0 : i32, i32
  }
  func.func @transform_28(%arg0: i32) -> (i32, i32) {
    %c0_i32 = arith.constant 0 : i32
    %c0_i32_0 = arith.constant 0 : i32
    %c0_i32_1 = arith.constant 0 : i32
    return %c0_i32, %c0_i32_0 : i32, i32
  }
  func.func @transform_29(%arg0: i32) -> (i32, i32) {
    %c0_i32 = arith.constant 0 : i32
    %c0_i32_0 = arith.constant 0 : i32
    %c0_i32_1 = arith.constant 0 : i32
    return %c0_i32, %c0_i32_0 : i32, i32
  }
  func.func @transform_30(%arg0: i32) -> (i32, i32) {
    %c0_i32 = arith.constant 0 : i32
    %c0_i32_0 = arith.constant 0 : i32
    %c0_i32_1 = arith.constant 0 : i32
    return %c0_i32, %c0_i32_0 : i32, i32
  }
  func.func @transform_31(%arg0: i32) -> (i32, i32) {
    %c0_i32 = arith.constant 0 : i32
    %c0_i32_0 = arith.constant 0 : i32
    %c0_i32_1 = arith.constant 0 : i32
    return %c0_i32, %c0_i32_0 : i32, i32
  }
  func.func @transform_32(%arg0: i32) -> (i32, i32) {
    %c0_i32 = arith.constant 0 : i32
    %c0_i32_0 = arith.constant 0 : i32
    %c0_i32_1 = arith.constant 0 : i32
    return %c0_i32, %c0_i32_0 : i32, i32
  }
  func.func @transform_33(%arg0: i32) -> (i32, i32) {
    %c0_i32 = arith.constant 0 : i32
    %c0_i32_0 = arith.constant 0 : i32
    %c0_i32_1 = arith.constant 0 : i32
    return %c0_i32, %c0_i32_0 : i32, i32
  }
  func.func @transform_34(%arg0: i32) -> (i32, i32) {
    %c0_i32 = arith.constant 0 : i32
    %c0_i32_0 = arith.constant 0 : i32
    %c0_i32_1 = arith.constant 0 : i32
    return %c0_i32, %c0_i32_0 : i32, i32
  }
  func.func @transform_35(%arg0: i32) -> (i32, i32) {
    %c0_i32 = arith.constant 0 : i32
    %c0_i32_0 = arith.constant 0 : i32
    %c0_i32_1 = arith.constant 0 : i32
    return %c0_i32, %c0_i32_0 : i32, i32
  }
  func.func @transform_36(%arg0: i32) -> (i32, i32, i32) {
    %c0_i32 = arith.constant 0 : i32
    %c0_i32_0 = arith.constant 0 : i32
    %c0_i32_1 = arith.constant 0 : i32
    %c0_i32_2 = arith.constant 0 : i32
    return %c0_i32, %c0_i32_0, %c0_i32_1 : i32, i32, i32
  }
  func.func @transform_37(%arg0: i32) -> (i32, i32) {
    %c0_i32 = arith.constant 0 : i32
    %c0_i32_0 = arith.constant 0 : i32
    %c0_i32_1 = arith.constant 0 : i32
    return %c0_i32, %c0_i32_0 : i32, i32
  }
}

</mosaic_0001>

<llo_original>
// kernel: tacotron_forward.1
$region0: #{tacotron_forward.1}
  #allocation0 [shape = 'u32[]', space=smem, size = 0x4, offset = 0x4, fixed_abs, tag = 'smem constant byte address 0x4 - core index']
  #allocation1 [shape = 'u32[72,128]{1,0:T(1,128)}', space=vmem, size = 0x9000, scoped, tag = 'internal scratch']
  %s0 = inlined_call_operand.smem [shape: u32[38], index: -1, kind: input, shape index: {}]
  %s1 = sld [smem:[%s0]]
  %s2 = scalar_lea.smem %s0, 1
  %s3 = sld [smem:[%s2]]
  %s4 = scalar_lea.smem %s0, 2
  %s5 = sld [smem:[%s4]]
  %s6 = scalar_lea.smem %s0, 3
  %s7 = sld [smem:[%s6]]
  %s8 = scalar_lea.smem %s0, 4
  %s9 = sld [smem:[%s8]]
  %s10 = scalar_lea.smem %s0, 5
  %s11 = sld [smem:[%s10]]
  %s12 = scalar_lea.smem %s0, 6
  %s13 = sld [smem:[%s12]]
  %s14 = scalar_lea.smem %s0, 7
  %s15 = sld [smem:[%s14]]
  %s16 = scalar_lea.smem %s0, 8
  %s17 = sld [smem:[%s16]]
  %s18 = scalar_lea.smem %s0, 9
  %s19 = sld [smem:[%s18]]
  %s20 = scalar_lea.smem %s0, 10
  %s21 = sld [smem:[%s20]]
  %s22 = scalar_lea.smem %s0, 11
  %s23 = sld [smem:[%s22]]
  %s24 = scalar_lea.smem %s0, 12
  %s25 = sld [smem:[%s24]]
  %s26 = scalar_lea.smem %s0, 13
  %s27 = sld [smem:[%s26]]
  %s28 = scalar_lea.smem %s0, 14
  %s29 = sld [smem:[%s28]]
  %s30 = scalar_lea.smem %s0, 15
  %s31 = sld [smem:[%s30]]
  %s32 = scalar_lea.smem %s0, 16
  %s33 = sld [smem:[%s32]]
  %s34 = scalar_lea.smem %s0, 17
  %s35 = sld [smem:[%s34]]
  %s36 = scalar_lea.smem %s0, 18
  %s37 = sld [smem:[%s36]]
  %s38 = scalar_lea.smem %s0, 19
  %s39 = sld [smem:[%s38]]
  %s40 = scalar_lea.smem %s0, 20
  %s41 = sld [smem:[%s40]]
  %s42 = scalar_lea.smem %s0, 21
  %s43 = sld [smem:[%s42]]
  %s44 = scalar_lea.smem %s0, 22
  %s45 = sld [smem:[%s44]]
  %s46 = scalar_lea.smem %s0, 23
  %s47 = sld [smem:[%s46]]
  %s48 = scalar_lea.smem %s0, 24
  %s49 = sld [smem:[%s48]]
  %s50 = scalar_lea.smem %s0, 25
  %s51 = sld [smem:[%s50]]
  %s52 = scalar_lea.smem %s0, 26
  %s53 = sld [smem:[%s52]]
  %s54 = scalar_lea.smem %s0, 27
  %s55 = sld [smem:[%s54]]
  %s56 = scalar_lea.smem %s0, 28
  %s57 = sld [smem:[%s56]]
  %s58 = scalar_lea.smem %s0, 29
  %s59 = sld [smem:[%s58]]
  %s60 = scalar_lea.smem %s0, 30
  %s61 = sld [smem:[%s60]]
  %s62 = scalar_lea.smem %s0, 31
  %s63 = sld [smem:[%s62]]
  %s64 = scalar_lea.smem %s0, 32
  %s65 = sld [smem:[%s64]]
  %s66 = scalar_lea.smem %s0, 33
  %s67 = sld [smem:[%s66]]
  %s68 = scalar_lea.smem %s0, 34
  %s69 = sld [smem:[%s68]]
  %s70 = scalar_lea.smem %s0, 35
  %s71 = sld [smem:[%s70]]
  %s72 = scalar_lea.smem %s0, 36
  %s73 = sld [smem:[%s72]]
  %s74 = scalar_lea.smem %s0, 37
  %s75 = sld [smem:[%s74]]
  %76 = xla_tuple %s73, %s75
  %s77 = sld [smem:[#allocation0]]
  $region194: #{tacotron_forward.1} parent=0
    _
  %s79 = ssub.s32 1, %s77
  %s80 = scalar_select 0, %s79, %s77
  $region1: #{tacotron_forward.1} parent=0
    #allocation2 [shape = 'u8[1024]{0}', space=vmem, size = 0x400, scoped, tag = 'input window, operand 16, single buffered']
    #allocation3 [shape = 's32[1]{0}', space=sflag, size = 0x4, scoped, tag = 'scoped memory for tacotron_forward.1']
    #allocation4 [shape = 's32[1]{0}', space=sflag, size = 0x4, scoped, tag = 'scoped memory for tacotron_forward.1']
    #allocation5 [shape = 'u8[512]{0}', space=vmem, size = 0x400, scoped, tag = 'input window, operand 20, single buffered']
    #allocation6 [shape = 's32[1]{0}', space=sflag, size = 0x4, scoped, tag = 'scoped memory for tacotron_forward.1']
    #allocation7 [shape = 'u8[512]{0}', space=vmem, size = 0x400, scoped, tag = 'input window, operand 25, single buffered']
    #allocation8 [shape = 'u8[512]{0}', space=vmem, size = 0x400, scoped, tag = 'input window, operand 27, single buffered']
    #allocation9 [shape = 's32[1]{0}', space=sflag, size = 0x4, scoped, tag = 'scoped memory for tacotron_forward.1']
    #allocation10 [shape = 'u8[512]{0}', space=vmem, size = 0x400, scoped, tag = 'input window, operand 29, single buffered']
    #allocation11 [shape = 'u8[512]{0}', space=vmem, size = 0x400, scoped, tag = 'input window, operand 31, single buffered']
    #allocation12 [shape = 's32[1]{0}', space=sflag, size = 0x4, scoped, tag = 'scoped memory for tacotron_forward.1']
    #allocation13 [shape = 'u8[512]{0}', space=vmem, size = 0x400, scoped, tag = 'input window, operand 33, single buffered']
    #allocation14 [shape = 'u8[512]{0}', space=vmem, size = 0x400, scoped, tag = 'input window, operand 35, single buffered']
    #allocation15 [shape = 's32[1]{0}', space=sflag, size = 0x4, scoped, tag = 'scoped memory for tacotron_forward.1']
    #allocation16 [shape = 'u8[1024]{0}', space=vmem, size = 0x400, scoped, tag = 'output window, operand 1, single buffered']
    %81 = vsyncpa [#allocation3], 0
    %82 = vsyncpa [#allocation6], 0
    %83 = vsyncpa [#allocation9], 0
    %84 = vsyncpa [#allocation12], 0
    %85 = vsyncpa [#allocation15], 0
    %86 = vsyncpa [#allocation4], 0
    // Predicated region
    $region2: #{tacotron_forward.1} parent=1 // pred_check
      _
    $region3: #{tacotron_forward.1} parent=1 // pred_check_branch
      %88 = sbr.rel (0) target = $region5
    $region4: #{tacotron_forward.1} parent=1 // pred_region
      _
    $region5: #{tacotron_forward.1} parent=1 // pred_fallthru
      _
    // Predicated region
    $region6: #{tacotron_forward.1} parent=1 // pred_check
      _
    $region7: #{tacotron_forward.1} parent=1 // pred_check_branch
      %90 = sbr.rel (0) target = $region9
    $region8: #{tacotron_forward.1} parent=1 // pred_region
      _
    $region9: #{tacotron_forward.1} parent=1 // pred_fallthru
      _
    // Predicated region
    $region10: #{tacotron_forward.1} parent=1 // pred_check
      _
    $region11: #{tacotron_forward.1} parent=1 // pred_check_branch
      %92 = sbr.rel (0) target = $region13
    $region12: #{tacotron_forward.1} parent=1 // pred_region
      _
    $region13: #{tacotron_forward.1} parent=1 // pred_fallthru
      _
    // Predicated region
    $region14: #{tacotron_forward.1} parent=1 // pred_check
      _
    $region15: #{tacotron_forward.1} parent=1 // pred_check_branch
      %94 = sbr.rel (0) target = $region17
    $region16: #{tacotron_forward.1} parent=1 // pred_region
      _
    $region17: #{tacotron_forward.1} parent=1 // pred_fallthru
      _
    // Predicated region
    $region18: #{tacotron_forward.1} parent=1 // pred_check
      _
    $region19: #{tacotron_forward.1} parent=1 // pred_check_branch
      %96 = sbr.rel (0) target = $region21
    $region20: #{tacotron_forward.1} parent=1 // pred_region
      _
    $region21: #{tacotron_forward.1} parent=1 // pred_fallthru
      _
    // Predicated region
    $region22: #{tacotron_forward.1} parent=1 // pred_check
      _
    $region23: #{tacotron_forward.1} parent=1 // pred_check_branch
      %98 = sbr.rel (0) target = $region25
    $region24: #{tacotron_forward.1} parent=1 // pred_region
      _
    $region25: #{tacotron_forward.1} parent=1 // pred_fallthru
      _
    // Predicated region
    $region26: #{tacotron_forward.1} parent=1 // pred_check
      _
    $region27: #{tacotron_forward.1} parent=1 // pred_check_branch
      %100 = sbr.rel (0) target = $region29
    $region28: #{tacotron_forward.1} parent=1 // pred_region
      _
    $region29: #{tacotron_forward.1} parent=1 // pred_fallthru
      _
    // Predicated region
    $region30: #{tacotron_forward.1} parent=1 // pred_check
      _
    $region31: #{tacotron_forward.1} parent=1 // pred_check_branch
      %102 = sbr.rel (0) target = $region33
    $region32: #{tacotron_forward.1} parent=1 // pred_region
      _
    $region33: #{tacotron_forward.1} parent=1 // pred_fallthru
      _
    // Predicated region
    $region34: #{tacotron_forward.1} parent=1 // pred_check
      _
    $region35: #{tacotron_forward.1} parent=1 // pred_check_branch
      %104 = sbr.rel (0) target = $region37
    $region36: #{tacotron_forward.1} parent=1 // pred_region
      _
    $region37: #{tacotron_forward.1} parent=1 // pred_fallthru
      _
    // Predicated region
    $region38: #{tacotron_forward.1} parent=1 // pred_check
      _
    $region39: #{tacotron_forward.1} parent=1 // pred_check_branch
      %106 = sbr.rel (0) target = $region41
    $region40: #{tacotron_forward.1} parent=1 // pred_region
      _
    $region41: #{tacotron_forward.1} parent=1 // pred_fallthru
      _
    // Predicated region
    $region42: #{tacotron_forward.1} parent=1 // pred_check
      _
    $region43: #{tacotron_forward.1} parent=1 // pred_check_branch
      %108 = sbr.rel (0) target = $region45
    $region44: #{tacotron_forward.1} parent=1 // pred_region
      _
    $region45: #{tacotron_forward.1} parent=1 // pred_fallthru
      _
    // Predicated region
    $region46: #{tacotron_forward.1} parent=1 // pred_check
      _
    $region47: #{tacotron_forward.1} parent=1 // pred_check_branch
      %110 = sbr.rel (0) target = $region49
    $region48: #{tacotron_forward.1} parent=1 // pred_region
      _
    $region49: #{tacotron_forward.1} parent=1 // pred_fallthru
      _
    // Predicated region
    $region50: #{tacotron_forward.1} parent=1 // pred_check
      _
    $region51: #{tacotron_forward.1} parent=1 // pred_check_branch
      %112 = sbr.rel (0) target = $region53
    $region52: #{tacotron_forward.1} parent=1 // pred_region
      _
    $region53: #{tacotron_forward.1} parent=1 // pred_fallthru
      _
    // Predicated region
    $region54: #{tacotron_forward.1} parent=1 // pred_check
      _
    $region55: #{tacotron_forward.1} parent=1 // pred_check_branch
      %114 = sbr.rel (0) target = $region57
    $region56: #{tacotron_forward.1} parent=1 // pred_region
      _
    $region57: #{tacotron_forward.1} parent=1 // pred_fallthru
      _
    // Predicated region
    $region58: #{tacotron_forward.1} parent=1 // pred_check
      _
    $region59: #{tacotron_forward.1} parent=1 // pred_check_branch
      %116 = sbr.rel (0) target = $region61
    $region60: #{tacotron_forward.1} parent=1 // pred_region
      _
    $region61: #{tacotron_forward.1} parent=1 // pred_fallthru
      _
    // Predicated region
    $region62: #{tacotron_forward.1} parent=1 // pred_check
      _
    $region63: #{tacotron_forward.1} parent=1 // pred_check_branch
      %118 = sbr.rel (0) target = $region65
    $region64: #{tacotron_forward.1} parent=1 // pred_region
      _
    $region65: #{tacotron_forward.1} parent=1 // pred_fallthru
      _
    // Predicated region
    $region66: #{tacotron_forward.1} parent=1 // pred_check
      _
    $region67: #{tacotron_forward.1} parent=1 // pred_check_branch
      %120 = sbr.rel (0) target = $region69
    $region68: #{tacotron_forward.1} parent=1 // pred_region
      %122 = vsyncadd [#allocation3], 0
      %s124 = sshll.u32 %s33, 4
      %s125 = int_to_ptr.hbm [resolvable:$true] %s124
      %s126 = sshll.u32 [#allocation2], 4
      %s127 = int_to_ptr.vmem [resolvable:$true] %s126
      %129 = dma.hbm_to_vmem [thread:$0]  %s125, 32, %s127, [#allocation3]
    $region69: #{tacotron_forward.1} parent=1 // pred_fallthru
      _
    // Predicated region
    $region70: #{tacotron_forward.1} parent=1 // pred_check
      _
    $region71: #{tacotron_forward.1} parent=1 // pred_check_branch
      %131 = sbr.rel (0) target = $region73
    $region72: #{tacotron_forward.1} parent=1 // pred_region
      _
    $region73: #{tacotron_forward.1} parent=1 // pred_fallthru
      _
    // Predicated region
    $region74: #{tacotron_forward.1} parent=1 // pred_check
      _
    $region75: #{tacotron_forward.1} parent=1 // pred_check_branch
      %133 = sbr.rel (0) target = $region77
    $region76: #{tacotron_forward.1} parent=1 // pred_region
      _
    $region77: #{tacotron_forward.1} parent=1 // pred_fallthru
      _
    // Predicated region
    $region78: #{tacotron_forward.1} parent=1 // pred_check
      _
    $region79: #{tacotron_forward.1} parent=1 // pred_check_branch
      %135 = sbr.rel (0) target = $region81
    $region80: #{tacotron_forward.1} parent=1 // pred_region
      _
    $region81: #{tacotron_forward.1} parent=1 // pred_fallthru
      _
    // Predicated region
    $region82: #{tacotron_forward.1} parent=1 // pred_check
      _
    $region83: #{tacotron_forward.1} parent=1 // pred_check_branch
      %137 = sbr.rel (0) target = $region85
    $region84: #{tacotron_forward.1} parent=1 // pred_region
      %139 = vsyncadd [#allocation6], 0
      %s141 = sshll.u32 %s41, 4
      %s142 = int_to_ptr.hbm [resolvable:$true] %s141
      %s143 = sshll.u32 [#allocation5], 4
      %s144 = int_to_ptr.vmem [resolvable:$true] %s143
      %146 = dma.hbm_to_vmem [thread:$0]  %s142, 16, %s144, [#allocation6]
    $region85: #{tacotron_forward.1} parent=1 // pred_fallthru
      _
    // Predicated region
    $region86: #{tacotron_forward.1} parent=1 // pred_check
      _
    $region87: #{tacotron_forward.1} parent=1 // pred_check_branch
      %148 = sbr.rel (0) target = $region89
    $region88: #{tacotron_forward.1} parent=1 // pred_region
      _
    $region89: #{tacotron_forward.1} parent=1 // pred_fallthru
      _
    // Predicated region
    $region90: #{tacotron_forward.1} parent=1 // pred_check
      _
    $region91: #{tacotron_forward.1} parent=1 // pred_check_branch
      %150 = sbr.rel (0) target = $region93
    $region92: #{tacotron_forward.1} parent=1 // pred_region
      _
    $region93: #{tacotron_forward.1} parent=1 // pred_fallthru
      _
    // Predicated region
    $region94: #{tacotron_forward.1} parent=1 // pred_check
      _
    $region95: #{tacotron_forward.1} parent=1 // pred_check_branch
      %152 = sbr.rel (0) target = $region97
    $region96: #{tacotron_forward.1} parent=1 // pred_region
      _
    $region97: #{tacotron_forward.1} parent=1 // pred_fallthru
      _
    // Predicated region
    $region98: #{tacotron_forward.1} parent=1 // pred_check
      _
    $region99: #{tacotron_forward.1} parent=1 // pred_check_branch
      %154 = sbr.rel (0) target = $region101
    $region100: #{tacotron_forward.1} parent=1 // pred_region
      _
    $region101: #{tacotron_forward.1} parent=1 // pred_fallthru
      _
    // Predicated region
    $region102: #{tacotron_forward.1} parent=1 // pred_check
      _
    $region103: #{tacotron_forward.1} parent=1 // pred_check_branch
      %156 = sbr.rel (0) target = $region105
    $region104: #{tacotron_forward.1} parent=1 // pred_region
      %158 = vsyncadd [#allocation6], 0
      %s160 = sshll.u32 %s51, 4
      %s161 = int_to_ptr.hbm [resolvable:$true] %s160
      %s162 = sshll.u32 [#allocation7], 4
      %s163 = int_to_ptr.vmem [resolvable:$true] %s162
      %165 = dma.hbm_to_vmem [thread:$0]  %s161, 16, %s163, [#allocation6]
    $region105: #{tacotron_forward.1} parent=1 // pred_fallthru
      _
    // Predicated region
    $region106: #{tacotron_forward.1} parent=1 // pred_check
      _
    $region107: #{tacotron_forward.1} parent=1 // pred_check_branch
      %167 = sbr.rel (0) target = $region109
    $region108: #{tacotron_forward.1} parent=1 // pred_region
      _
    $region109: #{tacotron_forward.1} parent=1 // pred_fallthru
      _
    // Predicated region
    $region110: #{tacotron_forward.1} parent=1 // pred_check
      _
    $region111: #{tacotron_forward.1} parent=1 // pred_check_branch
      %169 = sbr.rel (0) target = $region113
    $region112: #{tacotron_forward.1} parent=1 // pred_region
      %171 = vsyncadd [#allocation9], 0
      %s173 = sshll.u32 %s55, 4
      %s174 = int_to_ptr.hbm [resolvable:$true] %s173
      %s175 = sshll.u32 [#allocation8], 4
      %s176 = int_to_ptr.vmem [resolvable:$true] %s175
      %178 = dma.hbm_to_vmem [thread:$0]  %s174, 16, %s176, [#allocation9]
    $region113: #{tacotron_forward.1} parent=1 // pred_fallthru
      _
    // Predicated region
    $region114: #{tacotron_forward.1} parent=1 // pred_check
      _
    $region115: #{tacotron_forward.1} parent=1 // pred_check_branch
      %180 = sbr.rel (0) target = $region117
    $region116: #{tacotron_forward.1} parent=1 // pred_region
      _
    $region117: #{tacotron_forward.1} parent=1 // pred_fallthru
      _
    // Predicated region
    $region118: #{tacotron_forward.1} parent=1 // pred_check
      _
    $region119: #{tacotron_forward.1} parent=1 // pred_check_branch
      %182 = sbr.rel (0) target = $region121
    $region120: #{tacotron_forward.1} parent=1 // pred_region
      %184 = vsyncadd [#allocation9], 0
      %s186 = sshll.u32 %s59, 4
      %s187 = int_to_ptr.hbm [resolvable:$true] %s186
      %s188 = sshll.u32 [#allocation10], 4
      %s189 = int_to_ptr.vmem [resolvable:$true] %s188
      %191 = dma.hbm_to_vmem [thread:$0]  %s187, 16, %s189, [#allocation9]
    $region121: #{tacotron_forward.1} parent=1 // pred_fallthru
      _
    // Predicated region
    $region122: #{tacotron_forward.1} parent=1 // pred_check
      _
    $region123: #{tacotron_forward.1} parent=1 // pred_check_branch
      %193 = sbr.rel (0) target = $region125
    $region124: #{tacotron_forward.1} parent=1 // pred_region
      _
    $region125: #{tacotron_forward.1} parent=1 // pred_fallthru
      _
    // Predicated region
    $region126: #{tacotron_forward.1} parent=1 // pred_check
      _
    $region127: #{tacotron_forward.1} parent=1 // pred_check_branch
      %195 = sbr.rel (0) target = $region129
    $region128: #{tacotron_forward.1} parent=1 // pred_region
      %197 = vsyncadd [#allocation12], 0
      %s199 = sshll.u32 %s63, 4
      %s200 = int_to_ptr.hbm [resolvable:$true] %s199
      %s201 = sshll.u32 [#allocation11], 4
      %s202 = int_to_ptr.vmem [resolvable:$true] %s201
      %204 = dma.hbm_to_vmem [thread:$0]  %s200, 16, %s202, [#allocation12]
    $region129: #{tacotron_forward.1} parent=1 // pred_fallthru
      _
    // Predicated region
    $region130: #{tacotron_forward.1} parent=1 // pred_check
      _
    $region131: #{tacotron_forward.1} parent=1 // pred_check_branch
      %206 = sbr.rel (0) target = $region133
    $region132: #{tacotron_forward.1} parent=1 // pred_region
      _
    $region133: #{tacotron_forward.1} parent=1 // pred_fallthru
      _
    // Predicated region
    $region134: #{tacotron_forward.1} parent=1 // pred_check
      _
    $region135: #{tacotron_forward.1} parent=1 // pred_check_branch
      %208 = sbr.rel (0) target = $region137
    $region136: #{tacotron_forward.1} parent=1 // pred_region
      %210 = vsyncadd [#allocation12], 0
      %s212 = sshll.u32 %s67, 4
      %s213 = int_to_ptr.hbm [resolvable:$true] %s212
      %s214 = sshll.u32 [#allocation13], 4
      %s215 = int_to_ptr.vmem [resolvable:$true] %s214
      %217 = dma.hbm_to_vmem [thread:$0]  %s213, 16, %s215, [#allocation12]
    $region137: #{tacotron_forward.1} parent=1 // pred_fallthru
      _
    // Predicated region
    $region138: #{tacotron_forward.1} parent=1 // pred_check
      _
    $region139: #{tacotron_forward.1} parent=1 // pred_check_branch
      %219 = sbr.rel (0) target = $region141
    $region140: #{tacotron_forward.1} parent=1 // pred_region
      _
    $region141: #{tacotron_forward.1} parent=1 // pred_fallthru
      _
    // Predicated region
    $region142: #{tacotron_forward.1} parent=1 // pred_check
      _
    $region143: #{tacotron_forward.1} parent=1 // pred_check_branch
      %221 = sbr.rel (0) target = $region145
    $region144: #{tacotron_forward.1} parent=1 // pred_region
      %223 = vsyncadd [#allocation15], 0
      %s225 = sshll.u32 %s71, 4
      %s226 = int_to_ptr.hbm [resolvable:$true] %s225
      %s227 = sshll.u32 [#allocation14], 4
      %s228 = int_to_ptr.vmem [resolvable:$true] %s227
      %230 = dma.hbm_to_vmem [thread:$0]  %s226, 16, %s228, [#allocation15]
    $region145: #{tacotron_forward.1} parent=1 // pred_fallthru
      _
    // Predicated region
    $region146: #{tacotron_forward.1} parent=1 // pred_check
      _
    $region147: #{tacotron_forward.1} parent=1 // pred_check_branch
      %232 = sbr.rel (0) target = $region149
    $region148: #{tacotron_forward.1} parent=1 // pred_region
      %234 = dma.done [#allocation3], 32
    $region149: #{tacotron_forward.1} parent=1 // pred_fallthru
      _
    // Predicated region
    $region150: #{tacotron_forward.1} parent=1 // pred_check
      _
    $region151: #{tacotron_forward.1} parent=1 // pred_check_branch
      %236 = sbr.rel (0) target = $region153
    $region152: #{tacotron_forward.1} parent=1 // pred_region
      %238 = dma.done [#allocation6], 16
    $region153: #{tacotron_forward.1} parent=1 // pred_fallthru
      _
    // Predicated region
    $region154: #{tacotron_forward.1} parent=1 // pred_check
      _
    $region155: #{tacotron_forward.1} parent=1 // pred_check_branch
      %240 = sbr.rel (0) target = $region157
    $region156: #{tacotron_forward.1} parent=1 // pred_region
      %242 = dma.done [#allocation6], 16
    $region157: #{tacotron_forward.1} parent=1 // pred_fallthru
      _
    // Predicated region
    $region158: #{tacotron_forward.1} parent=1 // pred_check
      _
    $region159: #{tacotron_forward.1} parent=1 // pred_check_branch
      %244 = sbr.rel (0) target = $region161
    $region160: #{tacotron_forward.1} parent=1 // pred_region
      %246 = dma.done [#allocation9], 16
    $region161: #{tacotron_forward.1} parent=1 // pred_fallthru
      _
    // Predicated region
    $region162: #{tacotron_forward.1} parent=1 // pred_check
      _
    $region163: #{tacotron_forward.1} parent=1 // pred_check_branch
      %248 = sbr.rel (0) target = $region165
    $region164: #{tacotron_forward.1} parent=1 // pred_region
      %250 = dma.done [#allocation9], 16
    $region165: #{tacotron_forward.1} parent=1 // pred_fallthru
      _
    // Predicated region
    $region166: #{tacotron_forward.1} parent=1 // pred_check
      _
    $region167: #{tacotron_forward.1} parent=1 // pred_check_branch
      %252 = sbr.rel (0) target = $region169
    $region168: #{tacotron_forward.1} parent=1 // pred_region
      %254 = dma.done [#allocation12], 16
    $region169: #{tacotron_forward.1} parent=1 // pred_fallthru
      _
    // Predicated region
    $region170: #{tacotron_forward.1} parent=1 // pred_check
      _
    $region171: #{tacotron_forward.1} parent=1 // pred_check_branch
      %256 = sbr.rel (0) target = $region173
    $region172: #{tacotron_forward.1} parent=1 // pred_region
      %258 = dma.done [#allocation12], 16
    $region173: #{tacotron_forward.1} parent=1 // pred_fallthru
      _
    // Predicated region
    $region174: #{tacotron_forward.1} parent=1 // pred_check
      _
    $region175: #{tacotron_forward.1} parent=1 // pred_check_branch
      %260 = sbr.rel (0) target = $region177
    $region176: #{tacotron_forward.1} parent=1 // pred_region
      %262 = dma.done [#allocation15], 16
    $region177: #{tacotron_forward.1} parent=1 // pred_fallthru
      _
    %v264 = vld [vmem:[%s1] sm:$0xff]
    %v265 = vld [vmem:[%s1 + $0x8] sm:$0xff]
    %v266 = vld [vmem:[%s1 + $0x10] sm:$0xff]
    %v267 = vld [vmem:[%s1 + $0x18] sm:$0xff]
    %v268 = vpack.c.bf16 %v266, %v264
    %v269 = vpack.c.bf16 %v267, %v265
    %v270 = vld [vmem:[%s11] sm:$0xff]
    %v271 = vld [vmem:[%s11 + $0x8] sm:$0xff]
    %v272 = vld [vmem:[%s11 + $0x10] sm:$0xff]
    %v273 = vld [vmem:[%s11 + $0x18] sm:$0xff]
    %v274 = vld [vmem:[%s11 + $0x20] sm:$0xff]
    %v275 = vld [vmem:[%s11 + $0x28] sm:$0xff]
    %v276 = vld [vmem:[%s11 + $0x30] sm:$0xff]
    %v277 = vld [vmem:[%s11 + $0x38] sm:$0xff]
    %v278 = vld [vmem:[%s11 + $0x40] sm:$0xff]
    %v279 = vld [vmem:[%s11 + $0x48] sm:$0xff]
    %v280 = vld [vmem:[%s11 + $0x50] sm:$0xff]
    %v281 = vld [vmem:[%s11 + $0x58] sm:$0xff]
    %v282 = vld [vmem:[%s11 + $0x60] sm:$0xff]
    %v283 = vld [vmem:[%s11 + $0x68] sm:$0xff]
    %v284 = vld [vmem:[%s11 + $0x70] sm:$0xff]
    %v285 = vld [vmem:[%s11 + $0x78] sm:$0xff]
    %v286 = vld [vmem:[%s11 + $0x80] sm:$0xff]
    %v287 = vld [vmem:[%s11 + $0x88] sm:$0xff]
    %v288 = vld [vmem:[%s11 + $0x90] sm:$0xff]
    %v289 = vld [vmem:[%s11 + $0x98] sm:$0xff]
    %v290 = vld [vmem:[%s11 + $0xa0] sm:$0xff]
    %v291 = vld [vmem:[%s11 + $0xa8] sm:$0xff]
    %v292 = vld [vmem:[%s11 + $0xb0] sm:$0xff]
    %v293 = vld [vmem:[%s11 + $0xb8] sm:$0xff]
    %v294 = vld [vmem:[%s11 + $0xc0] sm:$0xff]
    %v295 = vld [vmem:[%s11 + $0xc8] sm:$0xff]
    %v296 = vld [vmem:[%s11 + $0xd0] sm:$0xff]
    %v297 = vld [vmem:[%s11 + $0xd8] sm:$0xff]
    %v298 = vld [vmem:[%s11 + $0xe0] sm:$0xff]
    %v299 = vld [vmem:[%s11 + $0xe8] sm:$0xff]
    %v300 = vld [vmem:[%s11 + $0xf0] sm:$0xff]
    %v301 = vld [vmem:[%s11 + $0xf8] sm:$0xff]
    %v302 = vld [vmem:[%s13] sm:$0x3]
    %v304 = vperm.slane %v302, 0
    %v305 = vperm.slane %v302, 1
    %v340 = vunpack.c.l.b16 %v270
    %v341 = vunpack.c.h.b16 %v270
    %v342 = vunpack.c.l.b16 %v271
    %v343 = vunpack.c.h.b16 %v271
    %v344 = vunpack.c.l.b16 %v272
    %v345 = vunpack.c.h.b16 %v272
    %v346 = vunpack.c.l.b16 %v273
    %v347 = vunpack.c.h.b16 %v273
    %v348 = vunpack.c.l.b16 %v274
    %v349 = vunpack.c.h.b16 %v274
    %v350 = vunpack.c.l.b16 %v275
    %v351 = vunpack.c.h.b16 %v275
    %v352 = vunpack.c.l.b16 %v276
    %v353 = vunpack.c.h.b16 %v276
    %v354 = vunpack.c.l.b16 %v277
    %v355 = vunpack.c.h.b16 %v277
    %v356 = vunpack.c.l.b16 %v278
    %v357 = vunpack.c.h.b16 %v278
    %v358 = vunpack.c.l.b16 %v279
    %v359 = vunpack.c.h.b16 %v279
    %v360 = vunpack.c.l.b16 %v280
    %v361 = vunpack.c.h.b16 %v280
    %v362 = vunpack.c.l.b16 %v281
    %v363 = vunpack.c.h.b16 %v281
    %v364 = vunpack.c.l.b16 %v282
    %v365 = vunpack.c.h.b16 %v282
    %v366 = vunpack.c.l.b16 %v283
    %v367 = vunpack.c.h.b16 %v283
    %v368 = vunpack.c.l.b16 %v284
    %v369 = vunpack.c.h.b16 %v284
    %v370 = vunpack.c.l.b16 %v285
    %v371 = vunpack.c.h.b16 %v285
    %v372 = vunpack.c.l.b16 %v286
    %v373 = vunpack.c.h.b16 %v286
    %v374 = vunpack.c.l.b16 %v287
    %v375 = vunpack.c.h.b16 %v287
    %v376 = vunpack.c.l.b16 %v288
    %v377 = vunpack.c.h.b16 %v288
    %v378 = vunpack.c.l.b16 %v289
    %v379 = vunpack.c.h.b16 %v289
    %v380 = vunpack.c.l.b16 %v290
    %v381 = vunpack.c.h.b16 %v290
    %v382 = vunpack.c.l.b16 %v291
    %v383 = vunpack.c.h.b16 %v291
    %v384 = vunpack.c.l.b16 %v292
    %v385 = vunpack.c.h.b16 %v292
    %v386 = vunpack.c.l.b16 %v293
    %v387 = vunpack.c.h.b16 %v293
    %v388 = vunpack.c.l.b16 %v294
    %v389 = vunpack.c.h.b16 %v294
    %v390 = vunpack.c.l.b16 %v295
    %v391 = vunpack.c.h.b16 %v295
    %v392 = vunpack.c.l.b16 %v296
    %v393 = vunpack.c.h.b16 %v296
    %v394 = vunpack.c.l.b16 %v297
    %v395 = vunpack.c.h.b16 %v297
    %v396 = vunpack.c.l.b16 %v298
    %v397 = vunpack.c.h.b16 %v298
    %v398 = vunpack.c.l.b16 %v299
    %v399 = vunpack.c.h.b16 %v299
    %v400 = vunpack.c.l.b16 %v300
    %v401 = vunpack.c.h.b16 %v300
    %v402 = vunpack.c.l.b16 %v301
    %v403 = vunpack.c.h.b16 %v301
    %v404 = vpack.c.b16 %v342, %v340
    %v405 = vpack.c.b16 %v343, %v341
    %v406 = vpack.c.b16 %v346, %v344
    %v407 = vpack.c.b16 %v347, %v345
    %v408 = vpack.c.b16 %v350, %v348
    %v409 = vpack.c.b16 %v351, %v349
    %v410 = vpack.c.b16 %v354, %v352
    %v411 = vpack.c.b16 %v355, %v353
    %v412 = vpack.c.b16 %v358, %v356
    %v413 = vpack.c.b16 %v359, %v357
    %v414 = vpack.c.b16 %v362, %v360
    %v415 = vpack.c.b16 %v363, %v361
    %v416 = vpack.c.b16 %v366, %v364
    %v417 = vpack.c.b16 %v367, %v365
    %v418 = vpack.c.b16 %v370, %v368
    %v419 = vpack.c.b16 %v371, %v369
    %v420 = vpack.c.b16 %v374, %v372
    %v421 = vpack.c.b16 %v375, %v373
    %v422 = vpack.c.b16 %v378, %v376
    %v423 = vpack.c.b16 %v379, %v377
    %v424 = vpack.c.b16 %v382, %v380
    %v425 = vpack.c.b16 %v383, %v381
    %v426 = vpack.c.b16 %v386, %v384
    %v427 = vpack.c.b16 %v387, %v385
    %v428 = vpack.c.b16 %v390, %v388
    %v429 = vpack.c.b16 %v391, %v389
    %v430 = vpack.c.b16 %v394, %v392
    %v431 = vpack.c.b16 %v395, %v393
    %v432 = vpack.c.b16 %v398, %v396
    %v433 = vpack.c.b16 %v399, %v397
    %v434 = vpack.c.b16 %v402, %v400
    %v435 = vpack.c.b16 %v403, %v401
    %468 = vmatpush.bf16.msra.mxu0 %v418
    %469 = vmatpush.bf16.msra.mxu0 %v416
    %470 = vmatpush.bf16.msra.mxu0 %v414
    %471 = vmatpush.bf16.msra.mxu0 %v412
    %472 = vmatpush.bf16.msra.mxu0 %v410
    %473 = vmatpush.bf16.msra.mxu0 %v408
    %474 = vmatpush.bf16.msra.mxu0 %v406
    %475 = vmatpush.bf16.msra.mxu0 %v404
    %476 = vmatmul.bf16.gmra.mxu0 %v268
    %v477 = vpop.f32.mrf.mxu0
    %v478 = vadd.f32 %v304, %v477
    %v479 = vpop.f32.mrf.mxu0
    %v480 = vadd.f32 %v304, %v479
    %481 = vdwg.mxu0
    %482 = vmatpush.bf16.msra.mxu0 %v434
    %483 = vmatpush.bf16.msra.mxu0 %v432
    %484 = vmatpush.bf16.msra.mxu0 %v430
    %485 = vmatpush.bf16.msra.mxu0 %v428
    %486 = vmatpush.bf16.msra.mxu0 %v426
    %487 = vmatpush.bf16.msra.mxu0 %v424
    %488 = vmatpush.bf16.msra.mxu0 %v422
    %489 = vmatpush.bf16.msra.mxu0 %v420
    %490 = vmatmul.bf16.gmra.mxu0 %v269
    %v491 = vpop.f32.mrf.mxu0
    %v492 = vadd.f32 %v478, %v491
    %v493 = vpop.f32.mrf.mxu0
    %v494 = vadd.f32 %v480, %v493
    %495 = vdwg.mxu0
    %496 = vmatpush.bf16.msra.mxu0 %v419
    %497 = vmatpush.bf16.msra.mxu0 %v417
    %498 = vmatpush.bf16.msra.mxu0 %v415
    %499 = vmatpush.bf16.msra.mxu0 %v413
    %500 = vmatpush.bf16.msra.mxu0 %v411
    %501 = vmatpush.bf16.msra.mxu0 %v409
    %502 = vmatpush.bf16.msra.mxu0 %v407
    %503 = vmatpush.bf16.msra.mxu0 %v405
    %504 = vmatmul.bf16.gmra.mxu0 %v268
    %v505 = vpop.f32.mrf.mxu0
    %v506 = vadd.f32 %v305, %v505
    %v507 = vpop.f32.mrf.mxu0
    %v508 = vadd.f32 %v305, %v507
    %509 = vdwg.mxu0
    %510 = vmatpush.bf16.msra.mxu0 %v435
    %511 = vmatpush.bf16.msra.mxu0 %v433
    %512 = vmatpush.bf16.msra.mxu0 %v431
    %513 = vmatpush.bf16.msra.mxu0 %v429
    %514 = vmatpush.bf16.msra.mxu0 %v427
    %515 = vmatpush.bf16.msra.mxu0 %v425
    %516 = vmatpush.bf16.msra.mxu0 %v423
    %517 = vmatpush.bf16.msra.mxu0 %v421
    %518 = vmatmul.bf16.gmra.mxu0 %v269
    %v519 = vpop.f32.mrf.mxu0
    %v520 = vadd.f32 %v506, %v519
    %v521 = vpop.f32.mrf.mxu0
    %v522 = vadd.f32 %v508, %v521
    %523 = vdwg.mxu0
    %v524 = vmax.f32 %v492, 0.0
    %v525 = vmax.f32 %v520, 0.0
    %v526 = vmax.f32 %v494, 0.0
    %v527 = vmax.f32 %v522, 0.0
    %v528 = vpack.c.bf16 %v526, %v524
    %v529 = vpack.c.bf16 %v527, %v525
    %v530 = vld [vmem:[%s15] sm:$0xff]
    %v531 = vld [vmem:[%s15 + $0x8] sm:$0xff]
    %v532 = vld [vmem:[%s15 + $0x10] sm:$0xff]
    %v533 = vld [vmem:[%s15 + $0x18] sm:$0xff]
    %v534 = vld [vmem:[%s15 + $0x20] sm:$0xff]
    %v535 = vld [vmem:[%s15 + $0x28] sm:$0xff]
    %v536 = vld [vmem:[%s15 + $0x30] sm:$0xff]
    %v537 = vld [vmem:[%s15 + $0x38] sm:$0xff]
    %v538 = vld [vmem:[%s15 + $0x40] sm:$0xff]
    %v539 = vld [vmem:[%s15 + $0x48] sm:$0xff]
    %v540 = vld [vmem:[%s15 + $0x50] sm:$0xff]
    %v541 = vld [vmem:[%s15 + $0x58] sm:$0xff]
    %v542 = vld [vmem:[%s15 + $0x60] sm:$0xff]
    %v543 = vld [vmem:[%s15 + $0x68] sm:$0xff]
    %v544 = vld [vmem:[%s15 + $0x70] sm:$0xff]
    %v545 = vld [vmem:[%s15 + $0x78] sm:$0xff]
    %v546 = vld [vmem:[%s15 + $0x80] sm:$0xff]
    %v547 = vld [vmem:[%s15 + $0x88] sm:$0xff]
    %v548 = vld [vmem:[%s15 + $0x90] sm:$0xff]
    %v549 = vld [vmem:[%s15 + $0x98] sm:$0xff]
    %v550 = vld [vmem:[%s15 + $0xa0] sm:$0xff]
    %v551 = vld [vmem:[%s15 + $0xa8] sm:$0xff]
    %v552 = vld [vmem:[%s15 + $0xb0] sm:$0xff]
    %v553 = vld [vmem:[%s15 + $0xb8] sm:$0xff]
    %v554 = vld [vmem:[%s15 + $0xc0] sm:$0xff]
    %v555 = vld [vmem:[%s15 + $0xc8] sm:$0xff]
    %v556 = vld [vmem:[%s15 + $0xd0] sm:$0xff]
    %v557 = vld [vmem:[%s15 + $0xd8] sm:$0xff]
    %v558 = vld [vmem:[%s15 + $0xe0] sm:$0xff]
    %v559 = vld [vmem:[%s15 + $0xe8] sm:$0xff]
    %v560 = vld [vmem:[%s15 + $0xf0] sm:$0xff]
    %v561 = vld [vmem:[%s15 + $0xf8] sm:$0xff]
    %v562 = vld [vmem:[%s17] sm:$0x3]
    %v564 = vperm.slane %v562, 0
    %v565 = vperm.slane %v562, 1
    %v600 = vunpack.c.l.b16 %v530
    %v601 = vunpack.c.h.b16 %v530
    %v602 = vunpack.c.l.b16 %v531
    %v603 = vunpack.c.h.b16 %v531
    %v604 = vunpack.c.l.b16 %v532
    %v605 = vunpack.c.h.b16 %v532
    %v606 = vunpack.c.l.b16 %v533
    %v607 = vunpack.c.h.b16 %v533
    %v608 = vunpack.c.l.b16 %v534
    %v609 = vunpack.c.h.b16 %v534
    %v610 = vunpack.c.l.b16 %v535
    %v611 = vunpack.c.h.b16 %v535
    %v612 = vunpack.c.l.b16 %v536
    %v613 = vunpack.c.h.b16 %v536
    %v614 = vunpack.c.l.b16 %v537
    %v615 = vunpack.c.h.b16 %v537
    %v616 = vunpack.c.l.b16 %v538
    %v617 = vunpack.c.h.b16 %v538
    %v618 = vunpack.c.l.b16 %v539
    %v619 = vunpack.c.h.b16 %v539
    %v620 = vunpack.c.l.b16 %v540
    %v621 = vunpack.c.h.b16 %v540
    %v622 = vunpack.c.l.b16 %v541
    %v623 = vunpack.c.h.b16 %v541
    %v624 = vunpack.c.l.b16 %v542
    %v625 = vunpack.c.h.b16 %v542
    %v626 = vunpack.c.l.b16 %v543
    %v627 = vunpack.c.h.b16 %v543
    %v628 = vunpack.c.l.b16 %v544
    %v629 = vunpack.c.h.b16 %v544
    %v630 = vunpack.c.l.b16 %v545
    %v631 = vunpack.c.h.b16 %v545
    %v632 = vunpack.c.l.b16 %v546
    %v633 = vunpack.c.h.b16 %v546
    %v634 = vunpack.c.l.b16 %v547
    %v635 = vunpack.c.h.b16 %v547
    %v636 = vunpack.c.l.b16 %v548
    %v637 = vunpack.c.h.b16 %v548
    %v638 = vunpack.c.l.b16 %v549
    %v639 = vunpack.c.h.b16 %v549
    %v640 = vunpack.c.l.b16 %v550
    %v641 = vunpack.c.h.b16 %v550
    %v642 = vunpack.c.l.b16 %v551
    %v643 = vunpack.c.h.b16 %v551
    %v644 = vunpack.c.l.b16 %v552
    %v645 = vunpack.c.h.b16 %v552
    %v646 = vunpack.c.l.b16 %v553
    %v647 = vunpack.c.h.b16 %v553
    %v648 = vunpack.c.l.b16 %v554
    %v649 = vunpack.c.h.b16 %v554
    %v650 = vunpack.c.l.b16 %v555
    %v651 = vunpack.c.h.b16 %v555
    %v652 = vunpack.c.l.b16 %v556
    %v653 = vunpack.c.h.b16 %v556
    %v654 = vunpack.c.l.b16 %v557
    %v655 = vunpack.c.h.b16 %v557
    %v656 = vunpack.c.l.b16 %v558
    %v657 = vunpack.c.h.b16 %v558
    %v658 = vunpack.c.l.b16 %v559
    %v659 = vunpack.c.h.b16 %v559
    %v660 = vunpack.c.l.b16 %v560
    %v661 = vunpack.c.h.b16 %v560
    %v662 = vunpack.c.l.b16 %v561
    %v663 = vunpack.c.h.b16 %v561
    %v664 = vpack.c.b16 %v602, %v600
    %v665 = vpack.c.b16 %v603, %v601
    %v666 = vpack.c.b16 %v606, %v604
    %v667 = vpack.c.b16 %v607, %v605
    %v668 = vpack.c.b16 %v610, %v608
    %v669 = vpack.c.b16 %v611, %v609
    %v670 = vpack.c.b16 %v614, %v612
    %v671 = vpack.c.b16 %v615, %v613
    %v672 = vpack.c.b16 %v618, %v616
    %v673 = vpack.c.b16 %v619, %v617
    %v674 = vpack.c.b16 %v622, %v620
    %v675 = vpack.c.b16 %v623, %v621
    %v676 = vpack.c.b16 %v626, %v624
    %v677 = vpack.c.b16 %v627, %v625
    %v678 = vpack.c.b16 %v630, %v628
    %v679 = vpack.c.b16 %v631, %v629
    %v680 = vpack.c.b16 %v634, %v632
    %v681 = vpack.c.b16 %v635, %v633
    %v682 = vpack.c.b16 %v638, %v636
    %v683 = vpack.c.b16 %v639, %v637
    %v684 = vpack.c.b16 %v642, %v640
    %v685 = vpack.c.b16 %v643, %v641
    %v686 = vpack.c.b16 %v646, %v644
    %v687 = vpack.c.b16 %v647, %v645
    %v688 = vpack.c.b16 %v650, %v648
    %v689 = vpack.c.b16 %v651, %v649
    %v690 = vpack.c.b16 %v654, %v652
    %v691 = vpack.c.b16 %v655, %v653
    %v692 = vpack.c.b16 %v658, %v656
    %v693 = vpack.c.b16 %v659, %v657
    %v694 = vpack.c.b16 %v662, %v660
    %v695 = vpack.c.b16 %v663, %v661
    %728 = vmatpush.bf16.msra.mxu0 %v678
    %729 = vmatpush.bf16.msra.mxu0 %v676
    %730 = vmatpush.bf16.msra.mxu0 %v674
    %731 = vmatpush.bf16.msra.mxu0 %v672
    %732 = vmatpush.bf16.msra.mxu0 %v670
    %733 = vmatpush.bf16.msra.mxu0 %v668
    %734 = vmatpush.bf16.msra.mxu0 %v666
    %735 = vmatpush.bf16.msra.mxu0 %v664
    %736 = vmatmul.bf16.gmra.mxu0 %v528
    %v737 = vpop.f32.mrf.mxu0
    %v738 = vadd.f32 %v564, %v737
    %v739 = vpop.f32.mrf.mxu0
    %v740 = vadd.f32 %v564, %v739
    %741 = vdwg.mxu0
    %742 = vmatpush.bf16.msra.mxu0 %v694
    %743 = vmatpush.bf16.msra.mxu0 %v692
    %744 = vmatpush.bf16.msra.mxu0 %v690
    %745 = vmatpush.bf16.msra.mxu0 %v688
    %746 = vmatpush.bf16.msra.mxu0 %v686
    %747 = vmatpush.bf16.msra.mxu0 %v684
    %748 = vmatpush.bf16.msra.mxu0 %v682
    %749 = vmatpush.bf16.msra.mxu0 %v680
    %750 = vmatmul.bf16.gmra.mxu0 %v529
    %v751 = vpop.f32.mrf.mxu0
    %v752 = vadd.f32 %v738, %v751
    %v753 = vpop.f32.mrf.mxu0
    %v754 = vadd.f32 %v740, %v753
    %755 = vdwg.mxu0
    %756 = vmatpush.bf16.msra.mxu0 %v679
    %757 = vmatpush.bf16.msra.mxu0 %v677
    %758 = vmatpush.bf16.msra.mxu0 %v675
    %759 = vmatpush.bf16.msra.mxu0 %v673
    %760 = vmatpush.bf16.msra.mxu0 %v671
    %761 = vmatpush.bf16.msra.mxu0 %v669
    %762 = vmatpush.bf16.msra.mxu0 %v667
    %763 = vmatpush.bf16.msra.mxu0 %v665
    %764 = vmatmul.bf16.gmra.mxu0 %v528
    %v765 = vpop.f32.mrf.mxu0
    %v766 = vadd.f32 %v565, %v765
    %v767 = vpop.f32.mrf.mxu0
    %v768 = vadd.f32 %v565, %v767
    %769 = vdwg.mxu0
    %770 = vmatpush.bf16.msra.mxu0 %v695
    %771 = vmatpush.bf16.msra.mxu0 %v693
    %772 = vmatpush.bf16.msra.mxu0 %v691
    %773 = vmatpush.bf16.msra.mxu0 %v689
    %774 = vmatpush.bf16.msra.mxu0 %v687
    %775 = vmatpush.bf16.msra.mxu0 %v685
    %776 = vmatpush.bf16.msra.mxu0 %v683
    %777 = vmatpush.bf16.msra.mxu0 %v681
    %778 = vmatmul.bf16.gmra.mxu0 %v529
    %v779 = vpop.f32.mrf.mxu0
    %v780 = vadd.f32 %v766, %v779
    %v781 = vpop.f32.mrf.mxu0
    %v782 = vadd.f32 %v768, %v781
    %783 = vdwg.mxu0
    %v784 = vmax.f32 %v752, 0.0
    %v785 = vmax.f32 %v780, 0.0
    %v786 = vmax.f32 %v754, 0.0
    %v787 = vmax.f32 %v782, 0.0
    %v788 = vld [vmem:[%s5] sm:$0x3]
    %v789 = vpack.c.bf16 %v788, %v788
    %v790 = vld [vmem:[%s19] sm:$0xf]
    %v791 = vld [vmem:[%s19 + $0x4] sm:$0xf]
    %v792 = vld [vmem:[%s21] sm:$0x1]
    %v794 = vperm.slane %v792, 0
    %v798 = vunpack.c.l.b16 %v790
    %v799 = vunpack.c.l.b16 %v791
    %v800 = vpack.c.b16 %v799, %v798
    %vm802 = vcmask 130048
    %v804 = vsel %vm802, %v789, 0
    %806 = vmatpush.bf16.msra.mxu0 0
    %807 = vmatpush.bf16.msra.mxu0 0
    %808 = vmatpush.bf16.msra.mxu0 0
    %809 = vmatpush.bf16.msra.mxu0 0
    %810 = vmatpush.bf16.msra.mxu0 0
    %811 = vmatpush.bf16.msra.mxu0 0
    %812 = vmatpush.bf16.msra.mxu0 0
    %813 = vmatpush.bf16.msra.mxu0 %v800
    %814 = vmatmul.bf16.gmra.mxu0 %v804
    %v815 = vpop.f32.mrf.mxu0
    %v816 = vadd.f32 %v794, %v815
    %v817 = vpop.f32.mrf.mxu0
    %818 = vdwg.mxu0
    %v819 = vtanh.pop %v816
    %v820 = vpack.c.bf16 %v819, %v819
    %v821 = vld [vmem:[%s23] sm:$0xf]
    %v822 = vld [vmem:[%s23 + $0x4] sm:$0xf]
    %v823 = vld [vmem:[%s23 + $0x8] sm:$0xf]
    %v824 = vld [vmem:[%s23 + $0xc] sm:$0xf]
    %v829 = vunpack.c.l.b16 %v821
    %v830 = vunpack.c.l.b16 %v822
    %v831 = vunpack.c.l.b16 %v823
    %v832 = vunpack.c.l.b16 %v824
    %v833 = vpack.c.b16 %v830, %v829
    %v834 = vpack.c.b16 %v832, %v831
    %vm837 = vcmask 261120
    %v839 = vsel %vm837, %v820, 0
    %841 = vmatpush.bf16.msra.mxu0 0
    %842 = vmatpush.bf16.msra.mxu0 0
    %843 = vmatpush.bf16.msra.mxu0 0
    %844 = vmatpush.bf16.msra.mxu0 0
    %845 = vmatpush.bf16.msra.mxu0 0
    %846 = vmatpush.bf16.msra.mxu0 0
    %847 = vmatpush.bf16.msra.mxu0 %v834
    %848 = vmatpush.bf16.msra.mxu0 %v833
    %849 = vmatmul.bf16.gmra.mxu0 %v839
    %v850 = vpop.f32.mrf.mxu0
    %v851 = vadd.f32 0.0, %v850
    %v852 = vpop.f32.mrf.mxu0
    %853 = vdwg.mxu0
    %vm854 = vcmask 25600
    %v855 = vsel %vm854, %v851, -inf
    %856 = vmax.xlane.f32.xlu0 %v855
    %v857 = vpop.xlane.xlu0 %856
    %v858 = vsub.f32 %v851, %v857
    %v859 = vmul.f32 %v858, 1.442695
    %v860 = vpow.pop %v859
    %v861 = vsel %vm854, %v860, 0.0
    %862 = vadd.xlane.f32.xlu0 %v861
    %v863 = vpop.xlane.xlu0 %862
    %v864 = vrcp.pop %v863
    %v865 = vmul.f32 %v863, %v864
    %v866 = vsub.f32 1.0, %v865
    %v867 = vmul.f32 %v864, %v866
    %v868 = vadd.f32 %v864, %v867
    %vm869 = vweird.f32 %v863
    %vm870 = vweird.f32 %v864
    %vm871 = vmor %vm869, %vm870
    %v872 = vsel %vm871, %v864, %v868
    %v873 = vand.u32 2147483647, %v863
    %vm874 = vcmp.eq.f32.partialorder %v873, 8.507059e+37
    %v875 = vand.u32 %v863, 2147483648
    %v876 = vor.u32 1.1754944e-38, %v875
    %v877 = vsel %vm874, %v876, %v872
    %v878 = vmul.f32 %v860, %v877
    %v879 = vpack.c.bf16 %v878, %v878
    %v880 = vld [vmem:[%s25] sm:$0x3]
    %vm881 = vcmask 31744
    %v883 = vsel %vm881, %v879, 0
    %vm885 = vcmask 1041408
    %v887 = vsel %vm885, %v880, 0
    %889 = vmatpush.bf16.msra.mxu0 0
    %890 = vmatpush.bf16.msra.mxu0 0
    %891 = vmatpush.bf16.msra.mxu0 0
    %892 = vmatpush.bf16.msra.mxu0 0
    %893 = vmatpush.bf16.msra.mxu0 0
    %894 = vmatpush.bf16.msra.mxu0 0
    %895 = vmatpush.bf16.msra.mxu0 0
    %896 = vmatpush.bf16.msra.mxu0 %v887
    %897 = vmatmul.bf16.gmra.mxu0 %v883
    %v898 = vpop.f32.mrf.mxu0
    %v899 = vadd.f32 0.0, %v898
    %v900 = vpop.f32.mrf.mxu0
    %901 = vdwg.mxu0
    %v902 = vsel %vm881, %v878, 0.0
    %903 = vst [vmem:[#allocation16] sm:$0x3] %v902
    %v904 = vld [vmem:[%s3] sm:$0x3]
    %v905 = vpack.c.bf16 %v904, %v904
    %v906 = vld [vmem:[%s29] sm:$0xff]
    %v907 = vld [vmem:[%s29 + $0x8] sm:$0xff]
    %v908 = vpack.c.bf16 %v899, %v899
    %v909 = vld [vmem:[%s31] sm:$0xff]
    %v910 = vld [vmem:[%s31 + $0x8] sm:$0xff]
    %v913 = vunpack.c.l.b16 %v909
    %v914 = vunpack.c.h.b16 %v909
    %v915 = vunpack.c.l.b16 %v910
    %v916 = vunpack.c.h.b16 %v910
    %v917 = vpack.c.b16 %v915, %v913
    %v918 = vpack.c.b16 %v916, %v914
    %v922 = vsel %vm802, %v908, 0
    %924 = vmatpush.bf16.msra.mxu0 0
    %925 = vmatpush.bf16.msra.mxu0 0
    %926 = vmatpush.bf16.msra.mxu0 0
    %927 = vmatpush.bf16.msra.mxu0 0
    %928 = vmatpush.bf16.msra.mxu0 0
    %929 = vmatpush.bf16.msra.mxu0 0
    %930 = vmatpush.bf16.msra.mxu0 0
    %931 = vmatpush.bf16.msra.mxu0 %v917
    %932 = vmatmul.bf16.gmra.mxu0 %v922
    %v933 = vpop.f32.mrf.mxu0
    %v934 = vadd.f32 0.0, %v933
    %v935 = vpop.f32.mrf.mxu0
    %936 = vdwg.mxu0
    %937 = vmatpush.bf16.msra.mxu0 0
    %938 = vmatpush.bf16.msra.mxu0 0
    %939 = vmatpush.bf16.msra.mxu0 0
    %940 = vmatpush.bf16.msra.mxu0 0
    %941 = vmatpush.bf16.msra.mxu0 0
    %942 = vmatpush.bf16.msra.mxu0 0
    %943 = vmatpush.bf16.msra.mxu0 0
    %944 = vmatpush.bf16.msra.mxu0 %v918
    %945 = vmatmul.bf16.gmra.mxu0 %v922
    %v946 = vpop.f32.mrf.mxu0
    %v947 = vadd.f32 0.0, %v946
    %v948 = vpop.f32.mrf.mxu0
    %949 = vdwg.mxu0
    %v952 = vunpack.c.l.b16 %v906
    %v953 = vunpack.c.h.b16 %v906
    %v954 = vunpack.c.l.b16 %v907
    %v955 = vunpack.c.h.b16 %v907
    %v956 = vpack.c.b16 %v954, %v952
    %v957 = vpack.c.b16 %v955, %v953
    %v961 = vsel %vm802, %v905, 0
    %963 = vmatpush.bf16.msra.mxu0 0
    %964 = vmatpush.bf16.msra.mxu0 0
    %965 = vmatpush.bf16.msra.mxu0 0
    %966 = vmatpush.bf16.msra.mxu0 0
    %967 = vmatpush.bf16.msra.mxu0 0
    %968 = vmatpush.bf16.msra.mxu0 0
    %969 = vmatpush.bf16.msra.mxu0 0
    %970 = vmatpush.bf16.msra.mxu0 %v956
    %971 = vmatmul.bf16.gmra.mxu0 %v961
    %v972 = vpop.f32.mrf.mxu0
    %v973 = vadd.f32 %v934, %v972
    %v974 = vpop.f32.mrf.mxu0
    %975 = vdwg.mxu0
    %976 = vmatpush.bf16.msra.mxu0 0
    %977 = vmatpush.bf16.msra.mxu0 0
    %978 = vmatpush.bf16.msra.mxu0 0
    %979 = vmatpush.bf16.msra.mxu0 0
    %980 = vmatpush.bf16.msra.mxu0 0
    %981 = vmatpush.bf16.msra.mxu0 0
    %982 = vmatpush.bf16.msra.mxu0 0
    %983 = vmatpush.bf16.msra.mxu0 %v957
    %984 = vmatmul.bf16.gmra.mxu0 %v961
    %v985 = vpop.f32.mrf.mxu0
    %v986 = vadd.f32 %v947, %v985
    %v987 = vpop.f32.mrf.mxu0
    %988 = vdwg.mxu0
    %v989 = vld [vmem:[#allocation2] sm:$0x3]
    %v991 = vperm.slane %v989, 0
    %v992 = vperm.slane %v989, 1
    %v995 = vadd.f32 %v973, %v991
    %v996 = vadd.f32 %v986, %v992
    %v997 = vpack.c.bf16 %v786, %v784
    %v998 = vpack.c.bf16 %v787, %v785
    %v999 = vld [vmem:[%s27] sm:$0xff]
    %v1000 = vld [vmem:[%s27 + $0x8] sm:$0xff]
    %v1001 = vld [vmem:[%s27 + $0x10] sm:$0xff]
    %v1002 = vld [vmem:[%s27 + $0x18] sm:$0xff]
    %v1003 = vld [vmem:[%s27 + $0x20] sm:$0xff]
    %v1004 = vld [vmem:[%s27 + $0x28] sm:$0xff]
    %v1005 = vld [vmem:[%s27 + $0x30] sm:$0xff]
    %v1006 = vld [vmem:[%s27 + $0x38] sm:$0xff]
    %v1007 = vld [vmem:[%s27 + $0x40] sm:$0xff]
    %v1008 = vld [vmem:[%s27 + $0x48] sm:$0xff]
    %v1009 = vld [vmem:[%s27 + $0x50] sm:$0xff]
    %v1010 = vld [vmem:[%s27 + $0x58] sm:$0xff]
    %v1011 = vld [vmem:[%s27 + $0x60] sm:$0xff]
    %v1012 = vld [vmem:[%s27 + $0x68] sm:$0xff]
    %v1013 = vld [vmem:[%s27 + $0x70] sm:$0xff]
    %v1014 = vld [vmem:[%s27 + $0x78] sm:$0xff]
    %v1015 = vld [vmem:[%s27 + $0x80] sm:$0xff]
    %v1016 = vld [vmem:[%s27 + $0x88] sm:$0xff]
    %v1017 = vld [vmem:[%s27 + $0x90] sm:$0xff]
    %v1018 = vld [vmem:[%s27 + $0x98] sm:$0xff]
    %v1019 = vld [vmem:[%s27 + $0xa0] sm:$0xff]
    %v1020 = vld [vmem:[%s27 + $0xa8] sm:$0xff]
    %v1021 = vld [vmem:[%s27 + $0xb0] sm:$0xff]
    %v1022 = vld [vmem:[%s27 + $0xb8] sm:$0xff]
    %v1023 = vld [vmem:[%s27 + $0xc0] sm:$0xff]
    %v1024 = vld [vmem:[%s27 + $0xc8] sm:$0xff]
    %v1025 = vld [vmem:[%s27 + $0xd0] sm:$0xff]
    %v1026 = vld [vmem:[%s27 + $0xd8] sm:$0xff]
    %v1027 = vld [vmem:[%s27 + $0xe0] sm:$0xff]
    %v1028 = vld [vmem:[%s27 + $0xe8] sm:$0xff]
    %v1029 = vld [vmem:[%s27 + $0xf0] sm:$0xff]
    %v1030 = vld [vmem:[%s27 + $0xf8] sm:$0xff]
    %v1063 = vunpack.c.l.b16 %v999
    %v1064 = vunpack.c.h.b16 %v999
    %v1065 = vunpack.c.l.b16 %v1000
    %v1066 = vunpack.c.h.b16 %v1000
    %v1067 = vunpack.c.l.b16 %v1001
    %v1068 = vunpack.c.h.b16 %v1001
    %v1069 = vunpack.c.l.b16 %v1002
    %v1070 = vunpack.c.h.b16 %v1002
    %v1071 = vunpack.c.l.b16 %v1003
    %v1072 = vunpack.c.h.b16 %v1003
    %v1073 = vunpack.c.l.b16 %v1004
    %v1074 = vunpack.c.h.b16 %v1004
    %v1075 = vunpack.c.l.b16 %v1005
    %v1076 = vunpack.c.h.b16 %v1005
    %v1077 = vunpack.c.l.b16 %v1006
    %v1078 = vunpack.c.h.b16 %v1006
    %v1079 = vunpack.c.l.b16 %v1007
    %v1080 = vunpack.c.h.b16 %v1007
    %v1081 = vunpack.c.l.b16 %v1008
    %v1082 = vunpack.c.h.b16 %v1008
    %v1083 = vunpack.c.l.b16 %v1009
    %v1084 = vunpack.c.h.b16 %v1009
    %v1085 = vunpack.c.l.b16 %v1010
    %v1086 = vunpack.c.h.b16 %v1010
    %v1087 = vunpack.c.l.b16 %v1011
    %v1088 = vunpack.c.h.b16 %v1011
    %v1089 = vunpack.c.l.b16 %v1012
    %v1090 = vunpack.c.h.b16 %v1012
    %v1091 = vunpack.c.l.b16 %v1013
    %v1092 = vunpack.c.h.b16 %v1013
    %v1093 = vunpack.c.l.b16 %v1014
    %v1094 = vunpack.c.h.b16 %v1014
    %v1095 = vunpack.c.l.b16 %v1015
    %v1096 = vunpack.c.h.b16 %v1015
    %v1097 = vunpack.c.l.b16 %v1016
    %v1098 = vunpack.c.h.b16 %v1016
    %v1099 = vunpack.c.l.b16 %v1017
    %v1100 = vunpack.c.h.b16 %v1017
    %v1101 = vunpack.c.l.b16 %v1018
    %v1102 = vunpack.c.h.b16 %v1018
    %v1103 = vunpack.c.l.b16 %v1019
    %v1104 = vunpack.c.h.b16 %v1019
    %v1105 = vunpack.c.l.b16 %v1020
    %v1106 = vunpack.c.h.b16 %v1020
    %v1107 = vunpack.c.l.b16 %v1021
    %v1108 = vunpack.c.h.b16 %v1021
    %v1109 = vunpack.c.l.b16 %v1022
    %v1110 = vunpack.c.h.b16 %v1022
    %v1111 = vunpack.c.l.b16 %v1023
    %v1112 = vunpack.c.h.b16 %v1023
    %v1113 = vunpack.c.l.b16 %v1024
    %v1114 = vunpack.c.h.b16 %v1024
    %v1115 = vunpack.c.l.b16 %v1025
    %v1116 = vunpack.c.h.b16 %v1025
    %v1117 = vunpack.c.l.b16 %v1026
    %v1118 = vunpack.c.h.b16 %v1026
    %v1119 = vunpack.c.l.b16 %v1027
    %v1120 = vunpack.c.h.b16 %v1027
    %v1121 = vunpack.c.l.b16 %v1028
    %v1122 = vunpack.c.h.b16 %v1028
    %v1123 = vunpack.c.l.b16 %v1029
    %v1124 = vunpack.c.h.b16 %v1029
    %v1125 = vunpack.c.l.b16 %v1030
    %v1126 = vunpack.c.h.b16 %v1030
    %v1127 = vpack.c.b16 %v1065, %v1063
    %v1128 = vpack.c.b16 %v1066, %v1064
    %v1129 = vpack.c.b16 %v1069, %v1067
    %v1130 = vpack.c.b16 %v1070, %v1068
    %v1131 = vpack.c.b16 %v1073, %v1071
    %v1132 = vpack.c.b16 %v1074, %v1072
    %v1133 = vpack.c.b16 %v1077, %v1075
    %v1134 = vpack.c.b16 %v1078, %v1076
    %v1135 = vpack.c.b16 %v1081, %v1079
    %v1136 = vpack.c.b16 %v1082, %v1080
    %v1137 = vpack.c.b16 %v1085, %v1083
    %v1138 = vpack.c.b16 %v1086, %v1084
    %v1139 = vpack.c.b16 %v1089, %v1087
    %v1140 = vpack.c.b16 %v1090, %v1088
    %v1141 = vpack.c.b16 %v1093, %v1091
    %v1142 = vpack.c.b16 %v1094, %v1092
    %v1143 = vpack.c.b16 %v1097, %v1095
    %v1144 = vpack.c.b16 %v1098, %v1096
    %v1145 = vpack.c.b16 %v1101, %v1099
    %v1146 = vpack.c.b16 %v1102, %v1100
    %v1147 = vpack.c.b16 %v1105, %v1103
    %v1148 = vpack.c.b16 %v1106, %v1104
    %v1149 = vpack.c.b16 %v1109, %v1107
    %v1150 = vpack.c.b16 %v1110, %v1108
    %v1151 = vpack.c.b16 %v1113, %v1111
    %v1152 = vpack.c.b16 %v1114, %v1112
    %v1153 = vpack.c.b16 %v1117, %v1115
    %v1154 = vpack.c.b16 %v1118, %v1116
    %v1155 = vpack.c.b16 %v1121, %v1119
    %v1156 = vpack.c.b16 %v1122, %v1120
    %v1157 = vpack.c.b16 %v1125, %v1123
    %v1158 = vpack.c.b16 %v1126, %v1124
    %1191 = vmatpush.bf16.msra.mxu0 %v1141
    %1192 = vmatpush.bf16.msra.mxu0 %v1139
    %1193 = vmatpush.bf16.msra.mxu0 %v1137
    %1194 = vmatpush.bf16.msra.mxu0 %v1135
    %1195 = vmatpush.bf16.msra.mxu0 %v1133
    %1196 = vmatpush.bf16.msra.mxu0 %v1131
    %1197 = vmatpush.bf16.msra.mxu0 %v1129
    %1198 = vmatpush.bf16.msra.mxu0 %v1127
    %1199 = vmatmul.bf16.gmra.mxu0 %v997
    %v1200 = vpop.f32.mrf.mxu0
    %v1201 = vadd.f32 0.0, %v1200
    %v1202 = vpop.f32.mrf.mxu0
    %v1203 = vadd.f32 0.0, %v1202
    %1204 = vdwg.mxu0
    %1205 = vmatpush.bf16.msra.mxu0 %v1157
    %1206 = vmatpush.bf16.msra.mxu0 %v1155
    %1207 = vmatpush.bf16.msra.mxu0 %v1153
    %1208 = vmatpush.bf16.msra.mxu0 %v1151
    %1209 = vmatpush.bf16.msra.mxu0 %v1149
    %1210 = vmatpush.bf16.msra.mxu0 %v1147
    %1211 = vmatpush.bf16.msra.mxu0 %v1145
    %1212 = vmatpush.bf16.msra.mxu0 %v1143
    %1213 = vmatmul.bf16.gmra.mxu0 %v998
    %v1214 = vpop.f32.mrf.mxu0
    %v1215 = vadd.f32 %v1201, %v1214
    %v1216 = vpop.f32.mrf.mxu0
    %v1217 = vadd.f32 %v1203, %v1216
    %1218 = vdwg.mxu0
    %1219 = vmatpush.bf16.msra.mxu0 %v1142
    %1220 = vmatpush.bf16.msra.mxu0 %v1140
    %1221 = vmatpush.bf16.msra.mxu0 %v1138
    %1222 = vmatpush.bf16.msra.mxu0 %v1136
    %1223 = vmatpush.bf16.msra.mxu0 %v1134
    %1224 = vmatpush.bf16.msra.mxu0 %v1132
    %1225 = vmatpush.bf16.msra.mxu0 %v1130
    %1226 = vmatpush.bf16.msra.mxu0 %v1128
    %1227 = vmatmul.bf16.gmra.mxu0 %v997
    %v1228 = vpop.f32.mrf.mxu0
    %v1229 = vadd.f32 0.0, %v1228
    %v1230 = vpop.f32.mrf.mxu0
    %v1231 = vadd.f32 0.0, %v1230
    %1232 = vdwg.mxu0
    %1233 = vmatpush.bf16.msra.mxu0 %v1158
    %1234 = vmatpush.bf16.msra.mxu0 %v1156
    %1235 = vmatpush.bf16.msra.mxu0 %v1154
    %1236 = vmatpush.bf16.msra.mxu0 %v1152
    %1237 = vmatpush.bf16.msra.mxu0 %v1150
    %1238 = vmatpush.bf16.msra.mxu0 %v1148
    %1239 = vmatpush.bf16.msra.mxu0 %v1146
    %1240 = vmatpush.bf16.msra.mxu0 %v1144
    %1241 = vmatmul.bf16.gmra.mxu0 %v998
    %v1242 = vpop.f32.mrf.mxu0
    %v1243 = vadd.f32 %v1229, %v1242
    %v1244 = vpop.f32.mrf.mxu0
    %v1245 = vadd.f32 %v1231, %v1244
    %1246 = vdwg.mxu0
    %v1249 = vrot.slane %v996, 7
    %vm1250 = vcmask 1040384
    %v1251 = vsel %vm1250, %v995, %v1249
    %vm1252 = vcmask 1041409
    %v1253 = vsel %vm1252, %v995, %v1249
    %v1254 = vrot.slane %v1253, 1
    %v1255 = vperm.slane %v1251, 0
    %v1256 = vperm.slane %v1251, 1
    %v1257 = vperm.slane %v1254, 0
    %v1258 = vperm.slane %v1254, 1
    %v1263 = vadd.f32 %v1215, %v1255
    %v1264 = vadd.f32 %v1243, %v1256
    %v1265 = vadd.f32 %v1217, %v1257
    %v1266 = vadd.f32 %v1245, %v1258
    %v1267 = vmax.f32 %v1263, 0.0
    %v1268 = vmax.f32 %v1264, 0.0
    %v1269 = vmax.f32 %v1265, 0.0
    %v1270 = vmax.f32 %v1266, 0.0
    %v1271 = vpack.c.bf16 %v1268, %v1267
    %v1272 = vpack.c.bf16 %v1270, %v1269
    %v1273 = vld [vmem:[%s7] sm:$0xf]
    %v1274 = vld [vmem:[%s7 + $0x4] sm:$0xf]
    %1277 = vst [vmem:[#allocation1] ss:$2 sm:$0xff] %v1273
    %s1278 = scalar_lea.vmem [#allocation1], 1
    %1279 = vst [vmem:[%s1278] ss:$2 sm:$0xff] %v1274
    %v1280 = vld.sshfl [vmem:[#allocation1] sm:$0xff pattern:$0x75316420]
    %v1282 = vpack.c.bf16 %v1280, %v1280
    %v1283 = vld [vmem:[%s35] sm:$0xff]
    %v1284 = vld [vmem:[%s35 + $0x8] sm:$0xff]
    %v1285 = vld [vmem:[%s35 + $0x10] sm:$0xff]
    %v1286 = vld [vmem:[%s35 + $0x18] sm:$0xff]
    %v1287 = vld [vmem:[%s37] sm:$0x3]
    %v1289 = vperm.slane %v1287, 0
    %v1290 = vperm.slane %v1287, 1
    %v1297 = vunpack.c.l.b16 %v1283
    %v1298 = vunpack.c.h.b16 %v1283
    %v1299 = vunpack.c.l.b16 %v1284
    %v1300 = vunpack.c.h.b16 %v1284
    %v1301 = vunpack.c.l.b16 %v1285
    %v1302 = vunpack.c.h.b16 %v1285
    %v1303 = vunpack.c.l.b16 %v1286
    %v1304 = vunpack.c.h.b16 %v1286
    %v1305 = vpack.c.b16 %v1299, %v1297
    %v1306 = vpack.c.b16 %v1300, %v1298
    %v1307 = vpack.c.b16 %v1303, %v1301
    %v1308 = vpack.c.b16 %v1304, %v1302
    %v1314 = vsel %vm837, %v1282, 0
    %1316 = vmatpush.bf16.msra.mxu0 0
    %1317 = vmatpush.bf16.msra.mxu0 0
    %1318 = vmatpush.bf16.msra.mxu0 0
    %1319 = vmatpush.bf16.msra.mxu0 0
    %1320 = vmatpush.bf16.msra.mxu0 0
    %1321 = vmatpush.bf16.msra.mxu0 0
    %1322 = vmatpush.bf16.msra.mxu0 %v1307
    %1323 = vmatpush.bf16.msra.mxu0 %v1305
    %1324 = vmatmul.bf16.gmra.mxu0 %v1314
    %v1325 = vpop.f32.mrf.mxu0
    %v1326 = vadd.f32 %v1289, %v1325
    %v1327 = vpop.f32.mrf.mxu0
    %1328 = vdwg.mxu0
    %1329 = vmatpush.bf16.msra.mxu0 0
    %1330 = vmatpush.bf16.msra.mxu0 0
    %1331 = vmatpush.bf16.msra.mxu0 0
    %1332 = vmatpush.bf16.msra.mxu0 0
    %1333 = vmatpush.bf16.msra.mxu0 0
    %1334 = vmatpush.bf16.msra.mxu0 0
    %1335 = vmatpush.bf16.msra.mxu0 %v1308
    %1336 = vmatpush.bf16.msra.mxu0 %v1306
    %1337 = vmatmul.bf16.gmra.mxu0 %v1314
    %v1338 = vpop.f32.mrf.mxu0
    %v1339 = vadd.f32 %v1290, %v1338
    %v1340 = vpop.f32.mrf.mxu0
    %1341 = vdwg.mxu0
    %v1342 = vmax.f32 %v1326, 0.0
    %v1343 = vmax.f32 %v1339, 0.0
    %v1344 = vpack.c.bf16 %v1342, %v1342
    %v1345 = vpack.c.bf16 %v1343, %v1343
    %v1346 = vld [vmem:[%s39] sm:$0xf]
    %v1347 = vld [vmem:[%s39 + $0x4] sm:$0xf]
    %v1348 = vld [vmem:[%s39 + $0x8] sm:$0xf]
    %v1349 = vld [vmem:[%s39 + $0xc] sm:$0xf]
    %v1350 = vld [vmem:[%s39 + $0x10] sm:$0xf]
    %v1351 = vld [vmem:[%s39 + $0x14] sm:$0xf]
    %v1352 = vld [vmem:[%s39 + $0x18] sm:$0xf]
    %v1353 = vld [vmem:[%s39 + $0x1c] sm:$0xf]
    %v1354 = vld [vmem:[%s39 + $0x20] sm:$0xf]
    %v1355 = vld [vmem:[%s39 + $0x24] sm:$0xf]
    %v1356 = vld [vmem:[%s39 + $0x28] sm:$0xf]
    %v1357 = vld [vmem:[%s39 + $0x2c] sm:$0xf]
    %v1358 = vld [vmem:[%s39 + $0x30] sm:$0xf]
    %v1359 = vld [vmem:[%s39 + $0x34] sm:$0xf]
    %v1360 = vld [vmem:[%s39 + $0x38] sm:$0xf]
    %v1361 = vld [vmem:[%s39 + $0x3c] sm:$0xf]
    %v1362 = vld [vmem:[%s39 + $0x40] sm:$0xf]
    %v1363 = vld [vmem:[%s39 + $0x44] sm:$0xf]
    %v1364 = vld [vmem:[%s39 + $0x48] sm:$0xf]
    %v1365 = vld [vmem:[%s39 + $0x4c] sm:$0xf]
    %v1366 = vld [vmem:[%s39 + $0x50] sm:$0xf]
    %v1367 = vld [vmem:[%s39 + $0x54] sm:$0xf]
    %v1368 = vld [vmem:[%s39 + $0x58] sm:$0xf]
    %v1369 = vld [vmem:[%s39 + $0x5c] sm:$0xf]
    %v1370 = vld [vmem:[%s39 + $0x60] sm:$0xf]
    %v1371 = vld [vmem:[%s39 + $0x64] sm:$0xf]
    %v1372 = vld [vmem:[%s39 + $0x68] sm:$0xf]
    %v1373 = vld [vmem:[%s39 + $0x6c] sm:$0xf]
    %v1374 = vld [vmem:[%s39 + $0x70] sm:$0xf]
    %v1375 = vld [vmem:[%s39 + $0x74] sm:$0xf]
    %v1376 = vld [vmem:[%s39 + $0x78] sm:$0xf]
    %v1377 = vld [vmem:[%s39 + $0x7c] sm:$0xf]
    %v1378 = vld [vmem:[#allocation5] sm:$0x1]
    %v1380 = vperm.slane %v1378, 0
    %v1414 = vunpack.c.l.b16 %v1346
    %v1415 = vunpack.c.l.b16 %v1347
    %v1416 = vunpack.c.l.b16 %v1348
    %v1417 = vunpack.c.l.b16 %v1349
    %v1418 = vunpack.c.l.b16 %v1350
    %v1419 = vunpack.c.l.b16 %v1351
    %v1420 = vunpack.c.l.b16 %v1352
    %v1421 = vunpack.c.l.b16 %v1353
    %v1422 = vunpack.c.l.b16 %v1354
    %v1423 = vunpack.c.l.b16 %v1355
    %v1424 = vunpack.c.l.b16 %v1356
    %v1425 = vunpack.c.l.b16 %v1357
    %v1426 = vunpack.c.l.b16 %v1358
    %v1427 = vunpack.c.l.b16 %v1359
    %v1428 = vunpack.c.l.b16 %v1360
    %v1429 = vunpack.c.l.b16 %v1361
    %v1430 = vunpack.c.l.b16 %v1362
    %v1431 = vunpack.c.l.b16 %v1363
    %v1432 = vunpack.c.l.b16 %v1364
    %v1433 = vunpack.c.l.b16 %v1365
    %v1434 = vunpack.c.l.b16 %v1366
    %v1435 = vunpack.c.l.b16 %v1367
    %v1436 = vunpack.c.l.b16 %v1368
    %v1437 = vunpack.c.l.b16 %v1369
    %v1438 = vunpack.c.l.b16 %v1370
    %v1439 = vunpack.c.l.b16 %v1371
    %v1440 = vunpack.c.l.b16 %v1372
    %v1441 = vunpack.c.l.b16 %v1373
    %v1442 = vunpack.c.l.b16 %v1374
    %v1443 = vunpack.c.l.b16 %v1375
    %v1444 = vunpack.c.l.b16 %v1376
    %v1445 = vunpack.c.l.b16 %v1377
    %v1446 = vpack.c.b16 %v1415, %v1414
    %v1447 = vpack.c.b16 %v1417, %v1416
    %v1448 = vpack.c.b16 %v1419, %v1418
    %v1449 = vpack.c.b16 %v1421, %v1420
    %v1450 = vpack.c.b16 %v1423, %v1422
    %v1451 = vpack.c.b16 %v1425, %v1424
    %v1452 = vpack.c.b16 %v1427, %v1426
    %v1453 = vpack.c.b16 %v1429, %v1428
    %v1454 = vpack.c.b16 %v1431, %v1430
    %v1455 = vpack.c.b16 %v1433, %v1432
    %v1456 = vpack.c.b16 %v1435, %v1434
    %v1457 = vpack.c.b16 %v1437, %v1436
    %v1458 = vpack.c.b16 %v1439, %v1438
    %v1459 = vpack.c.b16 %v1441, %v1440
    %v1460 = vpack.c.b16 %v1443, %v1442
    %v1461 = vpack.c.b16 %v1445, %v1444
    %1478 = vmatpush.bf16.msra.mxu0 %v1453
    %1479 = vmatpush.bf16.msra.mxu0 %v1452
    %1480 = vmatpush.bf16.msra.mxu0 %v1451
    %1481 = vmatpush.bf16.msra.mxu0 %v1450
    %1482 = vmatpush.bf16.msra.mxu0 %v1449
    %1483 = vmatpush.bf16.msra.mxu0 %v1448
    %1484 = vmatpush.bf16.msra.mxu0 %v1447
    %1485 = vmatpush.bf16.msra.mxu0 %v1446
    %1486 = vmatmul.bf16.gmra.mxu0 %v1344
    %v1487 = vpop.f32.mrf.mxu0
    %v1488 = vadd.f32 %v1380, %v1487
    %v1489 = vpop.f32.mrf.mxu0
    %1490 = vdwg.mxu0
    %1491 = vmatpush.bf16.msra.mxu0 %v1461
    %1492 = vmatpush.bf16.msra.mxu0 %v1460
    %1493 = vmatpush.bf16.msra.mxu0 %v1459
    %1494 = vmatpush.bf16.msra.mxu0 %v1458
    %1495 = vmatpush.bf16.msra.mxu0 %v1457
    %1496 = vmatpush.bf16.msra.mxu0 %v1456
    %1497 = vmatpush.bf16.msra.mxu0 %v1455
    %1498 = vmatpush.bf16.msra.mxu0 %v1454
    %1499 = vmatmul.bf16.gmra.mxu0 %v1345
    %v1500 = vpop.f32.mrf.mxu0
    %v1501 = vadd.f32 %v1488, %v1500
    %v1502 = vpop.f32.mrf.mxu0
    %1503 = vdwg.mxu0
    %v1504 = vmax.f32 %v1501, 0.0
    %v1505 = vpack.c.bf16 %v1504, %v1504
    %v1506 = vld [vmem:[%s43] sm:$0xff]
    %v1507 = vld [vmem:[%s43 + $0x8] sm:$0xff]
    %v1508 = vld [vmem:[%s43 + $0x10] sm:$0xff]
    %v1509 = vld [vmem:[%s43 + $0x18] sm:$0xff]
    %v1510 = vld [vmem:[%s43 + $0x20] sm:$0xff]
    %v1511 = vld [vmem:[%s43 + $0x28] sm:$0xff]
    %v1512 = vld [vmem:[%s43 + $0x30] sm:$0xff]
    %v1513 = vld [vmem:[%s43 + $0x38] sm:$0xff]
    %v1514 = vld [vmem:[%s43 + $0x40] sm:$0xff]
    %v1515 = vld [vmem:[%s43 + $0x48] sm:$0xff]
    %v1516 = vld [vmem:[%s43 + $0x50] sm:$0xff]
    %v1517 = vld [vmem:[%s43 + $0x58] sm:$0xff]
    %v1518 = vld [vmem:[%s43 + $0x60] sm:$0xff]
    %v1519 = vld [vmem:[%s43 + $0x68] sm:$0xff]
    %v1520 = vld [vmem:[%s43 + $0x70] sm:$0xff]
    %v1521 = vld [vmem:[%s43 + $0x78] sm:$0xff]
    %v1522 = vld [vmem:[%s45] sm:$0x3]
    %v1524 = vperm.slane %v1522, 0
    %v1525 = vperm.slane %v1522, 1
    %v1544 = vunpack.c.l.b16 %v1506
    %v1545 = vunpack.c.h.b16 %v1506
    %v1546 = vunpack.c.l.b16 %v1507
    %v1547 = vunpack.c.h.b16 %v1507
    %v1548 = vunpack.c.l.b16 %v1508
    %v1549 = vunpack.c.h.b16 %v1508
    %v1550 = vunpack.c.l.b16 %v1509
    %v1551 = vunpack.c.h.b16 %v1509
    %v1552 = vunpack.c.l.b16 %v1510
    %v1553 = vunpack.c.h.b16 %v1510
    %v1554 = vunpack.c.l.b16 %v1511
    %v1555 = vunpack.c.h.b16 %v1511
    %v1556 = vunpack.c.l.b16 %v1512
    %v1557 = vunpack.c.h.b16 %v1512
    %v1558 = vunpack.c.l.b16 %v1513
    %v1559 = vunpack.c.h.b16 %v1513
    %v1560 = vunpack.c.l.b16 %v1514
    %v1561 = vunpack.c.h.b16 %v1514
    %v1562 = vunpack.c.l.b16 %v1515
    %v1563 = vunpack.c.h.b16 %v1515
    %v1564 = vunpack.c.l.b16 %v1516
    %v1565 = vunpack.c.h.b16 %v1516
    %v1566 = vunpack.c.l.b16 %v1517
    %v1567 = vunpack.c.h.b16 %v1517
    %v1568 = vunpack.c.l.b16 %v1518
    %v1569 = vunpack.c.h.b16 %v1518
    %v1570 = vunpack.c.l.b16 %v1519
    %v1571 = vunpack.c.h.b16 %v1519
    %v1572 = vunpack.c.l.b16 %v1520
    %v1573 = vunpack.c.h.b16 %v1520
    %v1574 = vunpack.c.l.b16 %v1521
    %v1575 = vunpack.c.h.b16 %v1521
    %v1576 = vpack.c.b16 %v1546, %v1544
    %v1577 = vpack.c.b16 %v1547, %v1545
    %v1578 = vpack.c.b16 %v1550, %v1548
    %v1579 = vpack.c.b16 %v1551, %v1549
    %v1580 = vpack.c.b16 %v1554, %v1552
    %v1581 = vpack.c.b16 %v1555, %v1553
    %v1582 = vpack.c.b16 %v1558, %v1556
    %v1583 = vpack.c.b16 %v1559, %v1557
    %v1584 = vpack.c.b16 %v1562, %v1560
    %v1585 = vpack.c.b16 %v1563, %v1561
    %v1586 = vpack.c.b16 %v1566, %v1564
    %v1587 = vpack.c.b16 %v1567, %v1565
    %v1588 = vpack.c.b16 %v1570, %v1568
    %v1589 = vpack.c.b16 %v1571, %v1569
    %v1590 = vpack.c.b16 %v1574, %v1572
    %v1591 = vpack.c.b16 %v1575, %v1573
    %1608 = vmatpush.bf16.msra.mxu0 %v1590
    %1609 = vmatpush.bf16.msra.mxu0 %v1588
    %1610 = vmatpush.bf16.msra.mxu0 %v1586
    %1611 = vmatpush.bf16.msra.mxu0 %v1584
    %1612 = vmatpush.bf16.msra.mxu0 %v1582
    %1613 = vmatpush.bf16.msra.mxu0 %v1580
    %1614 = vmatpush.bf16.msra.mxu0 %v1578
    %1615 = vmatpush.bf16.msra.mxu0 %v1576
    %1616 = vmatmul.bf16.gmra.mxu0 %v1505
    %v1617 = vpop.f32.mrf.mxu0
    %v1618 = vadd.f32 %v1524, %v1617
    %v1619 = vpop.f32.mrf.mxu0
    %1620 = vdwg.mxu0
    %1621 = vmatpush.bf16.msra.mxu0 %v1591
    %1622 = vmatpush.bf16.msra.mxu0 %v1589
    %1623 = vmatpush.bf16.msra.mxu0 %v1587
    %1624 = vmatpush.bf16.msra.mxu0 %v1585
    %1625 = vmatpush.bf16.msra.mxu0 %v1583
    %1626 = vmatpush.bf16.msra.mxu0 %v1581
    %1627 = vmatpush.bf16.msra.mxu0 %v1579
    %1628 = vmatpush.bf16.msra.mxu0 %v1577
    %1629 = vmatmul.bf16.gmra.mxu0 %v1505
    %v1630 = vpop.f32.mrf.mxu0
    %v1631 = vadd.f32 %v1525, %v1630
    %v1632 = vpop.f32.mrf.mxu0
    %1633 = vdwg.mxu0
    %v1636 = vrot.slane %v1631, 4
    %vm1637 = vcmask 1043456
    %v1638 = vsel %vm1637, %v1618, %v1636
    %v1639 = vsel %vm1637, %v1636, %v1618
    %v1640 = vrot.slane %v1639, 4
    %1641 = vst [vmem:[#allocation1] ss:$2 sm:$0xff] %v1638
    %v1642 = vld.sshfl [vmem:[#allocation1] sm:$0xff pattern:$0x75316420]
    %v1643 = vld.sshfl [vmem:[#allocation1 + $0x8] sm:$0xff pattern:$0x75316420]
    %s1644 = scalar_lea.vmem [#allocation1], 16
    %1645 = vst [vmem:[%s1644] ss:$2 sm:$0xff] %v1640
    %v1646 = vld.sshfl [vmem:[#allocation1 + $0x10] sm:$0xff pattern:$0x75316420]
    %v1647 = vld.sshfl [vmem:[#allocation1 + $0x18] sm:$0xff pattern:$0x75316420]
    %v1652 = vpack.c.bf16 %v1643, %v1642
    %v1653 = vpack.c.bf16 %v1647, %v1646
    %v1654 = vld [vmem:[%s9] sm:$0x1]
    %v1655 = vld [vmem:[%s9 + $0x1] sm:$0x1]
    %v1658 = vperm.slane %v1654, 0
    %v1659 = vperm.slane %v1655, 0
    %v1663 = vunpack.c.l.b16 %v1652
    %v1664 = vunpack.c.h.b16 %v1652
    %v1665 = vpack.c.b16 %v1663, %v1663
    %v1666 = vpack.c.b16 %v1664, %v1664
    %v1670 = vunpack.c.l.b16 %v1271
    %v1671 = vunpack.c.h.b16 %v1271
    %v1672 = vpack.c.b16 %v1670, %v1670
    %v1673 = vpack.c.b16 %v1671, %v1671
    %1676 = vmatpush.bf16.xpose.msra.mxu0 0
    %1677 = vmatpush.bf16.xpose.msra.mxu0 0
    %1678 = vmatpush.bf16.xpose.msra.mxu0 0
    %1679 = vmatpush.bf16.xpose.msra.mxu0 0
    %1680 = vmatpush.bf16.xpose.msra.mxu0 0
    %1681 = vmatpush.bf16.xpose.msra.mxu0 0
    %1682 = vmatpush.bf16.xpose.msra.mxu0 0
    %1683 = vmatpush.bf16.xpose.msra.mxu0 %v1672
    %1684 = vmatmul.bf16.gmra.mxu0 %v1665
    %v1685 = vpop.f32.mrf.mxu0
    %v1686 = vadd.f32 %v1658, %v1685
    %v1687 = vpop.f32.mrf.mxu0
    %1688 = vdwg.mxu0
    %1689 = vmatpush.bf16.xpose.msra.mxu0 0
    %1690 = vmatpush.bf16.xpose.msra.mxu0 0
    %1691 = vmatpush.bf16.xpose.msra.mxu0 0
    %1692 = vmatpush.bf16.xpose.msra.mxu0 0
    %1693 = vmatpush.bf16.xpose.msra.mxu0 0
    %1694 = vmatpush.bf16.xpose.msra.mxu0 0
    %1695 = vmatpush.bf16.xpose.msra.mxu0 0
    %1696 = vmatpush.bf16.xpose.msra.mxu0 %v1673
    %1697 = vmatmul.bf16.gmra.mxu0 %v1666
    %v1698 = vpop.f32.mrf.mxu0
    %v1699 = vadd.f32 %v1686, %v1698
    %v1700 = vpop.f32.mrf.mxu0
    %1701 = vdwg.mxu0
    %v1703 = vunpack.c.l.b16 %v1653
    %v1704 = vunpack.c.h.b16 %v1653
    %v1705 = vpack.c.b16 %v1703, %v1703
    %v1706 = vpack.c.b16 %v1704, %v1704
    %v1710 = vunpack.c.l.b16 %v1272
    %v1711 = vunpack.c.h.b16 %v1272
    %v1712 = vpack.c.b16 %v1710, %v1710
    %v1713 = vpack.c.b16 %v1711, %v1711
    %1716 = vmatpush.bf16.xpose.msra.mxu0 0
    %1717 = vmatpush.bf16.xpose.msra.mxu0 0
    %1718 = vmatpush.bf16.xpose.msra.mxu0 0
    %1719 = vmatpush.bf16.xpose.msra.mxu0 0
    %1720 = vmatpush.bf16.xpose.msra.mxu0 0
    %1721 = vmatpush.bf16.xpose.msra.mxu0 0
    %1722 = vmatpush.bf16.xpose.msra.mxu0 0
    %1723 = vmatpush.bf16.xpose.msra.mxu0 %v1712
    %1724 = vmatmul.bf16.gmra.mxu0 %v1705
    %v1725 = vpop.f32.mrf.mxu0
    %v1726 = vadd.f32 %v1659, %v1725
    %v1727 = vpop.f32.mrf.mxu0
    %1728 = vdwg.mxu0
    %1729 = vmatpush.bf16.xpose.msra.mxu0 0
    %1730 = vmatpush.bf16.xpose.msra.mxu0 0
    %1731 = vmatpush.bf16.xpose.msra.mxu0 0
    %1732 = vmatpush.bf16.xpose.msra.mxu0 0
    %1733 = vmatpush.bf16.xpose.msra.mxu0 0
    %1734 = vmatpush.bf16.xpose.msra.mxu0 0
    %1735 = vmatpush.bf16.xpose.msra.mxu0 0
    %1736 = vmatpush.bf16.xpose.msra.mxu0 %v1713
    %1737 = vmatmul.bf16.gmra.mxu0 %v1706
    %v1738 = vpop.f32.mrf.mxu0
    %v1739 = vadd.f32 %v1726, %v1738
    %v1740 = vpop.f32.mrf.mxu0
    %1741 = vdwg.mxu0
    %vm1742 = vcmask 60416
    %v1743 = vsel %vm1742, %v1699, -inf
    %1744 = vmax.xlane.f32.xlu0 %v1743
    %v1745 = vpop.xlane.xlu0 %1744
    %v1746 = vsel %vm1742, %v1739, -inf
    %1747 = vmax.xlane.f32.xlu0 %v1746
    %v1748 = vpop.xlane.xlu0 %1747
    %v1749 = vsub.f32 %v1699, %v1745
    %v1750 = vsub.f32 %v1739, %v1748
    %v1751 = vmul.f32 %v1749, 1.442695
    %v1752 = vpow.pop %v1751
    %v1753 = vmul.f32 %v1750, 1.442695
    %v1754 = vpow.pop %v1753
    %v1755 = vsel %vm1742, %v1752, 0.0
    %1756 = vadd.xlane.f32.xlu0 %v1755
    %v1757 = vpop.xlane.xlu0 %1756
    %v1758 = vsel %vm1742, %v1754, 0.0
    %1759 = vadd.xlane.f32.xlu0 %v1758
    %v1760 = vpop.xlane.xlu0 %1759
    %v1761 = vrcp.pop %v1757
    %v1762 = vmul.f32 %v1757, %v1761
    %v1763 = vsub.f32 1.0, %v1762
    %v1764 = vmul.f32 %v1761, %v1763
    %v1765 = vadd.f32 %v1761, %v1764
    %vm1766 = vweird.f32 %v1757
    %vm1767 = vweird.f32 %v1761
    %vm1768 = vmor %vm1766, %vm1767
    %v1769 = vsel %vm1768, %v1761, %v1765
    %v1770 = vand.u32 2147483647, %v1757
    %vm1771 = vcmp.eq.f32.partialorder %v1770, 8.507059e+37
    %v1772 = vand.u32 %v1757, 2147483648
    %v1773 = vor.u32 1.1754944e-38, %v1772
    %v1774 = vsel %vm1771, %v1773, %v1769
    %v1775 = vmul.f32 %v1752, %v1774
    %v1776 = vrcp.pop %v1760
    %v1777 = vmul.f32 %v1760, %v1776
    %v1778 = vsub.f32 1.0, %v1777
    %v1779 = vmul.f32 %v1776, %v1778
    %v1780 = vadd.f32 %v1776, %v1779
    %vm1781 = vweird.f32 %v1760
    %vm1782 = vweird.f32 %v1776
    %vm1783 = vmor %vm1781, %vm1782
    %v1784 = vsel %vm1783, %v1776, %v1780
    %v1785 = vand.u32 2147483647, %v1760
    %vm1786 = vcmp.eq.f32.partialorder %v1785, 8.507059e+37
    %v1787 = vand.u32 %v1760, 2147483648
    %v1788 = vor.u32 1.1754944e-38, %v1787
    %v1789 = vsel %vm1786, %v1788, %v1784
    %v1790 = vmul.f32 %v1754, %v1789
    %v1791 = vpack.c.bf16 %v1775, %v1775
    %v1792 = vpack.c.bf16 %v1790, %v1790
    %vm1793 = vcmask 64512
    %v1795 = vsel %vm1793, %v1791, 0
    %v1798 = vsel %vm1637, %v1672, 0
    %v1801 = vsel %vm1637, %v1673, 0
    %1803 = vmatpush.bf16.msra.mxu0 0
    %1804 = vmatpush.bf16.msra.mxu0 0
    %1805 = vmatpush.bf16.msra.mxu0 0
    %1806 = vmatpush.bf16.msra.mxu0 0
    %1807 = vmatpush.bf16.msra.mxu0 0
    %1808 = vmatpush.bf16.msra.mxu0 0
    %1809 = vmatpush.bf16.msra.mxu0 0
    %1810 = vmatpush.bf16.msra.mxu0 %v1798
    %1811 = vmatmul.bf16.gmra.mxu0 %v1795
    %v1812 = vpop.f32.mrf.mxu0
    %v1813 = vadd.f32 0.0, %v1812
    %v1814 = vpop.f32.mrf.mxu0
    %1815 = vdwg.mxu0
    %1816 = vmatpush.bf16.msra.mxu0 0
    %1817 = vmatpush.bf16.msra.mxu0 0
    %1818 = vmatpush.bf16.msra.mxu0 0
    %1819 = vmatpush.bf16.msra.mxu0 0
    %1820 = vmatpush.bf16.msra.mxu0 0
    %1821 = vmatpush.bf16.msra.mxu0 0
    %1822 = vmatpush.bf16.msra.mxu0 0
    %1823 = vmatpush.bf16.msra.mxu0 %v1801
    %1824 = vmatmul.bf16.gmra.mxu0 %v1795
    %v1825 = vpop.f32.mrf.mxu0
    %v1826 = vadd.f32 0.0, %v1825
    %v1827 = vpop.f32.mrf.mxu0
    %1828 = vdwg.mxu0
    %v1830 = vsel %vm1793, %v1792, 0
    %v1833 = vsel %vm1637, %v1712, 0
    %v1836 = vsel %vm1637, %v1713, 0
    %1838 = vmatpush.bf16.msra.mxu0 0
    %1839 = vmatpush.bf16.msra.mxu0 0
    %1840 = vmatpush.bf16.msra.mxu0 0
    %1841 = vmatpush.bf16.msra.mxu0 0
    %1842 = vmatpush.bf16.msra.mxu0 0
    %1843 = vmatpush.bf16.msra.mxu0 0
    %1844 = vmatpush.bf16.msra.mxu0 0
    %1845 = vmatpush.bf16.msra.mxu0 %v1833
    %1846 = vmatmul.bf16.gmra.mxu0 %v1830
    %v1847 = vpop.f32.mrf.mxu0
    %v1848 = vadd.f32 0.0, %v1847
    %v1849 = vpop.f32.mrf.mxu0
    %1850 = vdwg.mxu0
    %1851 = vmatpush.bf16.msra.mxu0 0
    %1852 = vmatpush.bf16.msra.mxu0 0
    %1853 = vmatpush.bf16.msra.mxu0 0
    %1854 = vmatpush.bf16.msra.mxu0 0
    %1855 = vmatpush.bf16.msra.mxu0 0
    %1856 = vmatpush.bf16.msra.mxu0 0
    %1857 = vmatpush.bf16.msra.mxu0 0
    %1858 = vmatpush.bf16.msra.mxu0 %v1836
    %1859 = vmatmul.bf16.gmra.mxu0 %v1830
    %v1860 = vpop.f32.mrf.mxu0
    %v1861 = vadd.f32 0.0, %v1860
    %v1862 = vpop.f32.mrf.mxu0
    %1863 = vdwg.mxu0
    %v1864 = vpack.c.bf16 %v1618, %v1618
    %v1865 = vpack.c.bf16 %v1631, %v1631
    %v1866 = vld [vmem:[%s47] sm:$0xf]
    %v1867 = vld [vmem:[%s47 + $0x4] sm:$0xf]
    %v1868 = vld [vmem:[%s47 + $0x8] sm:$0xf]
    %v1869 = vld [vmem:[%s47 + $0xc] sm:$0xf]
    %v1870 = vld [vmem:[%s47 + $0x10] sm:$0xf]
    %v1871 = vld [vmem:[%s47 + $0x14] sm:$0xf]
    %v1872 = vld [vmem:[%s47 + $0x18] sm:$0xf]
    %v1873 = vld [vmem:[%s47 + $0x1c] sm:$0xf]
    %v1874 = vld [vmem:[%s47 + $0x20] sm:$0xf]
    %v1875 = vld [vmem:[%s47 + $0x24] sm:$0xf]
    %v1876 = vld [vmem:[%s47 + $0x28] sm:$0xf]
    %v1877 = vld [vmem:[%s47 + $0x2c] sm:$0xf]
    %v1878 = vld [vmem:[%s47 + $0x30] sm:$0xf]
    %v1879 = vld [vmem:[%s47 + $0x34] sm:$0xf]
    %v1880 = vld [vmem:[%s47 + $0x38] sm:$0xf]
    %v1881 = vld [vmem:[%s47 + $0x3c] sm:$0xf]
    %v1882 = vld [vmem:[%s47 + $0x40] sm:$0xf]
    %v1883 = vld [vmem:[%s47 + $0x44] sm:$0xf]
    %v1884 = vld [vmem:[%s47 + $0x48] sm:$0xf]
    %v1885 = vld [vmem:[%s47 + $0x4c] sm:$0xf]
    %v1886 = vld [vmem:[%s47 + $0x50] sm:$0xf]
    %v1887 = vld [vmem:[%s47 + $0x54] sm:$0xf]
    %v1888 = vld [vmem:[%s47 + $0x58] sm:$0xf]
    %v1889 = vld [vmem:[%s47 + $0x5c] sm:$0xf]
    %v1890 = vld [vmem:[%s47 + $0x60] sm:$0xf]
    %v1891 = vld [vmem:[%s47 + $0x64] sm:$0xf]
    %v1892 = vld [vmem:[%s47 + $0x68] sm:$0xf]
    %v1893 = vld [vmem:[%s47 + $0x6c] sm:$0xf]
    %v1894 = vld [vmem:[%s47 + $0x70] sm:$0xf]
    %v1895 = vld [vmem:[%s47 + $0x74] sm:$0xf]
    %v1896 = vld [vmem:[%s47 + $0x78] sm:$0xf]
    %v1897 = vld [vmem:[%s47 + $0x7c] sm:$0xf]
    %v1902 = vrot.slane %v1826, 4
    %v1903 = vrot.slane %v1861, 4
    %v1904 = vsel %vm1637, %v1813, %v1902
    %v1905 = vsel %vm1637, %v1848, %v1903
    %1906 = vst [vmem:[#allocation1] ss:$2 sm:$0xff] %v1904
    %s1907 = scalar_lea.vmem [#allocation1], 1
    %1908 = vst [vmem:[%s1907] ss:$2 sm:$0xff] %v1905
    %v1909 = vld.sshfl [vmem:[#allocation1] sm:$0xff pattern:$0x75316420]
    %v1910 = vld.sshfl [vmem:[#allocation1 + $0x8] sm:$0xff pattern:$0x75316420]
    %v1913 = vpack.c.bf16 %v1909, %v1909
    %v1914 = vpack.c.bf16 %v1910, %v1910
    %v1915 = vld [vmem:[%s49] sm:$0xf]
    %v1916 = vld [vmem:[%s49 + $0x4] sm:$0xf]
    %v1917 = vld [vmem:[%s49 + $0x8] sm:$0xf]
    %v1918 = vld [vmem:[%s49 + $0xc] sm:$0xf]
    %v1919 = vld [vmem:[%s49 + $0x10] sm:$0xf]
    %v1920 = vld [vmem:[%s49 + $0x14] sm:$0xf]
    %v1921 = vld [vmem:[%s49 + $0x18] sm:$0xf]
    %v1922 = vld [vmem:[%s49 + $0x1c] sm:$0xf]
    %v1923 = vld [vmem:[%s49 + $0x20] sm:$0xf]
    %v1924 = vld [vmem:[%s49 + $0x24] sm:$0xf]
    %v1925 = vld [vmem:[%s49 + $0x28] sm:$0xf]
    %v1926 = vld [vmem:[%s49 + $0x2c] sm:$0xf]
    %v1927 = vld [vmem:[%s49 + $0x30] sm:$0xf]
    %v1928 = vld [vmem:[%s49 + $0x34] sm:$0xf]
    %v1929 = vld [vmem:[%s49 + $0x38] sm:$0xf]
    %v1930 = vld [vmem:[%s49 + $0x3c] sm:$0xf]
    %v1931 = vld [vmem:[%s49 + $0x40] sm:$0xf]
    %v1932 = vld [vmem:[%s49 + $0x44] sm:$0xf]
    %v1933 = vld [vmem:[%s49 + $0x48] sm:$0xf]
    %v1934 = vld [vmem:[%s49 + $0x4c] sm:$0xf]
    %v1935 = vld [vmem:[%s49 + $0x50] sm:$0xf]
    %v1936 = vld [vmem:[%s49 + $0x54] sm:$0xf]
    %v1937 = vld [vmem:[%s49 + $0x58] sm:$0xf]
    %v1938 = vld [vmem:[%s49 + $0x5c] sm:$0xf]
    %v1939 = vld [vmem:[%s49 + $0x60] sm:$0xf]
    %v1940 = vld [vmem:[%s49 + $0x64] sm:$0xf]
    %v1941 = vld [vmem:[%s49 + $0x68] sm:$0xf]
    %v1942 = vld [vmem:[%s49 + $0x6c] sm:$0xf]
    %v1943 = vld [vmem:[%s49 + $0x70] sm:$0xf]
    %v1944 = vld [vmem:[%s49 + $0x74] sm:$0xf]
    %v1945 = vld [vmem:[%s49 + $0x78] sm:$0xf]
    %v1946 = vld [vmem:[%s49 + $0x7c] sm:$0xf]
    %v1979 = vunpack.c.l.b16 %v1915
    %v1980 = vunpack.c.l.b16 %v1916
    %v1981 = vunpack.c.l.b16 %v1917
    %v1982 = vunpack.c.l.b16 %v1918
    %v1983 = vunpack.c.l.b16 %v1919
    %v1984 = vunpack.c.l.b16 %v1920
    %v1985 = vunpack.c.l.b16 %v1921
    %v1986 = vunpack.c.l.b16 %v1922
    %v1987 = vunpack.c.l.b16 %v1923
    %v1988 = vunpack.c.l.b16 %v1924
    %v1989 = vunpack.c.l.b16 %v1925
    %v1990 = vunpack.c.l.b16 %v1926
    %v1991 = vunpack.c.l.b16 %v1927
    %v1992 = vunpack.c.l.b16 %v1928
    %v1993 = vunpack.c.l.b16 %v1929
    %v1994 = vunpack.c.l.b16 %v1930
    %v1995 = vunpack.c.l.b16 %v1931
    %v1996 = vunpack.c.l.b16 %v1932
    %v1997 = vunpack.c.l.b16 %v1933
    %v1998 = vunpack.c.l.b16 %v1934
    %v1999 = vunpack.c.l.b16 %v1935
    %v2000 = vunpack.c.l.b16 %v1936
    %v2001 = vunpack.c.l.b16 %v1937
    %v2002 = vunpack.c.l.b16 %v1938
    %v2003 = vunpack.c.l.b16 %v1939
    %v2004 = vunpack.c.l.b16 %v1940
    %v2005 = vunpack.c.l.b16 %v1941
    %v2006 = vunpack.c.l.b16 %v1942
    %v2007 = vunpack.c.l.b16 %v1943
    %v2008 = vunpack.c.l.b16 %v1944
    %v2009 = vunpack.c.l.b16 %v1945
    %v2010 = vunpack.c.l.b16 %v1946
    %v2011 = vpack.c.b16 %v1980, %v1979
    %v2012 = vpack.c.b16 %v1982, %v1981
    %v2013 = vpack.c.b16 %v1984, %v1983
    %v2014 = vpack.c.b16 %v1986, %v1985
    %v2015 = vpack.c.b16 %v1988, %v1987
    %v2016 = vpack.c.b16 %v1990, %v1989
    %v2017 = vpack.c.b16 %v1992, %v1991
    %v2018 = vpack.c.b16 %v1994, %v1993
    %v2019 = vpack.c.b16 %v1996, %v1995
    %v2020 = vpack.c.b16 %v1998, %v1997
    %v2021 = vpack.c.b16 %v2000, %v1999
    %v2022 = vpack.c.b16 %v2002, %v2001
    %v2023 = vpack.c.b16 %v2004, %v2003
    %v2024 = vpack.c.b16 %v2006, %v2005
    %v2025 = vpack.c.b16 %v2008, %v2007
    %v2026 = vpack.c.b16 %v2010, %v2009
    %2043 = vmatpush.bf16.msra.mxu0 %v2018
    %2044 = vmatpush.bf16.msra.mxu0 %v2017
    %2045 = vmatpush.bf16.msra.mxu0 %v2016
    %2046 = vmatpush.bf16.msra.mxu0 %v2015
    %2047 = vmatpush.bf16.msra.mxu0 %v2014
    %2048 = vmatpush.bf16.msra.mxu0 %v2013
    %2049 = vmatpush.bf16.msra.mxu0 %v2012
    %2050 = vmatpush.bf16.msra.mxu0 %v2011
    %2051 = vmatmul.bf16.gmra.mxu0 %v1913
    %v2052 = vpop.f32.mrf.mxu0
    %v2053 = vadd.f32 0.0, %v2052
    %v2054 = vpop.f32.mrf.mxu0
    %2055 = vdwg.mxu0
    %2056 = vmatpush.bf16.msra.mxu0 %v2026
    %2057 = vmatpush.bf16.msra.mxu0 %v2025
    %2058 = vmatpush.bf16.msra.mxu0 %v2024
    %2059 = vmatpush.bf16.msra.mxu0 %v2023
    %2060 = vmatpush.bf16.msra.mxu0 %v2022
    %2061 = vmatpush.bf16.msra.mxu0 %v2021
    %2062 = vmatpush.bf16.msra.mxu0 %v2020
    %2063 = vmatpush.bf16.msra.mxu0 %v2019
    %2064 = vmatmul.bf16.gmra.mxu0 %v1914
    %v2065 = vpop.f32.mrf.mxu0
    %v2066 = vadd.f32 %v2053, %v2065
    %v2067 = vpop.f32.mrf.mxu0
    %2068 = vdwg.mxu0
    %v2101 = vunpack.c.l.b16 %v1866
    %v2102 = vunpack.c.l.b16 %v1867
    %v2103 = vunpack.c.l.b16 %v1868
    %v2104 = vunpack.c.l.b16 %v1869
    %v2105 = vunpack.c.l.b16 %v1870
    %v2106 = vunpack.c.l.b16 %v1871
    %v2107 = vunpack.c.l.b16 %v1872
    %v2108 = vunpack.c.l.b16 %v1873
    %v2109 = vunpack.c.l.b16 %v1874
    %v2110 = vunpack.c.l.b16 %v1875
    %v2111 = vunpack.c.l.b16 %v1876
    %v2112 = vunpack.c.l.b16 %v1877
    %v2113 = vunpack.c.l.b16 %v1878
    %v2114 = vunpack.c.l.b16 %v1879
    %v2115 = vunpack.c.l.b16 %v1880
    %v2116 = vunpack.c.l.b16 %v1881
    %v2117 = vunpack.c.l.b16 %v1882
    %v2118 = vunpack.c.l.b16 %v1883
    %v2119 = vunpack.c.l.b16 %v1884
    %v2120 = vunpack.c.l.b16 %v1885
    %v2121 = vunpack.c.l.b16 %v1886
    %v2122 = vunpack.c.l.b16 %v1887
    %v2123 = vunpack.c.l.b16 %v1888
    %v2124 = vunpack.c.l.b16 %v1889
    %v2125 = vunpack.c.l.b16 %v1890
    %v2126 = vunpack.c.l.b16 %v1891
    %v2127 = vunpack.c.l.b16 %v1892
    %v2128 = vunpack.c.l.b16 %v1893
    %v2129 = vunpack.c.l.b16 %v1894
    %v2130 = vunpack.c.l.b16 %v1895
    %v2131 = vunpack.c.l.b16 %v1896
    %v2132 = vunpack.c.l.b16 %v1897
    %v2133 = vpack.c.b16 %v2102, %v2101
    %v2134 = vpack.c.b16 %v2104, %v2103
    %v2135 = vpack.c.b16 %v2106, %v2105
    %v2136 = vpack.c.b16 %v2108, %v2107
    %v2137 = vpack.c.b16 %v2110, %v2109
    %v2138 = vpack.c.b16 %v2112, %v2111
    %v2139 = vpack.c.b16 %v2114, %v2113
    %v2140 = vpack.c.b16 %v2116, %v2115
    %v2141 = vpack.c.b16 %v2118, %v2117
    %v2142 = vpack.c.b16 %v2120, %v2119
    %v2143 = vpack.c.b16 %v2122, %v2121
    %v2144 = vpack.c.b16 %v2124, %v2123
    %v2145 = vpack.c.b16 %v2126, %v2125
    %v2146 = vpack.c.b16 %v2128, %v2127
    %v2147 = vpack.c.b16 %v2130, %v2129
    %v2148 = vpack.c.b16 %v2132, %v2131
    %2165 = vmatpush.bf16.msra.mxu0 %v2140
    %2166 = vmatpush.bf16.msra.mxu0 %v2139
    %2167 = vmatpush.bf16.msra.mxu0 %v2138
    %2168 = vmatpush.bf16.msra.mxu0 %v2137
    %2169 = vmatpush.bf16.msra.mxu0 %v2136
    %2170 = vmatpush.bf16.msra.mxu0 %v2135
    %2171 = vmatpush.bf16.msra.mxu0 %v2134
    %2172 = vmatpush.bf16.msra.mxu0 %v2133
    %2173 = vmatmul.bf16.gmra.mxu0 %v1864
    %v2174 = vpop.f32.mrf.mxu0
    %v2175 = vadd.f32 %v2066, %v2174
    %v2176 = vpop.f32.mrf.mxu0
    %2177 = vdwg.mxu0
    %2178 = vmatpush.bf16.msra.mxu0 %v2148
    %2179 = vmatpush.bf16.msra.mxu0 %v2147
    %2180 = vmatpush.bf16.msra.mxu0 %v2146
    %2181 = vmatpush.bf16.msra.mxu0 %v2145
    %2182 = vmatpush.bf16.msra.mxu0 %v2144
    %2183 = vmatpush.bf16.msra.mxu0 %v2143
    %2184 = vmatpush.bf16.msra.mxu0 %v2142
    %2185 = vmatpush.bf16.msra.mxu0 %v2141
    %2186 = vmatmul.bf16.gmra.mxu0 %v1865
    %v2187 = vpop.f32.mrf.mxu0
    %v2188 = vadd.f32 %v2175, %v2187
    %v2189 = vpop.f32.mrf.mxu0
    %2190 = vdwg.mxu0
    %v2191 = vld [vmem:[#allocation7] sm:$0x1]
    %v2193 = vperm.slane %v2191, 0
    %v2195 = vadd.f32 %v2188, %v2193
    %v2197 = vrot.slane %v2195, 4
    %2199 = vst [vmem:[#allocation1] ss:$2 sm:$0xff] %v2195
    %v2200 = vld.sshfl [vmem:[#allocation1] sm:$0xff pattern:$0x75316420]
    %s2201 = scalar_lea.vmem [#allocation1], 16
    %2202 = vst [vmem:[%s2201] ss:$2 sm:$0xff] %v2197
    %v2203 = vld.sshfl [vmem:[#allocation1 + $0x10] sm:$0xff pattern:$0x75316420]
    %v2204 = vrot.slane %v2200, 7
    %v2205 = vrot.slane %v2203, 7
    %v2208 = vsel %vm1250, 0.0, %v2204
    %v2209 = vsel %vm1250, 0.0, %v2205
    %vm2210 = vcmask 1044480
    %v2211 = vsel %vm2210, %v2208, 0.0
    %v2212 = vsel %vm2210, %v2209, 0.0
    %v2215 = vrot.slane %v2211, 1
    %v2216 = vrot.slane %v2212, 1
    %2217 = vrot.lane.b32.xlu0 %v2215, 32
    %v2218 = vpop.permute.xlu0 %2217
    %2219 = vrot.lane.b32.xlu0 %v2216, 32
    %v2220 = vpop.permute.xlu0 %2219
    %v2223 = vrot.slane %v2211, 2
    %v2224 = vrot.slane %v2212, 2
    %2225 = vrot.lane.b32.xlu0 %v2223, 64
    %v2226 = vpop.permute.xlu0 %2225
    %2227 = vrot.lane.b32.xlu0 %v2224, 64
    %v2228 = vpop.permute.xlu0 %2227
    %v2231 = vsel %vm837, %v2211, %v2218
    %v2232 = vsel %vm837, %v2212, %v2220
    %vm2233 = vcmask 523264
    %v2234 = vsel %vm2233, %v2231, %v2226
    %v2235 = vsel %vm2233, %v2232, %v2228
    %2238 = vst [vmem:[#allocation1] ss:$2 sm:$0xff] %v2234
    %s2239 = scalar_lea.vmem [#allocation1], 1
    %2240 = vst [vmem:[%s2239] ss:$2 sm:$0xff] %v2235
    %v2241 = vld.sshfl [vmem:[#allocation1] sm:$0xff pattern:$0x75316420]
    %v2243 = vpack.c.bf16 %v2241, %v2241
    %v2244 = vld [vmem:[%s53] sm:$0xf]
    %v2245 = vld [vmem:[%s53 + $0x4] sm:$0xf]
    %v2246 = vld [vmem:[%s53 + $0x8] sm:$0xf]
    %v2247 = vld [vmem:[%s53 + $0xc] sm:$0xf]
    %v2248 = vld [vmem:[%s53 + $0x10] sm:$0xf]
    %v2249 = vld [vmem:[%s53 + $0x14] sm:$0xf]
    %v2250 = vld [vmem:[%s53 + $0x18] sm:$0xf]
    %v2251 = vld [vmem:[%s53 + $0x1c] sm:$0xf]
    %v2252 = vld [vmem:[%s53 + $0x20] sm:$0xf]
    %v2253 = vld [vmem:[%s53 + $0x24] sm:$0xf]
    %v2254 = vld [vmem:[%s53 + $0x28] sm:$0xf]
    %v2255 = vld [vmem:[%s53 + $0x2c] sm:$0xf]
    %v2256 = vld [vmem:[#allocation8] sm:$0x1]
    %v2258 = vperm.slane %v2256, 0
    %v2272 = vunpack.c.l.b16 %v2244
    %v2273 = vunpack.c.l.b16 %v2245
    %v2274 = vunpack.c.l.b16 %v2246
    %v2275 = vunpack.c.l.b16 %v2247
    %v2276 = vunpack.c.l.b16 %v2248
    %v2277 = vunpack.c.l.b16 %v2249
    %v2278 = vunpack.c.l.b16 %v2250
    %v2279 = vunpack.c.l.b16 %v2251
    %v2280 = vunpack.c.l.b16 %v2252
    %v2281 = vunpack.c.l.b16 %v2253
    %v2282 = vunpack.c.l.b16 %v2254
    %v2283 = vunpack.c.l.b16 %v2255
    %v2284 = vpack.c.b16 %v2273, %v2272
    %v2285 = vpack.c.b16 %v2275, %v2274
    %v2286 = vpack.c.b16 %v2277, %v2276
    %v2287 = vpack.c.b16 %v2279, %v2278
    %v2288 = vpack.c.b16 %v2281, %v2280
    %v2289 = vpack.c.b16 %v2283, %v2282
    %vm2296 = vcmask 785408
    %v2298 = vsel %vm2296, %v2243, 0
    %2300 = vmatpush.bf16.msra.mxu0 0
    %2301 = vmatpush.bf16.msra.mxu0 0
    %2302 = vmatpush.bf16.msra.mxu0 %v2289
    %2303 = vmatpush.bf16.msra.mxu0 %v2288
    %2304 = vmatpush.bf16.msra.mxu0 %v2287
    %2305 = vmatpush.bf16.msra.mxu0 %v2286
    %2306 = vmatpush.bf16.msra.mxu0 %v2285
    %2307 = vmatpush.bf16.msra.mxu0 %v2284
    %2308 = vmatmul.bf16.gmra.mxu0 %v2298
    %v2309 = vpop.f32.mrf.mxu0
    %v2310 = vadd.f32 %v2258, %v2309
    %v2311 = vpop.f32.mrf.mxu0
    %2312 = vdwg.mxu0
    %v2313 = vtanh.pop %v2310
    %v2315 = vrot.slane %v2313, 4
    %2316 = vst [vmem:[#allocation1] ss:$2 sm:$0xff] %v2313
    %v2317 = vld.sshfl [vmem:[#allocation1] sm:$0xff pattern:$0x75316420]
    %s2318 = scalar_lea.vmem [#allocation1], 16
    %2319 = vst [vmem:[%s2318] ss:$2 sm:$0xff] %v2315
    %v2320 = vld.sshfl [vmem:[#allocation1 + $0x10] sm:$0xff pattern:$0x75316420]
    %v2321 = vrot.slane %v2317, 7
    %v2322 = vrot.slane %v2320, 7
    %v2325 = vsel %vm1250, 0.0, %v2321
    %v2326 = vsel %vm1250, 0.0, %v2322
    %v2327 = vsel %vm2210, %v2325, 0.0
    %v2328 = vsel %vm2210, %v2326, 0.0
    %v2331 = vrot.slane %v2327, 1
    %v2332 = vrot.slane %v2328, 1
    %2333 = vrot.lane.b32.xlu0 %v2331, 64
    %v2334 = vpop.permute.xlu0 %2333
    %2335 = vrot.lane.b32.xlu0 %v2332, 64
    %v2336 = vpop.permute.xlu0 %2335
    %v2339 = vrot.slane %v2327, 2
    %v2340 = vrot.slane %v2328, 2
    %v2341 = vsel %vm2233, %v2327, %v2334
    %v2342 = vsel %vm2233, %v2328, %v2336
    %v2345 = vrot.slane %v2339, 4
    %v2346 = vrot.slane %v2340, 4
    %v2347 = vsel %vm1637, %v2341, %v2345
    %v2348 = vsel %vm1637, %v2342, %v2346
    %2349 = vst [vmem:[#allocation1] ss:$2 sm:$0xff] %v2347
    %s2350 = scalar_lea.vmem [#allocation1], 1
    %2351 = vst [vmem:[%s2350] ss:$2 sm:$0xff] %v2348
    %v2352 = vld.sshfl [vmem:[#allocation1] sm:$0xff pattern:$0x75316420]
    %v2353 = vld.sshfl [vmem:[#allocation1 + $0x8] sm:$0xff pattern:$0x75316420]
    %v2356 = vpack.c.bf16 %v2352, %v2352
    %v2357 = vpack.c.bf16 %v2353, %v2353
    %v2358 = vld [vmem:[%s57] sm:$0xf]
    %v2359 = vld [vmem:[%s57 + $0x4] sm:$0xf]
    %v2360 = vld [vmem:[%s57 + $0x8] sm:$0xf]
    %v2361 = vld [vmem:[%s57 + $0xc] sm:$0xf]
    %v2362 = vld [vmem:[%s57 + $0x10] sm:$0xf]
    %v2363 = vld [vmem:[%s57 + $0x14] sm:$0xf]
    %v2364 = vld [vmem:[%s57 + $0x18] sm:$0xf]
    %v2365 = vld [vmem:[%s57 + $0x1c] sm:$0xf]
    %v2366 = vld [vmem:[%s57 + $0x20] sm:$0xf]
    %v2367 = vld [vmem:[%s57 + $0x24] sm:$0xf]
    %v2368 = vld [vmem:[%s57 + $0x28] sm:$0xf]
    %v2369 = vld [vmem:[%s57 + $0x2c] sm:$0xf]
    %v2370 = vld [vmem:[%s57 + $0x30] sm:$0xf]
    %v2371 = vld [vmem:[%s57 + $0x34] sm:$0xf]
    %v2372 = vld [vmem:[%s57 + $0x38] sm:$0xf]
    %v2373 = vld [vmem:[%s57 + $0x3c] sm:$0xf]
    %v2374 = vld [vmem:[%s57 + $0x40] sm:$0xf]
    %v2375 = vld [vmem:[%s57 + $0x44] sm:$0xf]
    %v2376 = vld [vmem:[%s57 + $0x48] sm:$0xf]
    %v2377 = vld [vmem:[%s57 + $0x4c] sm:$0xf]
    %v2378 = vld [vmem:[%s57 + $0x50] sm:$0xf]
    %v2379 = vld [vmem:[%s57 + $0x54] sm:$0xf]
    %v2380 = vld [vmem:[%s57 + $0x58] sm:$0xf]
    %v2381 = vld [vmem:[%s57 + $0x5c] sm:$0xf]
    %v2382 = vld [vmem:[#allocation10] sm:$0x1]
    %v2384 = vperm.slane %v2382, 0
    %v2410 = vunpack.c.l.b16 %v2358
    %v2411 = vunpack.c.l.b16 %v2359
    %v2412 = vunpack.c.l.b16 %v2360
    %v2413 = vunpack.c.l.b16 %v2361
    %v2414 = vunpack.c.l.b16 %v2362
    %v2415 = vunpack.c.l.b16 %v2363
    %v2416 = vunpack.c.l.b16 %v2364
    %v2417 = vunpack.c.l.b16 %v2365
    %v2418 = vunpack.c.l.b16 %v2366
    %v2419 = vunpack.c.l.b16 %v2367
    %v2420 = vunpack.c.l.b16 %v2368
    %v2421 = vunpack.c.l.b16 %v2369
    %v2422 = vunpack.c.l.b16 %v2370
    %v2423 = vunpack.c.l.b16 %v2371
    %v2424 = vunpack.c.l.b16 %v2372
    %v2425 = vunpack.c.l.b16 %v2373
    %v2426 = vunpack.c.l.b16 %v2374
    %v2427 = vunpack.c.l.b16 %v2375
    %v2428 = vunpack.c.l.b16 %v2376
    %v2429 = vunpack.c.l.b16 %v2377
    %v2430 = vunpack.c.l.b16 %v2378
    %v2431 = vunpack.c.l.b16 %v2379
    %v2432 = vunpack.c.l.b16 %v2380
    %v2433 = vunpack.c.l.b16 %v2381
    %v2434 = vpack.c.b16 %v2411, %v2410
    %v2435 = vpack.c.b16 %v2413, %v2412
    %v2436 = vpack.c.b16 %v2415, %v2414
    %v2437 = vpack.c.b16 %v2417, %v2416
    %v2438 = vpack.c.b16 %v2419, %v2418
    %v2439 = vpack.c.b16 %v2421, %v2420
    %v2440 = vpack.c.b16 %v2423, %v2422
    %v2441 = vpack.c.b16 %v2425, %v2424
    %v2442 = vpack.c.b16 %v2427, %v2426
    %v2443 = vpack.c.b16 %v2429, %v2428
    %v2444 = vpack.c.b16 %v2431, %v2430
    %v2445 = vpack.c.b16 %v2433, %v2432
    %v2459 = vsel %vm2233, %v2357, 0
    %2461 = vmatpush.bf16.msra.mxu0 %v2441
    %2462 = vmatpush.bf16.msra.mxu0 %v2440
    %2463 = vmatpush.bf16.msra.mxu0 %v2439
    %2464 = vmatpush.bf16.msra.mxu0 %v2438
    %2465 = vmatpush.bf16.msra.mxu0 %v2437
    %2466 = vmatpush.bf16.msra.mxu0 %v2436
    %2467 = vmatpush.bf16.msra.mxu0 %v2435
    %2468 = vmatpush.bf16.msra.mxu0 %v2434
    %2469 = vmatmul.bf16.gmra.mxu0 %v2356
    %v2470 = vpop.f32.mrf.mxu0
    %v2471 = vadd.f32 %v2384, %v2470
    %v2472 = vpop.f32.mrf.mxu0
    %2473 = vdwg.mxu0
    %2474 = vmatpush.bf16.msra.mxu0 0
    %2475 = vmatpush.bf16.msra.mxu0 0
    %2476 = vmatpush.bf16.msra.mxu0 0
    %2477 = vmatpush.bf16.msra.mxu0 0
    %2478 = vmatpush.bf16.msra.mxu0 %v2445
    %2479 = vmatpush.bf16.msra.mxu0 %v2444
    %2480 = vmatpush.bf16.msra.mxu0 %v2443
    %2481 = vmatpush.bf16.msra.mxu0 %v2442
    %2482 = vmatmul.bf16.gmra.mxu0 %v2459
    %v2483 = vpop.f32.mrf.mxu0
    %v2484 = vadd.f32 %v2471, %v2483
    %v2485 = vpop.f32.mrf.mxu0
    %2486 = vdwg.mxu0
    %v2487 = vtanh.pop %v2484
    %v2489 = vrot.slane %v2487, 4
    %2490 = vst [vmem:[#allocation1] ss:$2 sm:$0xff] %v2487
    %v2491 = vld.sshfl [vmem:[#allocation1] sm:$0xff pattern:$0x75316420]
    %s2492 = scalar_lea.vmem [#allocation1], 16
    %2493 = vst [vmem:[%s2492] ss:$2 sm:$0xff] %v2489
    %v2494 = vld.sshfl [vmem:[#allocation1 + $0x10] sm:$0xff pattern:$0x75316420]
    %v2495 = vrot.slane %v2491, 7
    %v2496 = vrot.slane %v2494, 7
    %v2499 = vsel %vm1250, 0.0, %v2495
    %v2500 = vsel %vm1250, 0.0, %v2496
    %v2501 = vsel %vm2210, %v2499, 0.0
    %v2502 = vsel %vm2210, %v2500, 0.0
    %v2505 = vrot.slane %v2501, 1
    %v2506 = vrot.slane %v2502, 1
    %2507 = vrot.lane.b32.xlu0 %v2505, 64
    %v2508 = vpop.permute.xlu0 %2507
    %2509 = vrot.lane.b32.xlu0 %v2506, 64
    %v2510 = vpop.permute.xlu0 %2509
    %v2513 = vrot.slane %v2501, 2
    %v2514 = vrot.slane %v2502, 2
    %v2515 = vsel %vm2233, %v2501, %v2508
    %v2516 = vsel %vm2233, %v2502, %v2510
    %v2519 = vrot.slane %v2513, 4
    %v2520 = vrot.slane %v2514, 4
    %v2521 = vsel %vm1637, %v2515, %v2519
    %v2522 = vsel %vm1637, %v2516, %v2520
    %2523 = vst [vmem:[#allocation1] ss:$2 sm:$0xff] %v2521
    %s2524 = scalar_lea.vmem [#allocation1], 1
    %2525 = vst [vmem:[%s2524] ss:$2 sm:$0xff] %v2522
    %v2526 = vld.sshfl [vmem:[#allocation1] sm:$0xff pattern:$0x75316420]
    %v2527 = vld.sshfl [vmem:[#allocation1 + $0x8] sm:$0xff pattern:$0x75316420]
    %v2530 = vpack.c.bf16 %v2526, %v2526
    %v2531 = vpack.c.bf16 %v2527, %v2527
    %v2532 = vld [vmem:[%s61] sm:$0xf]
    %v2533 = vld [vmem:[%s61 + $0x4] sm:$0xf]
    %v2534 = vld [vmem:[%s61 + $0x8] sm:$0xf]
    %v2535 = vld [vmem:[%s61 + $0xc] sm:$0xf]
    %v2536 = vld [vmem:[%s61 + $0x10] sm:$0xf]
    %v2537 = vld [vmem:[%s61 + $0x14] sm:$0xf]
    %v2538 = vld [vmem:[%s61 + $0x18] sm:$0xf]
    %v2539 = vld [vmem:[%s61 + $0x1c] sm:$0xf]
    %v2540 = vld [vmem:[%s61 + $0x20] sm:$0xf]
    %v2541 = vld [vmem:[%s61 + $0x24] sm:$0xf]
    %v2542 = vld [vmem:[%s61 + $0x28] sm:$0xf]
    %v2543 = vld [vmem:[%s61 + $0x2c] sm:$0xf]
    %v2544 = vld [vmem:[%s61 + $0x30] sm:$0xf]
    %v2545 = vld [vmem:[%s61 + $0x34] sm:$0xf]
    %v2546 = vld [vmem:[%s61 + $0x38] sm:$0xf]
    %v2547 = vld [vmem:[%s61 + $0x3c] sm:$0xf]
    %v2548 = vld [vmem:[%s61 + $0x40] sm:$0xf]
    %v2549 = vld [vmem:[%s61 + $0x44] sm:$0xf]
    %v2550 = vld [vmem:[%s61 + $0x48] sm:$0xf]
    %v2551 = vld [vmem:[%s61 + $0x4c] sm:$0xf]
    %v2552 = vld [vmem:[%s61 + $0x50] sm:$0xf]
    %v2553 = vld [vmem:[%s61 + $0x54] sm:$0xf]
    %v2554 = vld [vmem:[%s61 + $0x58] sm:$0xf]
    %v2555 = vld [vmem:[%s61 + $0x5c] sm:$0xf]
    %v2556 = vld [vmem:[#allocation11] sm:$0x1]
    %v2558 = vperm.slane %v2556, 0
    %v2584 = vunpack.c.l.b16 %v2532
    %v2585 = vunpack.c.l.b16 %v2533
    %v2586 = vunpack.c.l.b16 %v2534
    %v2587 = vunpack.c.l.b16 %v2535
    %v2588 = vunpack.c.l.b16 %v2536
    %v2589 = vunpack.c.l.b16 %v2537
    %v2590 = vunpack.c.l.b16 %v2538
    %v2591 = vunpack.c.l.b16 %v2539
    %v2592 = vunpack.c.l.b16 %v2540
    %v2593 = vunpack.c.l.b16 %v2541
    %v2594 = vunpack.c.l.b16 %v2542
    %v2595 = vunpack.c.l.b16 %v2543
    %v2596 = vunpack.c.l.b16 %v2544
    %v2597 = vunpack.c.l.b16 %v2545
    %v2598 = vunpack.c.l.b16 %v2546
    %v2599 = vunpack.c.l.b16 %v2547
    %v2600 = vunpack.c.l.b16 %v2548
    %v2601 = vunpack.c.l.b16 %v2549
    %v2602 = vunpack.c.l.b16 %v2550
    %v2603 = vunpack.c.l.b16 %v2551
    %v2604 = vunpack.c.l.b16 %v2552
    %v2605 = vunpack.c.l.b16 %v2553
    %v2606 = vunpack.c.l.b16 %v2554
    %v2607 = vunpack.c.l.b16 %v2555
    %v2608 = vpack.c.b16 %v2585, %v2584
    %v2609 = vpack.c.b16 %v2587, %v2586
    %v2610 = vpack.c.b16 %v2589, %v2588
    %v2611 = vpack.c.b16 %v2591, %v2590
    %v2612 = vpack.c.b16 %v2593, %v2592
    %v2613 = vpack.c.b16 %v2595, %v2594
    %v2614 = vpack.c.b16 %v2597, %v2596
    %v2615 = vpack.c.b16 %v2599, %v2598
    %v2616 = vpack.c.b16 %v2601, %v2600
    %v2617 = vpack.c.b16 %v2603, %v2602
    %v2618 = vpack.c.b16 %v2605, %v2604
    %v2619 = vpack.c.b16 %v2607, %v2606
    %v2633 = vsel %vm2233, %v2531, 0
    %2635 = vmatpush.bf16.msra.mxu0 %v2615
    %2636 = vmatpush.bf16.msra.mxu0 %v2614
    %2637 = vmatpush.bf16.msra.mxu0 %v2613
    %2638 = vmatpush.bf16.msra.mxu0 %v2612
    %2639 = vmatpush.bf16.msra.mxu0 %v2611
    %2640 = vmatpush.bf16.msra.mxu0 %v2610
    %2641 = vmatpush.bf16.msra.mxu0 %v2609
    %2642 = vmatpush.bf16.msra.mxu0 %v2608
    %2643 = vmatmul.bf16.gmra.mxu0 %v2530
    %v2644 = vpop.f32.mrf.mxu0
    %v2645 = vadd.f32 %v2558, %v2644
    %v2646 = vpop.f32.mrf.mxu0
    %2647 = vdwg.mxu0
    %2648 = vmatpush.bf16.msra.mxu0 0
    %2649 = vmatpush.bf16.msra.mxu0 0
    %2650 = vmatpush.bf16.msra.mxu0 0
    %2651 = vmatpush.bf16.msra.mxu0 0
    %2652 = vmatpush.bf16.msra.mxu0 %v2619
    %2653 = vmatpush.bf16.msra.mxu0 %v2618
    %2654 = vmatpush.bf16.msra.mxu0 %v2617
    %2655 = vmatpush.bf16.msra.mxu0 %v2616
    %2656 = vmatmul.bf16.gmra.mxu0 %v2633
    %v2657 = vpop.f32.mrf.mxu0
    %v2658 = vadd.f32 %v2645, %v2657
    %v2659 = vpop.f32.mrf.mxu0
    %2660 = vdwg.mxu0
    %v2661 = vtanh.pop %v2658
    %v2663 = vrot.slane %v2661, 4
    %2664 = vst [vmem:[#allocation1] ss:$2 sm:$0xff] %v2661
    %v2665 = vld.sshfl [vmem:[#allocation1] sm:$0xff pattern:$0x75316420]
    %s2666 = scalar_lea.vmem [#allocation1], 16
    %2667 = vst [vmem:[%s2666] ss:$2 sm:$0xff] %v2663
    %v2668 = vld.sshfl [vmem:[#allocation1 + $0x10] sm:$0xff pattern:$0x75316420]
    %v2669 = vrot.slane %v2665, 7
    %v2670 = vrot.slane %v2668, 7
    %v2673 = vsel %vm1250, 0.0, %v2669
    %v2674 = vsel %vm1250, 0.0, %v2670
    %v2675 = vsel %vm2210, %v2673, 0.0
    %v2676 = vsel %vm2210, %v2674, 0.0
    %v2679 = vrot.slane %v2675, 1
    %v2680 = vrot.slane %v2676, 1
    %2681 = vrot.lane.b32.xlu0 %v2679, 64
    %v2682 = vpop.permute.xlu0 %2681
    %2683 = vrot.lane.b32.xlu0 %v2680, 64
    %v2684 = vpop.permute.xlu0 %2683
    %v2687 = vrot.slane %v2675, 2
    %v2688 = vrot.slane %v2676, 2
    %v2689 = vsel %vm2233, %v2675, %v2682
    %v2690 = vsel %vm2233, %v2676, %v2684
    %v2693 = vrot.slane %v2687, 4
    %v2694 = vrot.slane %v2688, 4
    %v2695 = vsel %vm1637, %v2689, %v2693
    %v2696 = vsel %vm1637, %v2690, %v2694
    %2697 = vst [vmem:[#allocation1] ss:$2 sm:$0xff] %v2695
    %s2698 = scalar_lea.vmem [#allocation1], 1
    %2699 = vst [vmem:[%s2698] ss:$2 sm:$0xff] %v2696
    %v2700 = vld.sshfl [vmem:[#allocation1] sm:$0xff pattern:$0x75316420]
    %v2701 = vld.sshfl [vmem:[#allocation1 + $0x8] sm:$0xff pattern:$0x75316420]
    %v2704 = vpack.c.bf16 %v2700, %v2700
    %v2705 = vpack.c.bf16 %v2701, %v2701
    %v2706 = vld [vmem:[%s65] sm:$0xf]
    %v2707 = vld [vmem:[%s65 + $0x4] sm:$0xf]
    %v2708 = vld [vmem:[%s65 + $0x8] sm:$0xf]
    %v2709 = vld [vmem:[%s65 + $0xc] sm:$0xf]
    %v2710 = vld [vmem:[%s65 + $0x10] sm:$0xf]
    %v2711 = vld [vmem:[%s65 + $0x14] sm:$0xf]
    %v2712 = vld [vmem:[%s65 + $0x18] sm:$0xf]
    %v2713 = vld [vmem:[%s65 + $0x1c] sm:$0xf]
    %v2714 = vld [vmem:[%s65 + $0x20] sm:$0xf]
    %v2715 = vld [vmem:[%s65 + $0x24] sm:$0xf]
    %v2716 = vld [vmem:[%s65 + $0x28] sm:$0xf]
    %v2717 = vld [vmem:[%s65 + $0x2c] sm:$0xf]
    %v2718 = vld [vmem:[%s65 + $0x30] sm:$0xf]
    %v2719 = vld [vmem:[%s65 + $0x34] sm:$0xf]
    %v2720 = vld [vmem:[%s65 + $0x38] sm:$0xf]
    %v2721 = vld [vmem:[%s65 + $0x3c] sm:$0xf]
    %v2722 = vld [vmem:[%s65 + $0x40] sm:$0xf]
    %v2723 = vld [vmem:[%s65 + $0x44] sm:$0xf]
    %v2724 = vld [vmem:[%s65 + $0x48] sm:$0xf]
    %v2725 = vld [vmem:[%s65 + $0x4c] sm:$0xf]
    %v2726 = vld [vmem:[%s65 + $0x50] sm:$0xf]
    %v2727 = vld [vmem:[%s65 + $0x54] sm:$0xf]
    %v2728 = vld [vmem:[%s65 + $0x58] sm:$0xf]
    %v2729 = vld [vmem:[%s65 + $0x5c] sm:$0xf]
    %v2730 = vld [vmem:[#allocation13] sm:$0x1]
    %v2732 = vperm.slane %v2730, 0
    %v2758 = vunpack.c.l.b16 %v2706
    %v2759 = vunpack.c.l.b16 %v2707
    %v2760 = vunpack.c.l.b16 %v2708
    %v2761 = vunpack.c.l.b16 %v2709
    %v2762 = vunpack.c.l.b16 %v2710
    %v2763 = vunpack.c.l.b16 %v2711
    %v2764 = vunpack.c.l.b16 %v2712
    %v2765 = vunpack.c.l.b16 %v2713
    %v2766 = vunpack.c.l.b16 %v2714
    %v2767 = vunpack.c.l.b16 %v2715
    %v2768 = vunpack.c.l.b16 %v2716
    %v2769 = vunpack.c.l.b16 %v2717
    %v2770 = vunpack.c.l.b16 %v2718
    %v2771 = vunpack.c.l.b16 %v2719
    %v2772 = vunpack.c.l.b16 %v2720
    %v2773 = vunpack.c.l.b16 %v2721
    %v2774 = vunpack.c.l.b16 %v2722
    %v2775 = vunpack.c.l.b16 %v2723
    %v2776 = vunpack.c.l.b16 %v2724
    %v2777 = vunpack.c.l.b16 %v2725
    %v2778 = vunpack.c.l.b16 %v2726
    %v2779 = vunpack.c.l.b16 %v2727
    %v2780 = vunpack.c.l.b16 %v2728
    %v2781 = vunpack.c.l.b16 %v2729
    %v2782 = vpack.c.b16 %v2759, %v2758
    %v2783 = vpack.c.b16 %v2761, %v2760
    %v2784 = vpack.c.b16 %v2763, %v2762
    %v2785 = vpack.c.b16 %v2765, %v2764
    %v2786 = vpack.c.b16 %v2767, %v2766
    %v2787 = vpack.c.b16 %v2769, %v2768
    %v2788 = vpack.c.b16 %v2771, %v2770
    %v2789 = vpack.c.b16 %v2773, %v2772
    %v2790 = vpack.c.b16 %v2775, %v2774
    %v2791 = vpack.c.b16 %v2777, %v2776
    %v2792 = vpack.c.b16 %v2779, %v2778
    %v2793 = vpack.c.b16 %v2781, %v2780
    %v2807 = vsel %vm2233, %v2705, 0
    %2809 = vmatpush.bf16.msra.mxu0 %v2789
    %2810 = vmatpush.bf16.msra.mxu0 %v2788
    %2811 = vmatpush.bf16.msra.mxu0 %v2787
    %2812 = vmatpush.bf16.msra.mxu0 %v2786
    %2813 = vmatpush.bf16.msra.mxu0 %v2785
    %2814 = vmatpush.bf16.msra.mxu0 %v2784
    %2815 = vmatpush.bf16.msra.mxu0 %v2783
    %2816 = vmatpush.bf16.msra.mxu0 %v2782
    %2817 = vmatmul.bf16.gmra.mxu0 %v2704
    %v2818 = vpop.f32.mrf.mxu0
    %v2819 = vadd.f32 %v2732, %v2818
    %v2820 = vpop.f32.mrf.mxu0
    %2821 = vdwg.mxu0
    %2822 = vmatpush.bf16.msra.mxu0 0
    %2823 = vmatpush.bf16.msra.mxu0 0
    %2824 = vmatpush.bf16.msra.mxu0 0
    %2825 = vmatpush.bf16.msra.mxu0 0
    %2826 = vmatpush.bf16.msra.mxu0 %v2793
    %2827 = vmatpush.bf16.msra.mxu0 %v2792
    %2828 = vmatpush.bf16.msra.mxu0 %v2791
    %2829 = vmatpush.bf16.msra.mxu0 %v2790
    %2830 = vmatmul.bf16.gmra.mxu0 %v2807
    %v2831 = vpop.f32.mrf.mxu0
    %v2832 = vadd.f32 %v2819, %v2831
    %v2833 = vpop.f32.mrf.mxu0
    %2834 = vdwg.mxu0
    %v2835 = vtanh.pop %v2832
    %v2837 = vrot.slane %v2835, 4
    %2838 = vst [vmem:[#allocation1] ss:$2 sm:$0xff] %v2835
    %v2839 = vld.sshfl [vmem:[#allocation1] sm:$0xff pattern:$0x75316420]
    %s2840 = scalar_lea.vmem [#allocation1], 16
    %2841 = vst [vmem:[%s2840] ss:$2 sm:$0xff] %v2837
    %v2842 = vld.sshfl [vmem:[#allocation1 + $0x10] sm:$0xff pattern:$0x75316420]
    %v2843 = vrot.slane %v2839, 7
    %v2844 = vrot.slane %v2842, 7
    %v2847 = vsel %vm1250, 0.0, %v2843
    %v2848 = vsel %vm1250, 0.0, %v2844
    %v2849 = vsel %vm2210, %v2847, 0.0
    %v2850 = vsel %vm2210, %v2848, 0.0
    %v2853 = vrot.slane %v2849, 1
    %v2854 = vrot.slane %v2850, 1
    %2855 = vrot.lane.b32.xlu0 %v2853, 64
    %v2856 = vpop.permute.xlu0 %2855
    %2857 = vrot.lane.b32.xlu0 %v2854, 64
    %v2858 = vpop.permute.xlu0 %2857
    %v2861 = vrot.slane %v2849, 2
    %v2862 = vrot.slane %v2850, 2
    %v2863 = vsel %vm2233, %v2849, %v2856
    %v2864 = vsel %vm2233, %v2850, %v2858
    %v2867 = vrot.slane %v2861, 4
    %v2868 = vrot.slane %v2862, 4
    %v2869 = vsel %vm1637, %v2863, %v2867
    %v2870 = vsel %vm1637, %v2864, %v2868
    %2871 = vst [vmem:[#allocation1] ss:$2 sm:$0xff] %v2869
    %s2872 = scalar_lea.vmem [#allocation1], 1
    %2873 = vst [vmem:[%s2872] ss:$2 sm:$0xff] %v2870
    %v2874 = vld.sshfl [vmem:[#allocation1] sm:$0xff pattern:$0x75316420]
    %v2875 = vld.sshfl [vmem:[#allocation1 + $0x8] sm:$0xff pattern:$0x75316420]
    %v2878 = vpack.c.bf16 %v2874, %v2874
    %v2879 = vpack.c.bf16 %v2875, %v2875
    %v2880 = vld [vmem:[%s69] sm:$0xf]
    %v2881 = vld [vmem:[%s69 + $0x4] sm:$0xf]
    %v2882 = vld [vmem:[%s69 + $0x8] sm:$0xf]
    %v2883 = vld [vmem:[%s69 + $0xc] sm:$0xf]
    %v2884 = vld [vmem:[%s69 + $0x10] sm:$0xf]
    %v2885 = vld [vmem:[%s69 + $0x14] sm:$0xf]
    %v2886 = vld [vmem:[%s69 + $0x18] sm:$0xf]
    %v2887 = vld [vmem:[%s69 + $0x1c] sm:$0xf]
    %v2888 = vld [vmem:[%s69 + $0x20] sm:$0xf]
    %v2889 = vld [vmem:[%s69 + $0x24] sm:$0xf]
    %v2890 = vld [vmem:[%s69 + $0x28] sm:$0xf]
    %v2891 = vld [vmem:[%s69 + $0x2c] sm:$0xf]
    %v2892 = vld [vmem:[%s69 + $0x30] sm:$0xf]
    %v2893 = vld [vmem:[%s69 + $0x34] sm:$0xf]
    %v2894 = vld [vmem:[%s69 + $0x38] sm:$0xf]
    %v2895 = vld [vmem:[%s69 + $0x3c] sm:$0xf]
    %v2896 = vld [vmem:[%s69 + $0x40] sm:$0xf]
    %v2897 = vld [vmem:[%s69 + $0x44] sm:$0xf]
    %v2898 = vld [vmem:[%s69 + $0x48] sm:$0xf]
    %v2899 = vld [vmem:[%s69 + $0x4c] sm:$0xf]
    %v2900 = vld [vmem:[%s69 + $0x50] sm:$0xf]
    %v2901 = vld [vmem:[%s69 + $0x54] sm:$0xf]
    %v2902 = vld [vmem:[%s69 + $0x58] sm:$0xf]
    %v2903 = vld [vmem:[%s69 + $0x5c] sm:$0xf]
    %v2904 = vld [vmem:[#allocation14] sm:$0x1]
    %v2906 = vperm.slane %v2904, 0
    %v2932 = vunpack.c.l.b16 %v2880
    %v2933 = vunpack.c.l.b16 %v2881
    %v2934 = vunpack.c.l.b16 %v2882
    %v2935 = vunpack.c.l.b16 %v2883
    %v2936 = vunpack.c.l.b16 %v2884
    %v2937 = vunpack.c.l.b16 %v2885
    %v2938 = vunpack.c.l.b16 %v2886
    %v2939 = vunpack.c.l.b16 %v2887
    %v2940 = vunpack.c.l.b16 %v2888
    %v2941 = vunpack.c.l.b16 %v2889
    %v2942 = vunpack.c.l.b16 %v2890
    %v2943 = vunpack.c.l.b16 %v2891
    %v2944 = vunpack.c.l.b16 %v2892
    %v2945 = vunpack.c.l.b16 %v2893
    %v2946 = vunpack.c.l.b16 %v2894
    %v2947 = vunpack.c.l.b16 %v2895
    %v2948 = vunpack.c.l.b16 %v2896
    %v2949 = vunpack.c.l.b16 %v2897
    %v2950 = vunpack.c.l.b16 %v2898
    %v2951 = vunpack.c.l.b16 %v2899
    %v2952 = vunpack.c.l.b16 %v2900
    %v2953 = vunpack.c.l.b16 %v2901
    %v2954 = vunpack.c.l.b16 %v2902
    %v2955 = vunpack.c.l.b16 %v2903
    %v2956 = vpack.c.b16 %v2933, %v2932
    %v2957 = vpack.c.b16 %v2935, %v2934
    %v2958 = vpack.c.b16 %v2937, %v2936
    %v2959 = vpack.c.b16 %v2939, %v2938
    %v2960 = vpack.c.b16 %v2941, %v2940
    %v2961 = vpack.c.b16 %v2943, %v2942
    %v2962 = vpack.c.b16 %v2945, %v2944
    %v2963 = vpack.c.b16 %v2947, %v2946
    %v2964 = vpack.c.b16 %v2949, %v2948
    %v2965 = vpack.c.b16 %v2951, %v2950
    %v2966 = vpack.c.b16 %v2953, %v2952
    %v2967 = vpack.c.b16 %v2955, %v2954
    %v2981 = vsel %vm2233, %v2879, 0
    %2983 = vmatpush.bf16.msra.mxu0 %v2963
    %2984 = vmatpush.bf16.msra.mxu0 %v2962
    %2985 = vmatpush.bf16.msra.mxu0 %v2961
    %2986 = vmatpush.bf16.msra.mxu0 %v2960
    %2987 = vmatpush.bf16.msra.mxu0 %v2959
    %2988 = vmatpush.bf16.msra.mxu0 %v2958
    %2989 = vmatpush.bf16.msra.mxu0 %v2957
    %2990 = vmatpush.bf16.msra.mxu0 %v2956
    %2991 = vmatmul.bf16.gmra.mxu0 %v2878
    %v2992 = vpop.f32.mrf.mxu0
    %v2993 = vadd.f32 %v2906, %v2992
    %v2994 = vpop.f32.mrf.mxu0
    %2995 = vdwg.mxu0
    %2996 = vmatpush.bf16.msra.mxu0 0
    %2997 = vmatpush.bf16.msra.mxu0 0
    %2998 = vmatpush.bf16.msra.mxu0 0
    %2999 = vmatpush.bf16.msra.mxu0 0
    %3000 = vmatpush.bf16.msra.mxu0 %v2967
    %3001 = vmatpush.bf16.msra.mxu0 %v2966
    %3002 = vmatpush.bf16.msra.mxu0 %v2965
    %3003 = vmatpush.bf16.msra.mxu0 %v2964
    %3004 = vmatmul.bf16.gmra.mxu0 %v2981
    %v3005 = vpop.f32.mrf.mxu0
    %v3006 = vadd.f32 %v2993, %v3005
    %v3007 = vpop.f32.mrf.mxu0
    %3008 = vdwg.mxu0
    %v3010 = vrot.slane %v3006, 4
    %v3012 = vadd.f32 %v2195, %v3006
    %v3013 = vadd.f32 %v2197, %v3010
    %3016 = vst [vmem:[#allocation1] ss:$2 sm:$0xff] %v3012
    %v3017 = vld.sshfl [vmem:[#allocation1] sm:$0xff pattern:$0x75316420]
    %s3018 = scalar_lea.vmem [#allocation1], 16
    %3019 = vst [vmem:[%s3018] ss:$2 sm:$0xff] %v3013
    %v3020 = vld.sshfl [vmem:[#allocation1 + $0x10] sm:$0xff pattern:$0x75316420]
    %3021 = vrot.lane.b32.xlu0 %v3017, 32
    %v3022 = vpop.permute.xlu0 %3021
    %3023 = vrot.lane.b32.xlu0 %v3020, 32
    %v3024 = vpop.permute.xlu0 %3023
    %3027 = vst [vmem:[#allocation1] ss:$2 sm:$0xff] %v2195
    %v3028 = vld.sshfl [vmem:[#allocation1] sm:$0xff pattern:$0x75316420]
    %s3029 = scalar_lea.vmem [#allocation1], 16
    %3030 = vst [vmem:[%s3029] ss:$2 sm:$0xff] %v2197
    %v3031 = vld.sshfl [vmem:[#allocation1 + $0x10] sm:$0xff pattern:$0x75316420]
    %3032 = vrot.lane.b32.xlu0 %v3028, 32
    %v3033 = vpop.permute.xlu0 %3032
    %3034 = vrot.lane.b32.xlu0 %v3031, 32
    %v3035 = vpop.permute.xlu0 %3034
    %3040 = vrot.lane.b32.xlu0 %v1775, 72
    %v3041 = vpop.permute.xlu0 %3040
    %3042 = vrot.lane.b32.xlu0 %v1790, 72
    %v3043 = vpop.permute.xlu0 %3042
    %v3046 = vsel %vm837, %v2195, %v3022
    %v3047 = vsel %vm837, %v2197, %v3024
    %v3048 = vsel %vm2233, %v3046, %v3033
    %v3049 = vsel %vm2233, %v3047, %v3035
    %vm3050 = vcmask 588800
    %v3051 = vsel %vm3050, %v3048, %v3041
    %v3052 = vsel %vm3050, %v3049, %v3043
    %vm3053 = vcmask 654336
    %v3054 = vsel %vm3053, %v3051, 0.0
    %v3055 = vsel %vm3053, %v3052, 0.0
    %3056 = vst [vmem:[%s73] sm:$0xf] %v3054
    %3057 = vst [vmem:[%s73 + $0x4] sm:$0xf] %v3055
    // Predicated region
    $region178: #{tacotron_forward.1} parent=1 // pred_check
      _
    $region179: #{tacotron_forward.1} parent=1 // pred_check_branch
      %3059 = sbr.rel (0) target = $region181
    $region180: #{tacotron_forward.1} parent=1 // pred_region
      _
    $region181: #{tacotron_forward.1} parent=1 // pred_fallthru
      _
    // Predicated region
    $region182: #{tacotron_forward.1} parent=1 // pred_check
      _
    $region183: #{tacotron_forward.1} parent=1 // pred_check_branch
      %3061 = sbr.rel (0) target = $region185
    $region184: #{tacotron_forward.1} parent=1 // pred_region
      %3063 = vsyncadd [#allocation4], 0
      %s3065 = sshll.u32 [#allocation16], 4
      %s3066 = int_to_ptr.vmem [resolvable:$true] %s3065
      %s3067 = sshll.u32 %s75, 4
      %s3068 = int_to_ptr.hbm [resolvable:$true] %s3067
      %3070 = dma.vmem_to_hbm [thread:$0]  %s3066, 32, %s3068, [#allocation4]
    $region185: #{tacotron_forward.1} parent=1 // pred_fallthru
      _
    // Predicated region
    $region186: #{tacotron_forward.1} parent=1 // pred_check
      _
    $region187: #{tacotron_forward.1} parent=1 // pred_check_branch
      %3072 = sbr.rel (0) target = $region189
    $region188: #{tacotron_forward.1} parent=1 // pred_region
      _
    $region189: #{tacotron_forward.1} parent=1 // pred_fallthru
      _
    // Predicated region
    $region190: #{tacotron_forward.1} parent=1 // pred_check
      _
    $region191: #{tacotron_forward.1} parent=1 // pred_check_branch
      %3074 = sbr.rel (0) target = $region193
    $region192: #{tacotron_forward.1} parent=1 // pred_region
      %3076 = dma.done [#allocation4], 32
    $region193: #{tacotron_forward.1} parent=1 // pred_fallthru
      _
    %3077 = vsyncpa [#allocation3], 1
    %3078 = vsyncpa [#allocation6], 1
    %3079 = vsyncpa [#allocation9], 1
    %3080 = vsyncpa [#allocation12], 1
    %3081 = vsyncpa [#allocation15], 1
    %3082 = vsyncpa [#allocation4], 1

</llo_original>
